<compile_context>
chip_gen: v6e
topology: v6e:2x2x1
jax: 0.10.0
libtpu: 0.0.40
codegen_flags: <defaults>
</compile_context>

<pallas_src>
import functools

import jax
import jax.numpy as jnp
from jax import lax
from jax.experimental import pallas as pl
from jax.experimental.pallas import tpu as pltpu


def _softplus_stable(v):
    # Numerically stable softplus (beta=1): exactly one exp + one log1p.
    return jnp.maximum(v, 0.0) + jnp.log1p(jnp.exp(-jnp.abs(v)))


def _stp_kernel(I_e_ref, J_T_ref, w_out_ref, b_out_ref, out_ref, *,
                seq_len, input_duration, dt, U, tau, tau_f, tau_d,
                alpha, I_b, J_EI, J_IE, unroll):
    # ---- loop-invariant setup (computed once per call) -------------------
    I_e = I_e_ref[...]                            # (Bp, N) f32
    J_T = J_T_ref[...]                            # (N, N), softplus(raw_J).T,
    mxu_dtype = J_T.dtype                         #   already in MXU dtype
    Bp, N = I_e.shape

    # All per-step divides folded into precomputed multiplies (dt baked in) so
    # the serial per-iteration chain carries no EUP reciprocals beyond the
    # softplus exp/log1p.
    inv_alpha     = 1.0 / alpha
    dt_over_tau   = dt / tau
    dt_over_tau_f = dt / tau_f
    dt_over_tau_d = dt / tau_d
    U_dt          = U * dt

    def compute_R(v):
        # F.softplus(v, beta=1/alpha) = alpha * log(1 + exp(v / alpha))
        return alpha * _softplus_stable(v * inv_alpha)

    def make_step(drive):
        # drive = I_b + external input; a (Bp, N) array while the input is on,
        # a plain scalar afterwards. Precomputed outside the loop body.
        def step(_, carry):
            h, u, x, h_I, R_I = carry             # R_I carried from prev step
            R = compute_R(h)                                   # (Bp, N)
            uxR = u * x * R                                    # (Bp, N) f32
            # bf16 operands, f32 accumulate -> single-pass MXU.
            syn = jnp.dot(uxR.astype(mxu_dtype), J_T,
                          preferred_element_type=jnp.float32)  # (Bp, N)
            h_n  = h + dt_over_tau * (syn - h - J_EI * R_I + drive)
            u_n  = u + dt_over_tau_f * (U - u) + U_dt * (1.0 - u) * R
            x_n  = x + dt_over_tau_d * (1.0 - x) - dt * uxR
            hI_n = h_I + dt_over_tau * (
                J_IE * jnp.sum(R, axis=1, keepdims=True) - h_I)
            # Compute next step's R_I here so its EUP push hides under this
            # step's VPU work instead of heading the next step's h update.
            RI_n = compute_R(hI_n)                             # (Bp, 1)
            return h_n, u_n, x_n, hI_n, RI_n
        return step

    # Initial state (h=0, u=U, x=1, h_I=0, R_I=R(0)), matching the torch module.
    state = (jnp.zeros((Bp, N), jnp.float32),
             jnp.full((Bp, N), U, dtype=jnp.float32),
             jnp.ones((Bp, N), jnp.float32),
             jnp.zeros((Bp, 1), jnp.float32),
             compute_R(jnp.zeros((Bp, 1), jnp.float32)))

    # The input gate (t < input_duration) is static -> split the time loop so
    # the per-step compare / bool cast / broadcast / select disappear.
    n_on = min(int(input_duration), int(seq_len))
    n_off = int(seq_len) - n_on
    if n_on > 0:
        state = lax.fori_loop(0, n_on, make_step(I_e + I_b), state,
                              unroll=min(int(unroll), n_on))
    if n_off > 0:
        state = lax.fori_loop(0, n_off, make_step(jnp.float32(I_b)), state,
                              unroll=min(int(unroll), n_off))

    h = state[0]
    # output_layer(final_h): a (Bp,N)@(N,1) matmul is a wasteful 1-lane MXU
    # pass; do a VPU multiply + lane reduce instead, bias scalar from SMEM.
    out_ref[...] = (jnp.sum(h * w_out_ref[...], axis=1, keepdims=True)
                    + b_out_ref[0, 0])


def stp_wrapper_forward(x, W_in, b_in, raw_J, W_out, b_out, *,
                        seq_len, input_duration,
                        dt=1e-4, U=0.3, tau=0.008, tau_f=1.5, tau_d=0.3,
                        alpha=1.5, I_b=8.0, J_EI=1.1, J_IE=2.2,
                        unroll=8, mxu_dtype=jnp.bfloat16):
    """x: (B, 2) -> returns (B,) like STPWrapper.forward(x, seq_len)."""
    x = x.astype(jnp.float32)
    # Input Linear layer (glue): I_e = x @ W_in.T + b_in  -> (B, N)
    I_e = (jnp.dot(x, W_in.T) + b_in).astype(jnp.float32)
    B, N = I_e.shape

    # Hoisted out of the kernel (perf review): one-time softplus of raw_J runs
    # in XLA and overlaps with the input Linear / input DMA. Pre-transposed
    # and cast to the MXU operand dtype (bf16 halves weight DMA + VMEM).
    J_eff_T = jax.nn.softplus(raw_J.astype(jnp.float32)).T.astype(mxu_dtype)

    # Pad batch to the 8-sublane vreg shape so all VPU/EUP/store ops are
    # full-width. Rows evolve independently (row-wise dynamics + per-row lane
    # reduce), so padded rows never influence the real ones.
    Bp = max(8, -(-B // 8) * 8)
    if Bp != B:
        I_e = jnp.pad(I_e, ((0, Bp - B), (0, 0)))

    kernel = functools.partial(
        _stp_kernel,
        seq_len=int(seq_len), input_duration=int(input_duration),
        dt=float(dt), U=float(U), tau=float(tau), tau_f=float(tau_f),
        tau_d=float(tau_d), alpha=float(alpha), I_b=float(I_b),
        J_EI=float(J_EI), J_IE=float(J_IE), unroll=int(unroll))

    vmem = pl.BlockSpec(memory_space=pltpu.MemorySpace.VMEM)
    smem = pl.BlockSpec(memory_space=pltpu.MemorySpace.SMEM)
    out = pl.pallas_call(
        kernel,
        out_shape=jax.ShapeDtypeStruct((Bp, 1), jnp.float32),
        in_specs=[vmem, vmem, vmem, smem],
        out_specs=vmem,
    )(I_e,
      J_eff_T,                                    # (N, N), softplus'd + cast
      W_out.astype(jnp.float32),                  # (1, N) output row
      b_out.reshape(1, 1).astype(jnp.float32))    # SMEM scalar bias
    return out[:B, 0]                             # .squeeze(-1) on real rows


def _reference_forward(x, W_in, b_in, raw_J, W_out, b_out, *,
                       seq_len, input_duration,
                       dt=1e-4, U=0.3, tau=0.008, tau_f=1.5, tau_d=0.3,
                       alpha=1.5, I_b=8.0, J_EI=1.1, J_IE=2.2):
    """Pure-JAX reference mirroring the PyTorch code (sanity check)."""
    I_e = jnp.dot(x, W_in.T) + b_in
    B, N = I_e.shape
    J_eff = jnp.logaddexp(raw_J, 0.0)
    h = jnp.zeros((B, N)); u = jnp.full((B, N), U)
    xs = jnp.ones((B, N)); h_I = jnp.zeros((B, 1))
    R_fn = lambda v: alpha * jnp.logaddexp(v / alpha, 0.0)
    for t in range(seq_len):
        inp = I_e if t < input_duration else jnp.zeros_like(I_e)
        R = R_fn(h); R_I = R_fn(h_I)
        syn = (J_eff @ (u * xs * R).T).T
        dh = (-h + syn - J_EI * R_I + I_b + inp) / tau
        du = (U - u) / tau_f + U * (1 - u) * R
        dx = (1 - xs) / tau_d - u * xs * R
        dh_I = (-h_I + J_IE * jnp.sum(R, axis=1, keepdims=True)) / tau
        h, u, xs, h_I = h + dh * dt, u + du * dt, xs + dx * dt, h_I + dh_I * dt
    return (h @ W_out.T + b_out)[:, 0]


if __name__ == "__main__":
    B, N = 4, 128
    seq_len, input_duration = 16, 8

    key = jax.random.PRNGKey(0)
    k1, k2, k3, kx = jax.random.split(key, 4)
    # Deterministic parameter init matching the module's __init__ shapes/stats.
    W_in = 0.1 * jax.random.normal(k1, (N, 2), jnp.float32)    # input_layer.weight
    b_in = jnp.zeros((N,), jnp.float32)                        # input_layer.bias
    raw_J = 0.1 * jax.random.normal(k2, (N, N), jnp.float32)   # stp_model.raw_J
    W_out = 0.1 * jax.random.normal(k3, (1, N), jnp.float32)   # output_layer.weight
    b_out = jnp.zeros((1,), jnp.float32)                       # output_layer.bias

    x = jax.random.normal(kx, (B, 2), jnp.float32)

    ref = _reference_forward(x, W_in, b_in, raw_J, W_out, b_out,
                             seq_len=seq_len, input_duration=input_duration)

    # 1) f32-MXU path: validates the kernel logic bit-close to the PyTorch/f32
    #    semantics.
    out_f32 = stp_wrapper_forward(x, W_in, b_in, raw_J, W_out, b_out,
                                  seq_len=seq_len,
                                  input_duration=input_duration,
                                  mxu_dtype=jnp.float32)
    out_f32 = jax.block_until_ready(out_f32)
    assert out_f32.shape == (B,)
    assert jnp.allclose(out_f32, ref, rtol=1e-3, atol=1e-3), (out_f32, ref)

    # 2) bf16-MXU path (the performance configuration): bf16 operand rounding
    #    introduces a small drift that the recurrent dynamics amplify over the
    #    serial integration, hence the slightly looser tolerance.
    out = stp_wrapper_forward(x, W_in, b_in, raw_J, W_out, b_out,
                              seq_len=seq_len, input_duration=input_duration)
    out = jax.block_until_ready(out)
    assert out.shape == (B,)
    assert jnp.allclose(out, ref, rtol=2e-2, atol=2e-2), (out, ref)

    print("KERNEL_OK")
</pallas_src>

<mosaic_0001>
module attributes {stable_mosaic.version = 11 : i64} {
  func.func @_stp_kernel(%arg0: memref<8x128xf32, #tpu.memory_space<vmem>>, %arg1: memref<128x128xf32, #tpu.memory_space<vmem>>, %arg2: memref<1x128xf32, #tpu.memory_space<vmem>>, %arg3: memref<1x1xf32, #tpu.memory_space<smem>>, %arg4: memref<8x1xf32, #tpu.memory_space<vmem>>) attributes {dimension_semantics = [], scalar_prefetch = 0 : i64, scratch_operands = 0 : i64, tpu.core_type = #tpu.core_type<tc>} {
    %c0 = arith.constant 0 : index
    %c0_0 = arith.constant 0 : index
    %0 = vector.load %arg0[%c0, %c0_0] : memref<8x128xf32, #tpu.memory_space<vmem>>, vector<8x128xf32>
    %c0_1 = arith.constant 0 : index
    %c0_2 = arith.constant 0 : index
    %1 = vector.load %arg1[%c0_1, %c0_2] : memref<128x128xf32, #tpu.memory_space<vmem>>, vector<128x128xf32>
    %cst = arith.constant 0.000000e+00 : f32
    %2 = vector.broadcast %cst : f32 to vector<8x128xf32>
    %cst_3 = arith.constant 3.000000e-01 : f32
    %3 = vector.broadcast %cst_3 : f32 to vector<8x128xf32>
    %cst_4 = arith.constant 1.000000e+00 : f32
    %4 = vector.broadcast %cst_4 : f32 to vector<8x128xf32>
    %cst_5 = arith.constant 0.000000e+00 : f32
    %5 = vector.broadcast %cst_5 : f32 to vector<8x1xf32>
    %cst_6 = arith.constant 0.000000e+00 : f32
    %6 = vector.broadcast %cst_6 : f32 to vector<8x1xf32>
    %cst_7 = arith.constant 0.666666686 : f32
    %7 = vector.broadcast %cst_7 : f32 to vector<8x1xf32>
    %8 = arith.mulf %6, %7 : vector<8x1xf32>
    %cst_8 = arith.constant 0.000000e+00 : f32
    %9 = vector.broadcast %cst_8 : f32 to vector<8x1xf32>
    %10 = arith.maximumf %8, %9 : vector<8x1xf32>
    %11 = math.absf %8 : vector<8x1xf32>
    %cst_9 = arith.constant 0.000000e+00 : f32
    %12 = vector.broadcast %cst_9 : f32 to vector<8x1xf32>
    %13 = arith.subf %12, %11 : vector<8x1xf32>
    %14 = math.exp %13 : vector<8x1xf32>
    %15 = math.log1p %14 : vector<8x1xf32>
    %16 = arith.addf %10, %15 : vector<8x1xf32>
    %cst_10 = arith.constant 1.500000e+00 : f32
    %17 = vector.broadcast %cst_10 : f32 to vector<8x1xf32>
    %18 = arith.mulf %17, %16 : vector<8x1xf32>
    %cst_11 = arith.constant 8.000000e+00 : f32
    %19 = vector.broadcast %cst_11 : f32 to vector<8x128xf32>
    %20 = arith.addf %0, %19 : vector<8x128xf32>
    %c0_i32 = arith.constant 0 : i32
    %cst_12 = arith.constant 0.666666686 : f32
    %21 = vector.broadcast %cst_12 : f32 to vector<8x128xf32>
    %22 = arith.mulf %2, %21 : vector<8x128xf32>
    %cst_13 = arith.constant 0.000000e+00 : f32
    %23 = vector.broadcast %cst_13 : f32 to vector<8x128xf32>
    %24 = arith.maximumf %22, %23 : vector<8x128xf32>
    %25 = math.absf %22 : vector<8x128xf32>
    %cst_14 = arith.constant 0.000000e+00 : f32
    %26 = vector.broadcast %cst_14 : f32 to vector<8x128xf32>
    %27 = arith.subf %26, %25 : vector<8x128xf32>
    %28 = math.exp %27 : vector<8x128xf32>
    %29 = math.log1p %28 : vector<8x128xf32>
    %30 = arith.addf %24, %29 : vector<8x128xf32>
    %cst_15 = arith.constant 1.500000e+00 : f32
    %31 = vector.broadcast %cst_15 : f32 to vector<8x128xf32>
    %32 = arith.mulf %31, %30 : vector<8x128xf32>
    %33 = arith.mulf %3, %4 : vector<8x128xf32>
    %34 = arith.mulf %33, %32 : vector<8x128xf32>
    %cst_16 = arith.constant dense<0.000000e+00> : vector<8x128xf32>
    %35 = tpu.matmul %34, %1, %cst_16 {dimension_numbers = #tpu.dot_dimension_numbers<[1], [0], [0], [1], [0, 0, 1, 1], [], []>} : vector<8x128xf32>, vector<128x128xf32>, vector<8x128xf32> -> vector<8x128xf32>
    %36 = arith.subf %35, %2 : vector<8x128xf32>
    %cst_17 = arith.constant 1.100000e+00 : f32
    %37 = vector.broadcast %cst_17 : f32 to vector<8x1xf32>
    %38 = arith.mulf %37, %18 : vector<8x1xf32>
    %39 = vector.broadcast %38 : vector<8x1xf32> to vector<8x128xf32>
    %40 = arith.subf %36, %39 : vector<8x128xf32>
    %41 = arith.addf %40, %20 : vector<8x128xf32>
    %cst_18 = arith.constant 1.250000e-02 : f32
    %42 = vector.broadcast %cst_18 : f32 to vector<8x128xf32>
    %43 = arith.mulf %42, %41 : vector<8x128xf32>
    %44 = arith.addf %2, %43 : vector<8x128xf32>
    %cst_19 = arith.constant 3.000000e-01 : f32
    %45 = vector.broadcast %cst_19 : f32 to vector<8x128xf32>
    %46 = arith.subf %45, %3 : vector<8x128xf32>
    %cst_20 = arith.constant 6.66666674E-5 : f32
    %47 = vector.broadcast %cst_20 : f32 to vector<8x128xf32>
    %48 = arith.mulf %47, %46 : vector<8x128xf32>
    %49 = arith.addf %3, %48 : vector<8x128xf32>
    %cst_21 = arith.constant 1.000000e+00 : f32
    %50 = vector.broadcast %cst_21 : f32 to vector<8x128xf32>
    %51 = arith.subf %50, %3 : vector<8x128xf32>
    %cst_22 = arith.constant 3.000000e-05 : f32
    %52 = vector.broadcast %cst_22 : f32 to vector<8x128xf32>
    %53 = arith.mulf %52, %51 : vector<8x128xf32>
    %54 = arith.mulf %53, %32 : vector<8x128xf32>
    %55 = arith.addf %49, %54 : vector<8x128xf32>
    %cst_23 = arith.constant 1.000000e+00 : f32
    %56 = vector.broadcast %cst_23 : f32 to vector<8x128xf32>
    %57 = arith.subf %56, %4 : vector<8x128xf32>
    %cst_24 = arith.constant 3.3333333E-4 : f32
    %58 = vector.broadcast %cst_24 : f32 to vector<8x128xf32>
    %59 = arith.mulf %58, %57 : vector<8x128xf32>
    %60 = arith.addf %4, %59 : vector<8x128xf32>
    %cst_25 = arith.constant 9.99999974E-5 : f32
    %61 = vector.broadcast %cst_25 : f32 to vector<8x128xf32>
    %62 = arith.mulf %61, %34 : vector<8x128xf32>
    %63 = arith.subf %60, %62 : vector<8x128xf32>
    %cst_26 = arith.constant dense<0.000000e+00> : vector<8xf32>
    %64 = vector.multi_reduction <add>, %32, %cst_26 [1] : vector<8x128xf32> to vector<8xf32>
    %65 = vector.shape_cast %64 : vector<8xf32> to vector<8x1xf32>
    %cst_27 = arith.constant 2.200000e+00 : f32
    %66 = vector.broadcast %cst_27 : f32 to vector<8x1xf32>
    %67 = arith.mulf %66, %65 : vector<8x1xf32>
    %68 = arith.subf %67, %5 : vector<8x1xf32>
    %cst_28 = arith.constant 1.250000e-02 : f32
    %69 = vector.broadcast %cst_28 : f32 to vector<8x1xf32>
    %70 = arith.mulf %69, %68 : vector<8x1xf32>
    %71 = arith.addf %5, %70 : vector<8x1xf32>
    %cst_29 = arith.constant 0.666666686 : f32
    %72 = vector.broadcast %cst_29 : f32 to vector<8x1xf32>
    %73 = arith.mulf %71, %72 : vector<8x1xf32>
    %cst_30 = arith.constant 0.000000e+00 : f32
    %74 = vector.broadcast %cst_30 : f32 to vector<8x1xf32>
    %75 = arith.maximumf %73, %74 : vector<8x1xf32>
    %76 = math.absf %73 : vector<8x1xf32>
    %cst_31 = arith.constant 0.000000e+00 : f32
    %77 = vector.broadcast %cst_31 : f32 to vector<8x1xf32>
    %78 = arith.subf %77, %76 : vector<8x1xf32>
    %79 = math.exp %78 : vector<8x1xf32>
    %80 = math.log1p %79 : vector<8x1xf32>
    %81 = arith.addf %75, %80 : vector<8x1xf32>
    %cst_32 = arith.constant 1.500000e+00 : f32
    %82 = vector.broadcast %cst_32 : f32 to vector<8x1xf32>
    %83 = arith.mulf %82, %81 : vector<8x1xf32>
    %c1_i32 = arith.constant 1 : i32
    %cst_33 = arith.constant 0.666666686 : f32
    %84 = vector.broadcast %cst_33 : f32 to vector<8x128xf32>
    %85 = arith.mulf %44, %84 : vector<8x128xf32>
    %cst_34 = arith.constant 0.000000e+00 : f32
    %86 = vector.broadcast %cst_34 : f32 to vector<8x128xf32>
    %87 = arith.maximumf %85, %86 : vector<8x128xf32>
    %88 = math.absf %85 : vector<8x128xf32>
    %cst_35 = arith.constant 0.000000e+00 : f32
    %89 = vector.broadcast %cst_35 : f32 to vector<8x128xf32>
    %90 = arith.subf %89, %88 : vector<8x128xf32>
    %91 = math.exp %90 : vector<8x128xf32>
    %92 = math.log1p %91 : vector<8x128xf32>
    %93 = arith.addf %87, %92 : vector<8x128xf32>
    %cst_36 = arith.constant 1.500000e+00 : f32
    %94 = vector.broadcast %cst_36 : f32 to vector<8x128xf32>
    %95 = arith.mulf %94, %93 : vector<8x128xf32>
    %96 = arith.mulf %55, %63 : vector<8x128xf32>
    %97 = arith.mulf %96, %95 : vector<8x128xf32>
    %cst_37 = arith.constant dense<0.000000e+00> : vector<8x128xf32>
    %98 = tpu.matmul %97, %1, %cst_37 {dimension_numbers = #tpu.dot_dimension_numbers<[1], [0], [0], [1], [0, 0, 1, 1], [], []>} : vector<8x128xf32>, vector<128x128xf32>, vector<8x128xf32> -> vector<8x128xf32>
    %99 = arith.subf %98, %44 : vector<8x128xf32>
    %cst_38 = arith.constant 1.100000e+00 : f32
    %100 = vector.broadcast %cst_38 : f32 to vector<8x1xf32>
    %101 = arith.mulf %100, %83 : vector<8x1xf32>
    %102 = vector.broadcast %101 : vector<8x1xf32> to vector<8x128xf32>
    %103 = arith.subf %99, %102 : vector<8x128xf32>
    %104 = arith.addf %103, %20 : vector<8x128xf32>
    %cst_39 = arith.constant 1.250000e-02 : f32
    %105 = vector.broadcast %cst_39 : f32 to vector<8x128xf32>
    %106 = arith.mulf %105, %104 : vector<8x128xf32>
    %107 = arith.addf %44, %106 : vector<8x128xf32>
    %cst_40 = arith.constant 3.000000e-01 : f32
    %108 = vector.broadcast %cst_40 : f32 to vector<8x128xf32>
    %109 = arith.subf %108, %55 : vector<8x128xf32>
    %cst_41 = arith.constant 6.66666674E-5 : f32
    %110 = vector.broadcast %cst_41 : f32 to vector<8x128xf32>
    %111 = arith.mulf %110, %109 : vector<8x128xf32>
    %112 = arith.addf %55, %111 : vector<8x128xf32>
    %cst_42 = arith.constant 1.000000e+00 : f32
    %113 = vector.broadcast %cst_42 : f32 to vector<8x128xf32>
    %114 = arith.subf %113, %55 : vector<8x128xf32>
    %cst_43 = arith.constant 3.000000e-05 : f32
    %115 = vector.broadcast %cst_43 : f32 to vector<8x128xf32>
    %116 = arith.mulf %115, %114 : vector<8x128xf32>
    %117 = arith.mulf %116, %95 : vector<8x128xf32>
    %118 = arith.addf %112, %117 : vector<8x128xf32>
    %cst_44 = arith.constant 1.000000e+00 : f32
    %119 = vector.broadcast %cst_44 : f32 to vector<8x128xf32>
    %120 = arith.subf %119, %63 : vector<8x128xf32>
    %cst_45 = arith.constant 3.3333333E-4 : f32
    %121 = vector.broadcast %cst_45 : f32 to vector<8x128xf32>
    %122 = arith.mulf %121, %120 : vector<8x128xf32>
    %123 = arith.addf %63, %122 : vector<8x128xf32>
    %cst_46 = arith.constant 9.99999974E-5 : f32
    %124 = vector.broadcast %cst_46 : f32 to vector<8x128xf32>
    %125 = arith.mulf %124, %97 : vector<8x128xf32>
    %126 = arith.subf %123, %125 : vector<8x128xf32>
    %cst_47 = arith.constant dense<0.000000e+00> : vector<8xf32>
    %127 = vector.multi_reduction <add>, %95, %cst_47 [1] : vector<8x128xf32> to vector<8xf32>
    %128 = vector.shape_cast %127 : vector<8xf32> to vector<8x1xf32>
    %cst_48 = arith.constant 2.200000e+00 : f32
    %129 = vector.broadcast %cst_48 : f32 to vector<8x1xf32>
    %130 = arith.mulf %129, %128 : vector<8x1xf32>
    %131 = arith.subf %130, %71 : vector<8x1xf32>
    %cst_49 = arith.constant 1.250000e-02 : f32
    %132 = vector.broadcast %cst_49 : f32 to vector<8x1xf32>
    %133 = arith.mulf %132, %131 : vector<8x1xf32>
    %134 = arith.addf %71, %133 : vector<8x1xf32>
    %cst_50 = arith.constant 0.666666686 : f32
    %135 = vector.broadcast %cst_50 : f32 to vector<8x1xf32>
    %136 = arith.mulf %134, %135 : vector<8x1xf32>
    %cst_51 = arith.constant 0.000000e+00 : f32
    %137 = vector.broadcast %cst_51 : f32 to vector<8x1xf32>
    %138 = arith.maximumf %136, %137 : vector<8x1xf32>
    %139 = math.absf %136 : vector<8x1xf32>
    %cst_52 = arith.constant 0.000000e+00 : f32
    %140 = vector.broadcast %cst_52 : f32 to vector<8x1xf32>
    %141 = arith.subf %140, %139 : vector<8x1xf32>
    %142 = math.exp %141 : vector<8x1xf32>
    %143 = math.log1p %142 : vector<8x1xf32>
    %144 = arith.addf %138, %143 : vector<8x1xf32>
    %cst_53 = arith.constant 1.500000e+00 : f32
    %145 = vector.broadcast %cst_53 : f32 to vector<8x1xf32>
    %146 = arith.mulf %145, %144 : vector<8x1xf32>
    %c2_i32 = arith.constant 2 : i32
    %cst_54 = arith.constant 0.666666686 : f32
    %147 = vector.broadcast %cst_54 : f32 to vector<8x128xf32>
    %148 = arith.mulf %107, %147 : vector<8x128xf32>
    %cst_55 = arith.constant 0.000000e+00 : f32
    %149 = vector.broadcast %cst_55 : f32 to vector<8x128xf32>
    %150 = arith.maximumf %148, %149 : vector<8x128xf32>
    %151 = math.absf %148 : vector<8x128xf32>
    %cst_56 = arith.constant 0.000000e+00 : f32
    %152 = vector.broadcast %cst_56 : f32 to vector<8x128xf32>
    %153 = arith.subf %152, %151 : vector<8x128xf32>
    %154 = math.exp %153 : vector<8x128xf32>
    %155 = math.log1p %154 : vector<8x128xf32>
    %156 = arith.addf %150, %155 : vector<8x128xf32>
    %cst_57 = arith.constant 1.500000e+00 : f32
    %157 = vector.broadcast %cst_57 : f32 to vector<8x128xf32>
    %158 = arith.mulf %157, %156 : vector<8x128xf32>
    %159 = arith.mulf %118, %126 : vector<8x128xf32>
    %160 = arith.mulf %159, %158 : vector<8x128xf32>
    %cst_58 = arith.constant dense<0.000000e+00> : vector<8x128xf32>
    %161 = tpu.matmul %160, %1, %cst_58 {dimension_numbers = #tpu.dot_dimension_numbers<[1], [0], [0], [1], [0, 0, 1, 1], [], []>} : vector<8x128xf32>, vector<128x128xf32>, vector<8x128xf32> -> vector<8x128xf32>
    %162 = arith.subf %161, %107 : vector<8x128xf32>
    %cst_59 = arith.constant 1.100000e+00 : f32
    %163 = vector.broadcast %cst_59 : f32 to vector<8x1xf32>
    %164 = arith.mulf %163, %146 : vector<8x1xf32>
    %165 = vector.broadcast %164 : vector<8x1xf32> to vector<8x128xf32>
    %166 = arith.subf %162, %165 : vector<8x128xf32>
    %167 = arith.addf %166, %20 : vector<8x128xf32>
    %cst_60 = arith.constant 1.250000e-02 : f32
    %168 = vector.broadcast %cst_60 : f32 to vector<8x128xf32>
    %169 = arith.mulf %168, %167 : vector<8x128xf32>
    %170 = arith.addf %107, %169 : vector<8x128xf32>
    %cst_61 = arith.constant 3.000000e-01 : f32
    %171 = vector.broadcast %cst_61 : f32 to vector<8x128xf32>
    %172 = arith.subf %171, %118 : vector<8x128xf32>
    %cst_62 = arith.constant 6.66666674E-5 : f32
    %173 = vector.broadcast %cst_62 : f32 to vector<8x128xf32>
    %174 = arith.mulf %173, %172 : vector<8x128xf32>
    %175 = arith.addf %118, %174 : vector<8x128xf32>
    %cst_63 = arith.constant 1.000000e+00 : f32
    %176 = vector.broadcast %cst_63 : f32 to vector<8x128xf32>
    %177 = arith.subf %176, %118 : vector<8x128xf32>
    %cst_64 = arith.constant 3.000000e-05 : f32
    %178 = vector.broadcast %cst_64 : f32 to vector<8x128xf32>
    %179 = arith.mulf %178, %177 : vector<8x128xf32>
    %180 = arith.mulf %179, %158 : vector<8x128xf32>
    %181 = arith.addf %175, %180 : vector<8x128xf32>
    %cst_65 = arith.constant 1.000000e+00 : f32
    %182 = vector.broadcast %cst_65 : f32 to vector<8x128xf32>
    %183 = arith.subf %182, %126 : vector<8x128xf32>
    %cst_66 = arith.constant 3.3333333E-4 : f32
    %184 = vector.broadcast %cst_66 : f32 to vector<8x128xf32>
    %185 = arith.mulf %184, %183 : vector<8x128xf32>
    %186 = arith.addf %126, %185 : vector<8x128xf32>
    %cst_67 = arith.constant 9.99999974E-5 : f32
    %187 = vector.broadcast %cst_67 : f32 to vector<8x128xf32>
    %188 = arith.mulf %187, %160 : vector<8x128xf32>
    %189 = arith.subf %186, %188 : vector<8x128xf32>
    %cst_68 = arith.constant dense<0.000000e+00> : vector<8xf32>
    %190 = vector.multi_reduction <add>, %158, %cst_68 [1] : vector<8x128xf32> to vector<8xf32>
    %191 = vector.shape_cast %190 : vector<8xf32> to vector<8x1xf32>
    %cst_69 = arith.constant 2.200000e+00 : f32
    %192 = vector.broadcast %cst_69 : f32 to vector<8x1xf32>
    %193 = arith.mulf %192, %191 : vector<8x1xf32>
    %194 = arith.subf %193, %134 : vector<8x1xf32>
    %cst_70 = arith.constant 1.250000e-02 : f32
    %195 = vector.broadcast %cst_70 : f32 to vector<8x1xf32>
    %196 = arith.mulf %195, %194 : vector<8x1xf32>
    %197 = arith.addf %134, %196 : vector<8x1xf32>
    %cst_71 = arith.constant 0.666666686 : f32
    %198 = vector.broadcast %cst_71 : f32 to vector<8x1xf32>
    %199 = arith.mulf %197, %198 : vector<8x1xf32>
    %cst_72 = arith.constant 0.000000e+00 : f32
    %200 = vector.broadcast %cst_72 : f32 to vector<8x1xf32>
    %201 = arith.maximumf %199, %200 : vector<8x1xf32>
    %202 = math.absf %199 : vector<8x1xf32>
    %cst_73 = arith.constant 0.000000e+00 : f32
    %203 = vector.broadcast %cst_73 : f32 to vector<8x1xf32>
    %204 = arith.subf %203, %202 : vector<8x1xf32>
    %205 = math.exp %204 : vector<8x1xf32>
    %206 = math.log1p %205 : vector<8x1xf32>
    %207 = arith.addf %201, %206 : vector<8x1xf32>
    %cst_74 = arith.constant 1.500000e+00 : f32
    %208 = vector.broadcast %cst_74 : f32 to vector<8x1xf32>
    %209 = arith.mulf %208, %207 : vector<8x1xf32>
    %c3_i32 = arith.constant 3 : i32
    %cst_75 = arith.constant 0.666666686 : f32
    %210 = vector.broadcast %cst_75 : f32 to vector<8x128xf32>
    %211 = arith.mulf %170, %210 : vector<8x128xf32>
    %cst_76 = arith.constant 0.000000e+00 : f32
    %212 = vector.broadcast %cst_76 : f32 to vector<8x128xf32>
    %213 = arith.maximumf %211, %212 : vector<8x128xf32>
    %214 = math.absf %211 : vector<8x128xf32>
    %cst_77 = arith.constant 0.000000e+00 : f32
    %215 = vector.broadcast %cst_77 : f32 to vector<8x128xf32>
    %216 = arith.subf %215, %214 : vector<8x128xf32>
    %217 = math.exp %216 : vector<8x128xf32>
    %218 = math.log1p %217 : vector<8x128xf32>
    %219 = arith.addf %213, %218 : vector<8x128xf32>
    %cst_78 = arith.constant 1.500000e+00 : f32
    %220 = vector.broadcast %cst_78 : f32 to vector<8x128xf32>
    %221 = arith.mulf %220, %219 : vector<8x128xf32>
    %222 = arith.mulf %181, %189 : vector<8x128xf32>
    %223 = arith.mulf %222, %221 : vector<8x128xf32>
    %cst_79 = arith.constant dense<0.000000e+00> : vector<8x128xf32>
    %224 = tpu.matmul %223, %1, %cst_79 {dimension_numbers = #tpu.dot_dimension_numbers<[1], [0], [0], [1], [0, 0, 1, 1], [], []>} : vector<8x128xf32>, vector<128x128xf32>, vector<8x128xf32> -> vector<8x128xf32>
    %225 = arith.subf %224, %170 : vector<8x128xf32>
    %cst_80 = arith.constant 1.100000e+00 : f32
    %226 = vector.broadcast %cst_80 : f32 to vector<8x1xf32>
    %227 = arith.mulf %226, %209 : vector<8x1xf32>
    %228 = vector.broadcast %227 : vector<8x1xf32> to vector<8x128xf32>
    %229 = arith.subf %225, %228 : vector<8x128xf32>
    %230 = arith.addf %229, %20 : vector<8x128xf32>
    %cst_81 = arith.constant 1.250000e-02 : f32
    %231 = vector.broadcast %cst_81 : f32 to vector<8x128xf32>
    %232 = arith.mulf %231, %230 : vector<8x128xf32>
    %233 = arith.addf %170, %232 : vector<8x128xf32>
    %cst_82 = arith.constant 3.000000e-01 : f32
    %234 = vector.broadcast %cst_82 : f32 to vector<8x128xf32>
    %235 = arith.subf %234, %181 : vector<8x128xf32>
    %cst_83 = arith.constant 6.66666674E-5 : f32
    %236 = vector.broadcast %cst_83 : f32 to vector<8x128xf32>
    %237 = arith.mulf %236, %235 : vector<8x128xf32>
    %238 = arith.addf %181, %237 : vector<8x128xf32>
    %cst_84 = arith.constant 1.000000e+00 : f32
    %239 = vector.broadcast %cst_84 : f32 to vector<8x128xf32>
    %240 = arith.subf %239, %181 : vector<8x128xf32>
    %cst_85 = arith.constant 3.000000e-05 : f32
    %241 = vector.broadcast %cst_85 : f32 to vector<8x128xf32>
    %242 = arith.mulf %241, %240 : vector<8x128xf32>
    %243 = arith.mulf %242, %221 : vector<8x128xf32>
    %244 = arith.addf %238, %243 : vector<8x128xf32>
    %cst_86 = arith.constant 1.000000e+00 : f32
    %245 = vector.broadcast %cst_86 : f32 to vector<8x128xf32>
    %246 = arith.subf %245, %189 : vector<8x128xf32>
    %cst_87 = arith.constant 3.3333333E-4 : f32
    %247 = vector.broadcast %cst_87 : f32 to vector<8x128xf32>
    %248 = arith.mulf %247, %246 : vector<8x128xf32>
    %249 = arith.addf %189, %248 : vector<8x128xf32>
    %cst_88 = arith.constant 9.99999974E-5 : f32
    %250 = vector.broadcast %cst_88 : f32 to vector<8x128xf32>
    %251 = arith.mulf %250, %223 : vector<8x128xf32>
    %252 = arith.subf %249, %251 : vector<8x128xf32>
    %cst_89 = arith.constant dense<0.000000e+00> : vector<8xf32>
    %253 = vector.multi_reduction <add>, %221, %cst_89 [1] : vector<8x128xf32> to vector<8xf32>
    %254 = vector.shape_cast %253 : vector<8xf32> to vector<8x1xf32>
    %cst_90 = arith.constant 2.200000e+00 : f32
    %255 = vector.broadcast %cst_90 : f32 to vector<8x1xf32>
    %256 = arith.mulf %255, %254 : vector<8x1xf32>
    %257 = arith.subf %256, %197 : vector<8x1xf32>
    %cst_91 = arith.constant 1.250000e-02 : f32
    %258 = vector.broadcast %cst_91 : f32 to vector<8x1xf32>
    %259 = arith.mulf %258, %257 : vector<8x1xf32>
    %260 = arith.addf %197, %259 : vector<8x1xf32>
    %cst_92 = arith.constant 0.666666686 : f32
    %261 = vector.broadcast %cst_92 : f32 to vector<8x1xf32>
    %262 = arith.mulf %260, %261 : vector<8x1xf32>
    %cst_93 = arith.constant 0.000000e+00 : f32
    %263 = vector.broadcast %cst_93 : f32 to vector<8x1xf32>
    %264 = arith.maximumf %262, %263 : vector<8x1xf32>
    %265 = math.absf %262 : vector<8x1xf32>
    %cst_94 = arith.constant 0.000000e+00 : f32
    %266 = vector.broadcast %cst_94 : f32 to vector<8x1xf32>
    %267 = arith.subf %266, %265 : vector<8x1xf32>
    %268 = math.exp %267 : vector<8x1xf32>
    %269 = math.log1p %268 : vector<8x1xf32>
    %270 = arith.addf %264, %269 : vector<8x1xf32>
    %cst_95 = arith.constant 1.500000e+00 : f32
    %271 = vector.broadcast %cst_95 : f32 to vector<8x1xf32>
    %272 = arith.mulf %271, %270 : vector<8x1xf32>
    %c4_i32 = arith.constant 4 : i32
    %cst_96 = arith.constant 0.666666686 : f32
    %273 = vector.broadcast %cst_96 : f32 to vector<8x128xf32>
    %274 = arith.mulf %233, %273 : vector<8x128xf32>
    %cst_97 = arith.constant 0.000000e+00 : f32
    %275 = vector.broadcast %cst_97 : f32 to vector<8x128xf32>
    %276 = arith.maximumf %274, %275 : vector<8x128xf32>
    %277 = math.absf %274 : vector<8x128xf32>
    %cst_98 = arith.constant 0.000000e+00 : f32
    %278 = vector.broadcast %cst_98 : f32 to vector<8x128xf32>
    %279 = arith.subf %278, %277 : vector<8x128xf32>
    %280 = math.exp %279 : vector<8x128xf32>
    %281 = math.log1p %280 : vector<8x128xf32>
    %282 = arith.addf %276, %281 : vector<8x128xf32>
    %cst_99 = arith.constant 1.500000e+00 : f32
    %283 = vector.broadcast %cst_99 : f32 to vector<8x128xf32>
    %284 = arith.mulf %283, %282 : vector<8x128xf32>
    %285 = arith.mulf %244, %252 : vector<8x128xf32>
    %286 = arith.mulf %285, %284 : vector<8x128xf32>
    %cst_100 = arith.constant dense<0.000000e+00> : vector<8x128xf32>
    %287 = tpu.matmul %286, %1, %cst_100 {dimension_numbers = #tpu.dot_dimension_numbers<[1], [0], [0], [1], [0, 0, 1, 1], [], []>} : vector<8x128xf32>, vector<128x128xf32>, vector<8x128xf32> -> vector<8x128xf32>
    %288 = arith.subf %287, %233 : vector<8x128xf32>
    %cst_101 = arith.constant 1.100000e+00 : f32
    %289 = vector.broadcast %cst_101 : f32 to vector<8x1xf32>
    %290 = arith.mulf %289, %272 : vector<8x1xf32>
    %291 = vector.broadcast %290 : vector<8x1xf32> to vector<8x128xf32>
    %292 = arith.subf %288, %291 : vector<8x128xf32>
    %293 = arith.addf %292, %20 : vector<8x128xf32>
    %cst_102 = arith.constant 1.250000e-02 : f32
    %294 = vector.broadcast %cst_102 : f32 to vector<8x128xf32>
    %295 = arith.mulf %294, %293 : vector<8x128xf32>
    %296 = arith.addf %233, %295 : vector<8x128xf32>
    %cst_103 = arith.constant 3.000000e-01 : f32
    %297 = vector.broadcast %cst_103 : f32 to vector<8x128xf32>
    %298 = arith.subf %297, %244 : vector<8x128xf32>
    %cst_104 = arith.constant 6.66666674E-5 : f32
    %299 = vector.broadcast %cst_104 : f32 to vector<8x128xf32>
    %300 = arith.mulf %299, %298 : vector<8x128xf32>
    %301 = arith.addf %244, %300 : vector<8x128xf32>
    %cst_105 = arith.constant 1.000000e+00 : f32
    %302 = vector.broadcast %cst_105 : f32 to vector<8x128xf32>
    %303 = arith.subf %302, %244 : vector<8x128xf32>
    %cst_106 = arith.constant 3.000000e-05 : f32
    %304 = vector.broadcast %cst_106 : f32 to vector<8x128xf32>
    %305 = arith.mulf %304, %303 : vector<8x128xf32>
    %306 = arith.mulf %305, %284 : vector<8x128xf32>
    %307 = arith.addf %301, %306 : vector<8x128xf32>
    %cst_107 = arith.constant 1.000000e+00 : f32
    %308 = vector.broadcast %cst_107 : f32 to vector<8x128xf32>
    %309 = arith.subf %308, %252 : vector<8x128xf32>
    %cst_108 = arith.constant 3.3333333E-4 : f32
    %310 = vector.broadcast %cst_108 : f32 to vector<8x128xf32>
    %311 = arith.mulf %310, %309 : vector<8x128xf32>
    %312 = arith.addf %252, %311 : vector<8x128xf32>
    %cst_109 = arith.constant 9.99999974E-5 : f32
    %313 = vector.broadcast %cst_109 : f32 to vector<8x128xf32>
    %314 = arith.mulf %313, %286 : vector<8x128xf32>
    %315 = arith.subf %312, %314 : vector<8x128xf32>
    %cst_110 = arith.constant dense<0.000000e+00> : vector<8xf32>
    %316 = vector.multi_reduction <add>, %284, %cst_110 [1] : vector<8x128xf32> to vector<8xf32>
    %317 = vector.shape_cast %316 : vector<8xf32> to vector<8x1xf32>
    %cst_111 = arith.constant 2.200000e+00 : f32
    %318 = vector.broadcast %cst_111 : f32 to vector<8x1xf32>
    %319 = arith.mulf %318, %317 : vector<8x1xf32>
    %320 = arith.subf %319, %260 : vector<8x1xf32>
    %cst_112 = arith.constant 1.250000e-02 : f32
    %321 = vector.broadcast %cst_112 : f32 to vector<8x1xf32>
    %322 = arith.mulf %321, %320 : vector<8x1xf32>
    %323 = arith.addf %260, %322 : vector<8x1xf32>
    %cst_113 = arith.constant 0.666666686 : f32
    %324 = vector.broadcast %cst_113 : f32 to vector<8x1xf32>
    %325 = arith.mulf %323, %324 : vector<8x1xf32>
    %cst_114 = arith.constant 0.000000e+00 : f32
    %326 = vector.broadcast %cst_114 : f32 to vector<8x1xf32>
    %327 = arith.maximumf %325, %326 : vector<8x1xf32>
    %328 = math.absf %325 : vector<8x1xf32>
    %cst_115 = arith.constant 0.000000e+00 : f32
    %329 = vector.broadcast %cst_115 : f32 to vector<8x1xf32>
    %330 = arith.subf %329, %328 : vector<8x1xf32>
    %331 = math.exp %330 : vector<8x1xf32>
    %332 = math.log1p %331 : vector<8x1xf32>
    %333 = arith.addf %327, %332 : vector<8x1xf32>
    %cst_116 = arith.constant 1.500000e+00 : f32
    %334 = vector.broadcast %cst_116 : f32 to vector<8x1xf32>
    %335 = arith.mulf %334, %333 : vector<8x1xf32>
    %c5_i32 = arith.constant 5 : i32
    %cst_117 = arith.constant 0.666666686 : f32
    %336 = vector.broadcast %cst_117 : f32 to vector<8x128xf32>
    %337 = arith.mulf %296, %336 : vector<8x128xf32>
    %cst_118 = arith.constant 0.000000e+00 : f32
    %338 = vector.broadcast %cst_118 : f32 to vector<8x128xf32>
    %339 = arith.maximumf %337, %338 : vector<8x128xf32>
    %340 = math.absf %337 : vector<8x128xf32>
    %cst_119 = arith.constant 0.000000e+00 : f32
    %341 = vector.broadcast %cst_119 : f32 to vector<8x128xf32>
    %342 = arith.subf %341, %340 : vector<8x128xf32>
    %343 = math.exp %342 : vector<8x128xf32>
    %344 = math.log1p %343 : vector<8x128xf32>
    %345 = arith.addf %339, %344 : vector<8x128xf32>
    %cst_120 = arith.constant 1.500000e+00 : f32
    %346 = vector.broadcast %cst_120 : f32 to vector<8x128xf32>
    %347 = arith.mulf %346, %345 : vector<8x128xf32>
    %348 = arith.mulf %307, %315 : vector<8x128xf32>
    %349 = arith.mulf %348, %347 : vector<8x128xf32>
    %cst_121 = arith.constant dense<0.000000e+00> : vector<8x128xf32>
    %350 = tpu.matmul %349, %1, %cst_121 {dimension_numbers = #tpu.dot_dimension_numbers<[1], [0], [0], [1], [0, 0, 1, 1], [], []>} : vector<8x128xf32>, vector<128x128xf32>, vector<8x128xf32> -> vector<8x128xf32>
    %351 = arith.subf %350, %296 : vector<8x128xf32>
    %cst_122 = arith.constant 1.100000e+00 : f32
    %352 = vector.broadcast %cst_122 : f32 to vector<8x1xf32>
    %353 = arith.mulf %352, %335 : vector<8x1xf32>
    %354 = vector.broadcast %353 : vector<8x1xf32> to vector<8x128xf32>
    %355 = arith.subf %351, %354 : vector<8x128xf32>
    %356 = arith.addf %355, %20 : vector<8x128xf32>
    %cst_123 = arith.constant 1.250000e-02 : f32
    %357 = vector.broadcast %cst_123 : f32 to vector<8x128xf32>
    %358 = arith.mulf %357, %356 : vector<8x128xf32>
    %359 = arith.addf %296, %358 : vector<8x128xf32>
    %cst_124 = arith.constant 3.000000e-01 : f32
    %360 = vector.broadcast %cst_124 : f32 to vector<8x128xf32>
    %361 = arith.subf %360, %307 : vector<8x128xf32>
    %cst_125 = arith.constant 6.66666674E-5 : f32
    %362 = vector.broadcast %cst_125 : f32 to vector<8x128xf32>
    %363 = arith.mulf %362, %361 : vector<8x128xf32>
    %364 = arith.addf %307, %363 : vector<8x128xf32>
    %cst_126 = arith.constant 1.000000e+00 : f32
    %365 = vector.broadcast %cst_126 : f32 to vector<8x128xf32>
    %366 = arith.subf %365, %307 : vector<8x128xf32>
    %cst_127 = arith.constant 3.000000e-05 : f32
    %367 = vector.broadcast %cst_127 : f32 to vector<8x128xf32>
    %368 = arith.mulf %367, %366 : vector<8x128xf32>
    %369 = arith.mulf %368, %347 : vector<8x128xf32>
    %370 = arith.addf %364, %369 : vector<8x128xf32>
    %cst_128 = arith.constant 1.000000e+00 : f32
    %371 = vector.broadcast %cst_128 : f32 to vector<8x128xf32>
    %372 = arith.subf %371, %315 : vector<8x128xf32>
    %cst_129 = arith.constant 3.3333333E-4 : f32
    %373 = vector.broadcast %cst_129 : f32 to vector<8x128xf32>
    %374 = arith.mulf %373, %372 : vector<8x128xf32>
    %375 = arith.addf %315, %374 : vector<8x128xf32>
    %cst_130 = arith.constant 9.99999974E-5 : f32
    %376 = vector.broadcast %cst_130 : f32 to vector<8x128xf32>
    %377 = arith.mulf %376, %349 : vector<8x128xf32>
    %378 = arith.subf %375, %377 : vector<8x128xf32>
    %cst_131 = arith.constant dense<0.000000e+00> : vector<8xf32>
    %379 = vector.multi_reduction <add>, %347, %cst_131 [1] : vector<8x128xf32> to vector<8xf32>
    %380 = vector.shape_cast %379 : vector<8xf32> to vector<8x1xf32>
    %cst_132 = arith.constant 2.200000e+00 : f32
    %381 = vector.broadcast %cst_132 : f32 to vector<8x1xf32>
    %382 = arith.mulf %381, %380 : vector<8x1xf32>
    %383 = arith.subf %382, %323 : vector<8x1xf32>
    %cst_133 = arith.constant 1.250000e-02 : f32
    %384 = vector.broadcast %cst_133 : f32 to vector<8x1xf32>
    %385 = arith.mulf %384, %383 : vector<8x1xf32>
    %386 = arith.addf %323, %385 : vector<8x1xf32>
    %cst_134 = arith.constant 0.666666686 : f32
    %387 = vector.broadcast %cst_134 : f32 to vector<8x1xf32>
    %388 = arith.mulf %386, %387 : vector<8x1xf32>
    %cst_135 = arith.constant 0.000000e+00 : f32
    %389 = vector.broadcast %cst_135 : f32 to vector<8x1xf32>
    %390 = arith.maximumf %388, %389 : vector<8x1xf32>
    %391 = math.absf %388 : vector<8x1xf32>
    %cst_136 = arith.constant 0.000000e+00 : f32
    %392 = vector.broadcast %cst_136 : f32 to vector<8x1xf32>
    %393 = arith.subf %392, %391 : vector<8x1xf32>
    %394 = math.exp %393 : vector<8x1xf32>
    %395 = math.log1p %394 : vector<8x1xf32>
    %396 = arith.addf %390, %395 : vector<8x1xf32>
    %cst_137 = arith.constant 1.500000e+00 : f32
    %397 = vector.broadcast %cst_137 : f32 to vector<8x1xf32>
    %398 = arith.mulf %397, %396 : vector<8x1xf32>
    %c6_i32 = arith.constant 6 : i32
    %cst_138 = arith.constant 0.666666686 : f32
    %399 = vector.broadcast %cst_138 : f32 to vector<8x128xf32>
    %400 = arith.mulf %359, %399 : vector<8x128xf32>
    %cst_139 = arith.constant 0.000000e+00 : f32
    %401 = vector.broadcast %cst_139 : f32 to vector<8x128xf32>
    %402 = arith.maximumf %400, %401 : vector<8x128xf32>
    %403 = math.absf %400 : vector<8x128xf32>
    %cst_140 = arith.constant 0.000000e+00 : f32
    %404 = vector.broadcast %cst_140 : f32 to vector<8x128xf32>
    %405 = arith.subf %404, %403 : vector<8x128xf32>
    %406 = math.exp %405 : vector<8x128xf32>
    %407 = math.log1p %406 : vector<8x128xf32>
    %408 = arith.addf %402, %407 : vector<8x128xf32>
    %cst_141 = arith.constant 1.500000e+00 : f32
    %409 = vector.broadcast %cst_141 : f32 to vector<8x128xf32>
    %410 = arith.mulf %409, %408 : vector<8x128xf32>
    %411 = arith.mulf %370, %378 : vector<8x128xf32>
    %412 = arith.mulf %411, %410 : vector<8x128xf32>
    %cst_142 = arith.constant dense<0.000000e+00> : vector<8x128xf32>
    %413 = tpu.matmul %412, %1, %cst_142 {dimension_numbers = #tpu.dot_dimension_numbers<[1], [0], [0], [1], [0, 0, 1, 1], [], []>} : vector<8x128xf32>, vector<128x128xf32>, vector<8x128xf32> -> vector<8x128xf32>
    %414 = arith.subf %413, %359 : vector<8x128xf32>
    %cst_143 = arith.constant 1.100000e+00 : f32
    %415 = vector.broadcast %cst_143 : f32 to vector<8x1xf32>
    %416 = arith.mulf %415, %398 : vector<8x1xf32>
    %417 = vector.broadcast %416 : vector<8x1xf32> to vector<8x128xf32>
    %418 = arith.subf %414, %417 : vector<8x128xf32>
    %419 = arith.addf %418, %20 : vector<8x128xf32>
    %cst_144 = arith.constant 1.250000e-02 : f32
    %420 = vector.broadcast %cst_144 : f32 to vector<8x128xf32>
    %421 = arith.mulf %420, %419 : vector<8x128xf32>
    %422 = arith.addf %359, %421 : vector<8x128xf32>
    %cst_145 = arith.constant 3.000000e-01 : f32
    %423 = vector.broadcast %cst_145 : f32 to vector<8x128xf32>
    %424 = arith.subf %423, %370 : vector<8x128xf32>
    %cst_146 = arith.constant 6.66666674E-5 : f32
    %425 = vector.broadcast %cst_146 : f32 to vector<8x128xf32>
    %426 = arith.mulf %425, %424 : vector<8x128xf32>
    %427 = arith.addf %370, %426 : vector<8x128xf32>
    %cst_147 = arith.constant 1.000000e+00 : f32
    %428 = vector.broadcast %cst_147 : f32 to vector<8x128xf32>
    %429 = arith.subf %428, %370 : vector<8x128xf32>
    %cst_148 = arith.constant 3.000000e-05 : f32
    %430 = vector.broadcast %cst_148 : f32 to vector<8x128xf32>
    %431 = arith.mulf %430, %429 : vector<8x128xf32>
    %432 = arith.mulf %431, %410 : vector<8x128xf32>
    %433 = arith.addf %427, %432 : vector<8x128xf32>
    %cst_149 = arith.constant 1.000000e+00 : f32
    %434 = vector.broadcast %cst_149 : f32 to vector<8x128xf32>
    %435 = arith.subf %434, %378 : vector<8x128xf32>
    %cst_150 = arith.constant 3.3333333E-4 : f32
    %436 = vector.broadcast %cst_150 : f32 to vector<8x128xf32>
    %437 = arith.mulf %436, %435 : vector<8x128xf32>
    %438 = arith.addf %378, %437 : vector<8x128xf32>
    %cst_151 = arith.constant 9.99999974E-5 : f32
    %439 = vector.broadcast %cst_151 : f32 to vector<8x128xf32>
    %440 = arith.mulf %439, %412 : vector<8x128xf32>
    %441 = arith.subf %438, %440 : vector<8x128xf32>
    %cst_152 = arith.constant dense<0.000000e+00> : vector<8xf32>
    %442 = vector.multi_reduction <add>, %410, %cst_152 [1] : vector<8x128xf32> to vector<8xf32>
    %443 = vector.shape_cast %442 : vector<8xf32> to vector<8x1xf32>
    %cst_153 = arith.constant 2.200000e+00 : f32
    %444 = vector.broadcast %cst_153 : f32 to vector<8x1xf32>
    %445 = arith.mulf %444, %443 : vector<8x1xf32>
    %446 = arith.subf %445, %386 : vector<8x1xf32>
    %cst_154 = arith.constant 1.250000e-02 : f32
    %447 = vector.broadcast %cst_154 : f32 to vector<8x1xf32>
    %448 = arith.mulf %447, %446 : vector<8x1xf32>
    %449 = arith.addf %386, %448 : vector<8x1xf32>
    %cst_155 = arith.constant 0.666666686 : f32
    %450 = vector.broadcast %cst_155 : f32 to vector<8x1xf32>
    %451 = arith.mulf %449, %450 : vector<8x1xf32>
    %cst_156 = arith.constant 0.000000e+00 : f32
    %452 = vector.broadcast %cst_156 : f32 to vector<8x1xf32>
    %453 = arith.maximumf %451, %452 : vector<8x1xf32>
    %454 = math.absf %451 : vector<8x1xf32>
    %cst_157 = arith.constant 0.000000e+00 : f32
    %455 = vector.broadcast %cst_157 : f32 to vector<8x1xf32>
    %456 = arith.subf %455, %454 : vector<8x1xf32>
    %457 = math.exp %456 : vector<8x1xf32>
    %458 = math.log1p %457 : vector<8x1xf32>
    %459 = arith.addf %453, %458 : vector<8x1xf32>
    %cst_158 = arith.constant 1.500000e+00 : f32
    %460 = vector.broadcast %cst_158 : f32 to vector<8x1xf32>
    %461 = arith.mulf %460, %459 : vector<8x1xf32>
    %c7_i32 = arith.constant 7 : i32
    %cst_159 = arith.constant 0.666666686 : f32
    %462 = vector.broadcast %cst_159 : f32 to vector<8x128xf32>
    %463 = arith.mulf %422, %462 : vector<8x128xf32>
    %cst_160 = arith.constant 0.000000e+00 : f32
    %464 = vector.broadcast %cst_160 : f32 to vector<8x128xf32>
    %465 = arith.maximumf %463, %464 : vector<8x128xf32>
    %466 = math.absf %463 : vector<8x128xf32>
    %cst_161 = arith.constant 0.000000e+00 : f32
    %467 = vector.broadcast %cst_161 : f32 to vector<8x128xf32>
    %468 = arith.subf %467, %466 : vector<8x128xf32>
    %469 = math.exp %468 : vector<8x128xf32>
    %470 = math.log1p %469 : vector<8x128xf32>
    %471 = arith.addf %465, %470 : vector<8x128xf32>
    %cst_162 = arith.constant 1.500000e+00 : f32
    %472 = vector.broadcast %cst_162 : f32 to vector<8x128xf32>
    %473 = arith.mulf %472, %471 : vector<8x128xf32>
    %474 = arith.mulf %433, %441 : vector<8x128xf32>
    %475 = arith.mulf %474, %473 : vector<8x128xf32>
    %cst_163 = arith.constant dense<0.000000e+00> : vector<8x128xf32>
    %476 = tpu.matmul %475, %1, %cst_163 {dimension_numbers = #tpu.dot_dimension_numbers<[1], [0], [0], [1], [0, 0, 1, 1], [], []>} : vector<8x128xf32>, vector<128x128xf32>, vector<8x128xf32> -> vector<8x128xf32>
    %477 = arith.subf %476, %422 : vector<8x128xf32>
    %cst_164 = arith.constant 1.100000e+00 : f32
    %478 = vector.broadcast %cst_164 : f32 to vector<8x1xf32>
    %479 = arith.mulf %478, %461 : vector<8x1xf32>
    %480 = vector.broadcast %479 : vector<8x1xf32> to vector<8x128xf32>
    %481 = arith.subf %477, %480 : vector<8x128xf32>
    %482 = arith.addf %481, %20 : vector<8x128xf32>
    %cst_165 = arith.constant 1.250000e-02 : f32
    %483 = vector.broadcast %cst_165 : f32 to vector<8x128xf32>
    %484 = arith.mulf %483, %482 : vector<8x128xf32>
    %485 = arith.addf %422, %484 : vector<8x128xf32>
    %cst_166 = arith.constant 3.000000e-01 : f32
    %486 = vector.broadcast %cst_166 : f32 to vector<8x128xf32>
    %487 = arith.subf %486, %433 : vector<8x128xf32>
    %cst_167 = arith.constant 6.66666674E-5 : f32
    %488 = vector.broadcast %cst_167 : f32 to vector<8x128xf32>
    %489 = arith.mulf %488, %487 : vector<8x128xf32>
    %490 = arith.addf %433, %489 : vector<8x128xf32>
    %cst_168 = arith.constant 1.000000e+00 : f32
    %491 = vector.broadcast %cst_168 : f32 to vector<8x128xf32>
    %492 = arith.subf %491, %433 : vector<8x128xf32>
    %cst_169 = arith.constant 3.000000e-05 : f32
    %493 = vector.broadcast %cst_169 : f32 to vector<8x128xf32>
    %494 = arith.mulf %493, %492 : vector<8x128xf32>
    %495 = arith.mulf %494, %473 : vector<8x128xf32>
    %496 = arith.addf %490, %495 : vector<8x128xf32>
    %cst_170 = arith.constant 1.000000e+00 : f32
    %497 = vector.broadcast %cst_170 : f32 to vector<8x128xf32>
    %498 = arith.subf %497, %441 : vector<8x128xf32>
    %cst_171 = arith.constant 3.3333333E-4 : f32
    %499 = vector.broadcast %cst_171 : f32 to vector<8x128xf32>
    %500 = arith.mulf %499, %498 : vector<8x128xf32>
    %501 = arith.addf %441, %500 : vector<8x128xf32>
    %cst_172 = arith.constant 9.99999974E-5 : f32
    %502 = vector.broadcast %cst_172 : f32 to vector<8x128xf32>
    %503 = arith.mulf %502, %475 : vector<8x128xf32>
    %504 = arith.subf %501, %503 : vector<8x128xf32>
    %cst_173 = arith.constant dense<0.000000e+00> : vector<8xf32>
    %505 = vector.multi_reduction <add>, %473, %cst_173 [1] : vector<8x128xf32> to vector<8xf32>
    %506 = vector.shape_cast %505 : vector<8xf32> to vector<8x1xf32>
    %cst_174 = arith.constant 2.200000e+00 : f32
    %507 = vector.broadcast %cst_174 : f32 to vector<8x1xf32>
    %508 = arith.mulf %507, %506 : vector<8x1xf32>
    %509 = arith.subf %508, %449 : vector<8x1xf32>
    %cst_175 = arith.constant 1.250000e-02 : f32
    %510 = vector.broadcast %cst_175 : f32 to vector<8x1xf32>
    %511 = arith.mulf %510, %509 : vector<8x1xf32>
    %512 = arith.addf %449, %511 : vector<8x1xf32>
    %cst_176 = arith.constant 0.666666686 : f32
    %513 = vector.broadcast %cst_176 : f32 to vector<8x1xf32>
    %514 = arith.mulf %512, %513 : vector<8x1xf32>
    %cst_177 = arith.constant 0.000000e+00 : f32
    %515 = vector.broadcast %cst_177 : f32 to vector<8x1xf32>
    %516 = arith.maximumf %514, %515 : vector<8x1xf32>
    %517 = math.absf %514 : vector<8x1xf32>
    %cst_178 = arith.constant 0.000000e+00 : f32
    %518 = vector.broadcast %cst_178 : f32 to vector<8x1xf32>
    %519 = arith.subf %518, %517 : vector<8x1xf32>
    %520 = math.exp %519 : vector<8x1xf32>
    %521 = math.log1p %520 : vector<8x1xf32>
    %522 = arith.addf %516, %521 : vector<8x1xf32>
    %cst_179 = arith.constant 1.500000e+00 : f32
    %523 = vector.broadcast %cst_179 : f32 to vector<8x1xf32>
    %524 = arith.mulf %523, %522 : vector<8x1xf32>
    %cst_180 = arith.constant 8.000000e+00 : f32
    %c0_i32_181 = arith.constant 0 : i32
    %cst_182 = arith.constant 0.666666686 : f32
    %525 = vector.broadcast %cst_182 : f32 to vector<8x128xf32>
    %526 = arith.mulf %485, %525 : vector<8x128xf32>
    %cst_183 = arith.constant 0.000000e+00 : f32
    %527 = vector.broadcast %cst_183 : f32 to vector<8x128xf32>
    %528 = arith.maximumf %526, %527 : vector<8x128xf32>
    %529 = math.absf %526 : vector<8x128xf32>
    %cst_184 = arith.constant 0.000000e+00 : f32
    %530 = vector.broadcast %cst_184 : f32 to vector<8x128xf32>
    %531 = arith.subf %530, %529 : vector<8x128xf32>
    %532 = math.exp %531 : vector<8x128xf32>
    %533 = math.log1p %532 : vector<8x128xf32>
    %534 = arith.addf %528, %533 : vector<8x128xf32>
    %cst_185 = arith.constant 1.500000e+00 : f32
    %535 = vector.broadcast %cst_185 : f32 to vector<8x128xf32>
    %536 = arith.mulf %535, %534 : vector<8x128xf32>
    %537 = arith.mulf %496, %504 : vector<8x128xf32>
    %538 = arith.mulf %537, %536 : vector<8x128xf32>
    %cst_186 = arith.constant dense<0.000000e+00> : vector<8x128xf32>
    %539 = tpu.matmul %538, %1, %cst_186 {dimension_numbers = #tpu.dot_dimension_numbers<[1], [0], [0], [1], [0, 0, 1, 1], [], []>} : vector<8x128xf32>, vector<128x128xf32>, vector<8x128xf32> -> vector<8x128xf32>
    %540 = arith.subf %539, %485 : vector<8x128xf32>
    %cst_187 = arith.constant 1.100000e+00 : f32
    %541 = vector.broadcast %cst_187 : f32 to vector<8x1xf32>
    %542 = arith.mulf %541, %524 : vector<8x1xf32>
    %543 = vector.broadcast %542 : vector<8x1xf32> to vector<8x128xf32>
    %544 = arith.subf %540, %543 : vector<8x128xf32>
    %545 = vector.broadcast %cst_180 : f32 to vector<8x128xf32>
    %546 = arith.addf %544, %545 : vector<8x128xf32>
    %cst_188 = arith.constant 1.250000e-02 : f32
    %547 = vector.broadcast %cst_188 : f32 to vector<8x128xf32>
    %548 = arith.mulf %547, %546 : vector<8x128xf32>
    %549 = arith.addf %485, %548 : vector<8x128xf32>
    %cst_189 = arith.constant 3.000000e-01 : f32
    %550 = vector.broadcast %cst_189 : f32 to vector<8x128xf32>
    %551 = arith.subf %550, %496 : vector<8x128xf32>
    %cst_190 = arith.constant 6.66666674E-5 : f32
    %552 = vector.broadcast %cst_190 : f32 to vector<8x128xf32>
    %553 = arith.mulf %552, %551 : vector<8x128xf32>
    %554 = arith.addf %496, %553 : vector<8x128xf32>
    %cst_191 = arith.constant 1.000000e+00 : f32
    %555 = vector.broadcast %cst_191 : f32 to vector<8x128xf32>
    %556 = arith.subf %555, %496 : vector<8x128xf32>
    %cst_192 = arith.constant 3.000000e-05 : f32
    %557 = vector.broadcast %cst_192 : f32 to vector<8x128xf32>
    %558 = arith.mulf %557, %556 : vector<8x128xf32>
    %559 = arith.mulf %558, %536 : vector<8x128xf32>
    %560 = arith.addf %554, %559 : vector<8x128xf32>
    %cst_193 = arith.constant 1.000000e+00 : f32
    %561 = vector.broadcast %cst_193 : f32 to vector<8x128xf32>
    %562 = arith.subf %561, %504 : vector<8x128xf32>
    %cst_194 = arith.constant 3.3333333E-4 : f32
    %563 = vector.broadcast %cst_194 : f32 to vector<8x128xf32>
    %564 = arith.mulf %563, %562 : vector<8x128xf32>
    %565 = arith.addf %504, %564 : vector<8x128xf32>
    %cst_195 = arith.constant 9.99999974E-5 : f32
    %566 = vector.broadcast %cst_195 : f32 to vector<8x128xf32>
    %567 = arith.mulf %566, %538 : vector<8x128xf32>
    %568 = arith.subf %565, %567 : vector<8x128xf32>
    %cst_196 = arith.constant dense<0.000000e+00> : vector<8xf32>
    %569 = vector.multi_reduction <add>, %536, %cst_196 [1] : vector<8x128xf32> to vector<8xf32>
    %570 = vector.shape_cast %569 : vector<8xf32> to vector<8x1xf32>
    %cst_197 = arith.constant 2.200000e+00 : f32
    %571 = vector.broadcast %cst_197 : f32 to vector<8x1xf32>
    %572 = arith.mulf %571, %570 : vector<8x1xf32>
    %573 = arith.subf %572, %512 : vector<8x1xf32>
    %cst_198 = arith.constant 1.250000e-02 : f32
    %574 = vector.broadcast %cst_198 : f32 to vector<8x1xf32>
    %575 = arith.mulf %574, %573 : vector<8x1xf32>
    %576 = arith.addf %512, %575 : vector<8x1xf32>
    %cst_199 = arith.constant 0.666666686 : f32
    %577 = vector.broadcast %cst_199 : f32 to vector<8x1xf32>
    %578 = arith.mulf %576, %577 : vector<8x1xf32>
    %cst_200 = arith.constant 0.000000e+00 : f32
    %579 = vector.broadcast %cst_200 : f32 to vector<8x1xf32>
    %580 = arith.maximumf %578, %579 : vector<8x1xf32>
    %581 = math.absf %578 : vector<8x1xf32>
    %cst_201 = arith.constant 0.000000e+00 : f32
    %582 = vector.broadcast %cst_201 : f32 to vector<8x1xf32>
    %583 = arith.subf %582, %581 : vector<8x1xf32>
    %584 = math.exp %583 : vector<8x1xf32>
    %585 = math.log1p %584 : vector<8x1xf32>
    %586 = arith.addf %580, %585 : vector<8x1xf32>
    %cst_202 = arith.constant 1.500000e+00 : f32
    %587 = vector.broadcast %cst_202 : f32 to vector<8x1xf32>
    %588 = arith.mulf %587, %586 : vector<8x1xf32>
    %c1_i32_203 = arith.constant 1 : i32
    %cst_204 = arith.constant 0.666666686 : f32
    %589 = vector.broadcast %cst_204 : f32 to vector<8x128xf32>
    %590 = arith.mulf %549, %589 : vector<8x128xf32>
    %cst_205 = arith.constant 0.000000e+00 : f32
    %591 = vector.broadcast %cst_205 : f32 to vector<8x128xf32>
    %592 = arith.maximumf %590, %591 : vector<8x128xf32>
    %593 = math.absf %590 : vector<8x128xf32>
    %cst_206 = arith.constant 0.000000e+00 : f32
    %594 = vector.broadcast %cst_206 : f32 to vector<8x128xf32>
    %595 = arith.subf %594, %593 : vector<8x128xf32>
    %596 = math.exp %595 : vector<8x128xf32>
    %597 = math.log1p %596 : vector<8x128xf32>
    %598 = arith.addf %592, %597 : vector<8x128xf32>
    %cst_207 = arith.constant 1.500000e+00 : f32
    %599 = vector.broadcast %cst_207 : f32 to vector<8x128xf32>
    %600 = arith.mulf %599, %598 : vector<8x128xf32>
    %601 = arith.mulf %560, %568 : vector<8x128xf32>
    %602 = arith.mulf %601, %600 : vector<8x128xf32>
    %cst_208 = arith.constant dense<0.000000e+00> : vector<8x128xf32>
    %603 = tpu.matmul %602, %1, %cst_208 {dimension_numbers = #tpu.dot_dimension_numbers<[1], [0], [0], [1], [0, 0, 1, 1], [], []>} : vector<8x128xf32>, vector<128x128xf32>, vector<8x128xf32> -> vector<8x128xf32>
    %604 = arith.subf %603, %549 : vector<8x128xf32>
    %cst_209 = arith.constant 1.100000e+00 : f32
    %605 = vector.broadcast %cst_209 : f32 to vector<8x1xf32>
    %606 = arith.mulf %605, %588 : vector<8x1xf32>
    %607 = vector.broadcast %606 : vector<8x1xf32> to vector<8x128xf32>
    %608 = arith.subf %604, %607 : vector<8x128xf32>
    %609 = vector.broadcast %cst_180 : f32 to vector<8x128xf32>
    %610 = arith.addf %608, %609 : vector<8x128xf32>
    %cst_210 = arith.constant 1.250000e-02 : f32
    %611 = vector.broadcast %cst_210 : f32 to vector<8x128xf32>
    %612 = arith.mulf %611, %610 : vector<8x128xf32>
    %613 = arith.addf %549, %612 : vector<8x128xf32>
    %cst_211 = arith.constant 3.000000e-01 : f32
    %614 = vector.broadcast %cst_211 : f32 to vector<8x128xf32>
    %615 = arith.subf %614, %560 : vector<8x128xf32>
    %cst_212 = arith.constant 6.66666674E-5 : f32
    %616 = vector.broadcast %cst_212 : f32 to vector<8x128xf32>
    %617 = arith.mulf %616, %615 : vector<8x128xf32>
    %618 = arith.addf %560, %617 : vector<8x128xf32>
    %cst_213 = arith.constant 1.000000e+00 : f32
    %619 = vector.broadcast %cst_213 : f32 to vector<8x128xf32>
    %620 = arith.subf %619, %560 : vector<8x128xf32>
    %cst_214 = arith.constant 3.000000e-05 : f32
    %621 = vector.broadcast %cst_214 : f32 to vector<8x128xf32>
    %622 = arith.mulf %621, %620 : vector<8x128xf32>
    %623 = arith.mulf %622, %600 : vector<8x128xf32>
    %624 = arith.addf %618, %623 : vector<8x128xf32>
    %cst_215 = arith.constant 1.000000e+00 : f32
    %625 = vector.broadcast %cst_215 : f32 to vector<8x128xf32>
    %626 = arith.subf %625, %568 : vector<8x128xf32>
    %cst_216 = arith.constant 3.3333333E-4 : f32
    %627 = vector.broadcast %cst_216 : f32 to vector<8x128xf32>
    %628 = arith.mulf %627, %626 : vector<8x128xf32>
    %629 = arith.addf %568, %628 : vector<8x128xf32>
    %cst_217 = arith.constant 9.99999974E-5 : f32
    %630 = vector.broadcast %cst_217 : f32 to vector<8x128xf32>
    %631 = arith.mulf %630, %602 : vector<8x128xf32>
    %632 = arith.subf %629, %631 : vector<8x128xf32>
    %cst_218 = arith.constant dense<0.000000e+00> : vector<8xf32>
    %633 = vector.multi_reduction <add>, %600, %cst_218 [1] : vector<8x128xf32> to vector<8xf32>
    %634 = vector.shape_cast %633 : vector<8xf32> to vector<8x1xf32>
    %cst_219 = arith.constant 2.200000e+00 : f32
    %635 = vector.broadcast %cst_219 : f32 to vector<8x1xf32>
    %636 = arith.mulf %635, %634 : vector<8x1xf32>
    %637 = arith.subf %636, %576 : vector<8x1xf32>
    %cst_220 = arith.constant 1.250000e-02 : f32
    %638 = vector.broadcast %cst_220 : f32 to vector<8x1xf32>
    %639 = arith.mulf %638, %637 : vector<8x1xf32>
    %640 = arith.addf %576, %639 : vector<8x1xf32>
    %cst_221 = arith.constant 0.666666686 : f32
    %641 = vector.broadcast %cst_221 : f32 to vector<8x1xf32>
    %642 = arith.mulf %640, %641 : vector<8x1xf32>
    %cst_222 = arith.constant 0.000000e+00 : f32
    %643 = vector.broadcast %cst_222 : f32 to vector<8x1xf32>
    %644 = arith.maximumf %642, %643 : vector<8x1xf32>
    %645 = math.absf %642 : vector<8x1xf32>
    %cst_223 = arith.constant 0.000000e+00 : f32
    %646 = vector.broadcast %cst_223 : f32 to vector<8x1xf32>
    %647 = arith.subf %646, %645 : vector<8x1xf32>
    %648 = math.exp %647 : vector<8x1xf32>
    %649 = math.log1p %648 : vector<8x1xf32>
    %650 = arith.addf %644, %649 : vector<8x1xf32>
    %cst_224 = arith.constant 1.500000e+00 : f32
    %651 = vector.broadcast %cst_224 : f32 to vector<8x1xf32>
    %652 = arith.mulf %651, %650 : vector<8x1xf32>
    %c2_i32_225 = arith.constant 2 : i32
    %cst_226 = arith.constant 0.666666686 : f32
    %653 = vector.broadcast %cst_226 : f32 to vector<8x128xf32>
    %654 = arith.mulf %613, %653 : vector<8x128xf32>
    %cst_227 = arith.constant 0.000000e+00 : f32
    %655 = vector.broadcast %cst_227 : f32 to vector<8x128xf32>
    %656 = arith.maximumf %654, %655 : vector<8x128xf32>
    %657 = math.absf %654 : vector<8x128xf32>
    %cst_228 = arith.constant 0.000000e+00 : f32
    %658 = vector.broadcast %cst_228 : f32 to vector<8x128xf32>
    %659 = arith.subf %658, %657 : vector<8x128xf32>
    %660 = math.exp %659 : vector<8x128xf32>
    %661 = math.log1p %660 : vector<8x128xf32>
    %662 = arith.addf %656, %661 : vector<8x128xf32>
    %cst_229 = arith.constant 1.500000e+00 : f32
    %663 = vector.broadcast %cst_229 : f32 to vector<8x128xf32>
    %664 = arith.mulf %663, %662 : vector<8x128xf32>
    %665 = arith.mulf %624, %632 : vector<8x128xf32>
    %666 = arith.mulf %665, %664 : vector<8x128xf32>
    %cst_230 = arith.constant dense<0.000000e+00> : vector<8x128xf32>
    %667 = tpu.matmul %666, %1, %cst_230 {dimension_numbers = #tpu.dot_dimension_numbers<[1], [0], [0], [1], [0, 0, 1, 1], [], []>} : vector<8x128xf32>, vector<128x128xf32>, vector<8x128xf32> -> vector<8x128xf32>
    %668 = arith.subf %667, %613 : vector<8x128xf32>
    %cst_231 = arith.constant 1.100000e+00 : f32
    %669 = vector.broadcast %cst_231 : f32 to vector<8x1xf32>
    %670 = arith.mulf %669, %652 : vector<8x1xf32>
    %671 = vector.broadcast %670 : vector<8x1xf32> to vector<8x128xf32>
    %672 = arith.subf %668, %671 : vector<8x128xf32>
    %673 = vector.broadcast %cst_180 : f32 to vector<8x128xf32>
    %674 = arith.addf %672, %673 : vector<8x128xf32>
    %cst_232 = arith.constant 1.250000e-02 : f32
    %675 = vector.broadcast %cst_232 : f32 to vector<8x128xf32>
    %676 = arith.mulf %675, %674 : vector<8x128xf32>
    %677 = arith.addf %613, %676 : vector<8x128xf32>
    %cst_233 = arith.constant 3.000000e-01 : f32
    %678 = vector.broadcast %cst_233 : f32 to vector<8x128xf32>
    %679 = arith.subf %678, %624 : vector<8x128xf32>
    %cst_234 = arith.constant 6.66666674E-5 : f32
    %680 = vector.broadcast %cst_234 : f32 to vector<8x128xf32>
    %681 = arith.mulf %680, %679 : vector<8x128xf32>
    %682 = arith.addf %624, %681 : vector<8x128xf32>
    %cst_235 = arith.constant 1.000000e+00 : f32
    %683 = vector.broadcast %cst_235 : f32 to vector<8x128xf32>
    %684 = arith.subf %683, %624 : vector<8x128xf32>
    %cst_236 = arith.constant 3.000000e-05 : f32
    %685 = vector.broadcast %cst_236 : f32 to vector<8x128xf32>
    %686 = arith.mulf %685, %684 : vector<8x128xf32>
    %687 = arith.mulf %686, %664 : vector<8x128xf32>
    %688 = arith.addf %682, %687 : vector<8x128xf32>
    %cst_237 = arith.constant 1.000000e+00 : f32
    %689 = vector.broadcast %cst_237 : f32 to vector<8x128xf32>
    %690 = arith.subf %689, %632 : vector<8x128xf32>
    %cst_238 = arith.constant 3.3333333E-4 : f32
    %691 = vector.broadcast %cst_238 : f32 to vector<8x128xf32>
    %692 = arith.mulf %691, %690 : vector<8x128xf32>
    %693 = arith.addf %632, %692 : vector<8x128xf32>
    %cst_239 = arith.constant 9.99999974E-5 : f32
    %694 = vector.broadcast %cst_239 : f32 to vector<8x128xf32>
    %695 = arith.mulf %694, %666 : vector<8x128xf32>
    %696 = arith.subf %693, %695 : vector<8x128xf32>
    %cst_240 = arith.constant dense<0.000000e+00> : vector<8xf32>
    %697 = vector.multi_reduction <add>, %664, %cst_240 [1] : vector<8x128xf32> to vector<8xf32>
    %698 = vector.shape_cast %697 : vector<8xf32> to vector<8x1xf32>
    %cst_241 = arith.constant 2.200000e+00 : f32
    %699 = vector.broadcast %cst_241 : f32 to vector<8x1xf32>
    %700 = arith.mulf %699, %698 : vector<8x1xf32>
    %701 = arith.subf %700, %640 : vector<8x1xf32>
    %cst_242 = arith.constant 1.250000e-02 : f32
    %702 = vector.broadcast %cst_242 : f32 to vector<8x1xf32>
    %703 = arith.mulf %702, %701 : vector<8x1xf32>
    %704 = arith.addf %640, %703 : vector<8x1xf32>
    %cst_243 = arith.constant 0.666666686 : f32
    %705 = vector.broadcast %cst_243 : f32 to vector<8x1xf32>
    %706 = arith.mulf %704, %705 : vector<8x1xf32>
    %cst_244 = arith.constant 0.000000e+00 : f32
    %707 = vector.broadcast %cst_244 : f32 to vector<8x1xf32>
    %708 = arith.maximumf %706, %707 : vector<8x1xf32>
    %709 = math.absf %706 : vector<8x1xf32>
    %cst_245 = arith.constant 0.000000e+00 : f32
    %710 = vector.broadcast %cst_245 : f32 to vector<8x1xf32>
    %711 = arith.subf %710, %709 : vector<8x1xf32>
    %712 = math.exp %711 : vector<8x1xf32>
    %713 = math.log1p %712 : vector<8x1xf32>
    %714 = arith.addf %708, %713 : vector<8x1xf32>
    %cst_246 = arith.constant 1.500000e+00 : f32
    %715 = vector.broadcast %cst_246 : f32 to vector<8x1xf32>
    %716 = arith.mulf %715, %714 : vector<8x1xf32>
    %c3_i32_247 = arith.constant 3 : i32
    %cst_248 = arith.constant 0.666666686 : f32
    %717 = vector.broadcast %cst_248 : f32 to vector<8x128xf32>
    %718 = arith.mulf %677, %717 : vector<8x128xf32>
    %cst_249 = arith.constant 0.000000e+00 : f32
    %719 = vector.broadcast %cst_249 : f32 to vector<8x128xf32>
    %720 = arith.maximumf %718, %719 : vector<8x128xf32>
    %721 = math.absf %718 : vector<8x128xf32>
    %cst_250 = arith.constant 0.000000e+00 : f32
    %722 = vector.broadcast %cst_250 : f32 to vector<8x128xf32>
    %723 = arith.subf %722, %721 : vector<8x128xf32>
    %724 = math.exp %723 : vector<8x128xf32>
    %725 = math.log1p %724 : vector<8x128xf32>
    %726 = arith.addf %720, %725 : vector<8x128xf32>
    %cst_251 = arith.constant 1.500000e+00 : f32
    %727 = vector.broadcast %cst_251 : f32 to vector<8x128xf32>
    %728 = arith.mulf %727, %726 : vector<8x128xf32>
    %729 = arith.mulf %688, %696 : vector<8x128xf32>
    %730 = arith.mulf %729, %728 : vector<8x128xf32>
    %cst_252 = arith.constant dense<0.000000e+00> : vector<8x128xf32>
    %731 = tpu.matmul %730, %1, %cst_252 {dimension_numbers = #tpu.dot_dimension_numbers<[1], [0], [0], [1], [0, 0, 1, 1], [], []>} : vector<8x128xf32>, vector<128x128xf32>, vector<8x128xf32> -> vector<8x128xf32>
    %732 = arith.subf %731, %677 : vector<8x128xf32>
    %cst_253 = arith.constant 1.100000e+00 : f32
    %733 = vector.broadcast %cst_253 : f32 to vector<8x1xf32>
    %734 = arith.mulf %733, %716 : vector<8x1xf32>
    %735 = vector.broadcast %734 : vector<8x1xf32> to vector<8x128xf32>
    %736 = arith.subf %732, %735 : vector<8x128xf32>
    %737 = vector.broadcast %cst_180 : f32 to vector<8x128xf32>
    %738 = arith.addf %736, %737 : vector<8x128xf32>
    %cst_254 = arith.constant 1.250000e-02 : f32
    %739 = vector.broadcast %cst_254 : f32 to vector<8x128xf32>
    %740 = arith.mulf %739, %738 : vector<8x128xf32>
    %741 = arith.addf %677, %740 : vector<8x128xf32>
    %cst_255 = arith.constant 3.000000e-01 : f32
    %742 = vector.broadcast %cst_255 : f32 to vector<8x128xf32>
    %743 = arith.subf %742, %688 : vector<8x128xf32>
    %cst_256 = arith.constant 6.66666674E-5 : f32
    %744 = vector.broadcast %cst_256 : f32 to vector<8x128xf32>
    %745 = arith.mulf %744, %743 : vector<8x128xf32>
    %746 = arith.addf %688, %745 : vector<8x128xf32>
    %cst_257 = arith.constant 1.000000e+00 : f32
    %747 = vector.broadcast %cst_257 : f32 to vector<8x128xf32>
    %748 = arith.subf %747, %688 : vector<8x128xf32>
    %cst_258 = arith.constant 3.000000e-05 : f32
    %749 = vector.broadcast %cst_258 : f32 to vector<8x128xf32>
    %750 = arith.mulf %749, %748 : vector<8x128xf32>
    %751 = arith.mulf %750, %728 : vector<8x128xf32>
    %752 = arith.addf %746, %751 : vector<8x128xf32>
    %cst_259 = arith.constant 1.000000e+00 : f32
    %753 = vector.broadcast %cst_259 : f32 to vector<8x128xf32>
    %754 = arith.subf %753, %696 : vector<8x128xf32>
    %cst_260 = arith.constant 3.3333333E-4 : f32
    %755 = vector.broadcast %cst_260 : f32 to vector<8x128xf32>
    %756 = arith.mulf %755, %754 : vector<8x128xf32>
    %757 = arith.addf %696, %756 : vector<8x128xf32>
    %cst_261 = arith.constant 9.99999974E-5 : f32
    %758 = vector.broadcast %cst_261 : f32 to vector<8x128xf32>
    %759 = arith.mulf %758, %730 : vector<8x128xf32>
    %760 = arith.subf %757, %759 : vector<8x128xf32>
    %cst_262 = arith.constant dense<0.000000e+00> : vector<8xf32>
    %761 = vector.multi_reduction <add>, %728, %cst_262 [1] : vector<8x128xf32> to vector<8xf32>
    %762 = vector.shape_cast %761 : vector<8xf32> to vector<8x1xf32>
    %cst_263 = arith.constant 2.200000e+00 : f32
    %763 = vector.broadcast %cst_263 : f32 to vector<8x1xf32>
    %764 = arith.mulf %763, %762 : vector<8x1xf32>
    %765 = arith.subf %764, %704 : vector<8x1xf32>
    %cst_264 = arith.constant 1.250000e-02 : f32
    %766 = vector.broadcast %cst_264 : f32 to vector<8x1xf32>
    %767 = arith.mulf %766, %765 : vector<8x1xf32>
    %768 = arith.addf %704, %767 : vector<8x1xf32>
    %cst_265 = arith.constant 0.666666686 : f32
    %769 = vector.broadcast %cst_265 : f32 to vector<8x1xf32>
    %770 = arith.mulf %768, %769 : vector<8x1xf32>
    %cst_266 = arith.constant 0.000000e+00 : f32
    %771 = vector.broadcast %cst_266 : f32 to vector<8x1xf32>
    %772 = arith.maximumf %770, %771 : vector<8x1xf32>
    %773 = math.absf %770 : vector<8x1xf32>
    %cst_267 = arith.constant 0.000000e+00 : f32
    %774 = vector.broadcast %cst_267 : f32 to vector<8x1xf32>
    %775 = arith.subf %774, %773 : vector<8x1xf32>
    %776 = math.exp %775 : vector<8x1xf32>
    %777 = math.log1p %776 : vector<8x1xf32>
    %778 = arith.addf %772, %777 : vector<8x1xf32>
    %cst_268 = arith.constant 1.500000e+00 : f32
    %779 = vector.broadcast %cst_268 : f32 to vector<8x1xf32>
    %780 = arith.mulf %779, %778 : vector<8x1xf32>
    %c4_i32_269 = arith.constant 4 : i32
    %cst_270 = arith.constant 0.666666686 : f32
    %781 = vector.broadcast %cst_270 : f32 to vector<8x128xf32>
    %782 = arith.mulf %741, %781 : vector<8x128xf32>
    %cst_271 = arith.constant 0.000000e+00 : f32
    %783 = vector.broadcast %cst_271 : f32 to vector<8x128xf32>
    %784 = arith.maximumf %782, %783 : vector<8x128xf32>
    %785 = math.absf %782 : vector<8x128xf32>
    %cst_272 = arith.constant 0.000000e+00 : f32
    %786 = vector.broadcast %cst_272 : f32 to vector<8x128xf32>
    %787 = arith.subf %786, %785 : vector<8x128xf32>
    %788 = math.exp %787 : vector<8x128xf32>
    %789 = math.log1p %788 : vector<8x128xf32>
    %790 = arith.addf %784, %789 : vector<8x128xf32>
    %cst_273 = arith.constant 1.500000e+00 : f32
    %791 = vector.broadcast %cst_273 : f32 to vector<8x128xf32>
    %792 = arith.mulf %791, %790 : vector<8x128xf32>
    %793 = arith.mulf %752, %760 : vector<8x128xf32>
    %794 = arith.mulf %793, %792 : vector<8x128xf32>
    %cst_274 = arith.constant dense<0.000000e+00> : vector<8x128xf32>
    %795 = tpu.matmul %794, %1, %cst_274 {dimension_numbers = #tpu.dot_dimension_numbers<[1], [0], [0], [1], [0, 0, 1, 1], [], []>} : vector<8x128xf32>, vector<128x128xf32>, vector<8x128xf32> -> vector<8x128xf32>
    %796 = arith.subf %795, %741 : vector<8x128xf32>
    %cst_275 = arith.constant 1.100000e+00 : f32
    %797 = vector.broadcast %cst_275 : f32 to vector<8x1xf32>
    %798 = arith.mulf %797, %780 : vector<8x1xf32>
    %799 = vector.broadcast %798 : vector<8x1xf32> to vector<8x128xf32>
    %800 = arith.subf %796, %799 : vector<8x128xf32>
    %801 = vector.broadcast %cst_180 : f32 to vector<8x128xf32>
    %802 = arith.addf %800, %801 : vector<8x128xf32>
    %cst_276 = arith.constant 1.250000e-02 : f32
    %803 = vector.broadcast %cst_276 : f32 to vector<8x128xf32>
    %804 = arith.mulf %803, %802 : vector<8x128xf32>
    %805 = arith.addf %741, %804 : vector<8x128xf32>
    %cst_277 = arith.constant 3.000000e-01 : f32
    %806 = vector.broadcast %cst_277 : f32 to vector<8x128xf32>
    %807 = arith.subf %806, %752 : vector<8x128xf32>
    %cst_278 = arith.constant 6.66666674E-5 : f32
    %808 = vector.broadcast %cst_278 : f32 to vector<8x128xf32>
    %809 = arith.mulf %808, %807 : vector<8x128xf32>
    %810 = arith.addf %752, %809 : vector<8x128xf32>
    %cst_279 = arith.constant 1.000000e+00 : f32
    %811 = vector.broadcast %cst_279 : f32 to vector<8x128xf32>
    %812 = arith.subf %811, %752 : vector<8x128xf32>
    %cst_280 = arith.constant 3.000000e-05 : f32
    %813 = vector.broadcast %cst_280 : f32 to vector<8x128xf32>
    %814 = arith.mulf %813, %812 : vector<8x128xf32>
    %815 = arith.mulf %814, %792 : vector<8x128xf32>
    %816 = arith.addf %810, %815 : vector<8x128xf32>
    %cst_281 = arith.constant 1.000000e+00 : f32
    %817 = vector.broadcast %cst_281 : f32 to vector<8x128xf32>
    %818 = arith.subf %817, %760 : vector<8x128xf32>
    %cst_282 = arith.constant 3.3333333E-4 : f32
    %819 = vector.broadcast %cst_282 : f32 to vector<8x128xf32>
    %820 = arith.mulf %819, %818 : vector<8x128xf32>
    %821 = arith.addf %760, %820 : vector<8x128xf32>
    %cst_283 = arith.constant 9.99999974E-5 : f32
    %822 = vector.broadcast %cst_283 : f32 to vector<8x128xf32>
    %823 = arith.mulf %822, %794 : vector<8x128xf32>
    %824 = arith.subf %821, %823 : vector<8x128xf32>
    %cst_284 = arith.constant dense<0.000000e+00> : vector<8xf32>
    %825 = vector.multi_reduction <add>, %792, %cst_284 [1] : vector<8x128xf32> to vector<8xf32>
    %826 = vector.shape_cast %825 : vector<8xf32> to vector<8x1xf32>
    %cst_285 = arith.constant 2.200000e+00 : f32
    %827 = vector.broadcast %cst_285 : f32 to vector<8x1xf32>
    %828 = arith.mulf %827, %826 : vector<8x1xf32>
    %829 = arith.subf %828, %768 : vector<8x1xf32>
    %cst_286 = arith.constant 1.250000e-02 : f32
    %830 = vector.broadcast %cst_286 : f32 to vector<8x1xf32>
    %831 = arith.mulf %830, %829 : vector<8x1xf32>
    %832 = arith.addf %768, %831 : vector<8x1xf32>
    %cst_287 = arith.constant 0.666666686 : f32
    %833 = vector.broadcast %cst_287 : f32 to vector<8x1xf32>
    %834 = arith.mulf %832, %833 : vector<8x1xf32>
    %cst_288 = arith.constant 0.000000e+00 : f32
    %835 = vector.broadcast %cst_288 : f32 to vector<8x1xf32>
    %836 = arith.maximumf %834, %835 : vector<8x1xf32>
    %837 = math.absf %834 : vector<8x1xf32>
    %cst_289 = arith.constant 0.000000e+00 : f32
    %838 = vector.broadcast %cst_289 : f32 to vector<8x1xf32>
    %839 = arith.subf %838, %837 : vector<8x1xf32>
    %840 = math.exp %839 : vector<8x1xf32>
    %841 = math.log1p %840 : vector<8x1xf32>
    %842 = arith.addf %836, %841 : vector<8x1xf32>
    %cst_290 = arith.constant 1.500000e+00 : f32
    %843 = vector.broadcast %cst_290 : f32 to vector<8x1xf32>
    %844 = arith.mulf %843, %842 : vector<8x1xf32>
    %c5_i32_291 = arith.constant 5 : i32
    %cst_292 = arith.constant 0.666666686 : f32
    %845 = vector.broadcast %cst_292 : f32 to vector<8x128xf32>
    %846 = arith.mulf %805, %845 : vector<8x128xf32>
    %cst_293 = arith.constant 0.000000e+00 : f32
    %847 = vector.broadcast %cst_293 : f32 to vector<8x128xf32>
    %848 = arith.maximumf %846, %847 : vector<8x128xf32>
    %849 = math.absf %846 : vector<8x128xf32>
    %cst_294 = arith.constant 0.000000e+00 : f32
    %850 = vector.broadcast %cst_294 : f32 to vector<8x128xf32>
    %851 = arith.subf %850, %849 : vector<8x128xf32>
    %852 = math.exp %851 : vector<8x128xf32>
    %853 = math.log1p %852 : vector<8x128xf32>
    %854 = arith.addf %848, %853 : vector<8x128xf32>
    %cst_295 = arith.constant 1.500000e+00 : f32
    %855 = vector.broadcast %cst_295 : f32 to vector<8x128xf32>
    %856 = arith.mulf %855, %854 : vector<8x128xf32>
    %857 = arith.mulf %816, %824 : vector<8x128xf32>
    %858 = arith.mulf %857, %856 : vector<8x128xf32>
    %cst_296 = arith.constant dense<0.000000e+00> : vector<8x128xf32>
    %859 = tpu.matmul %858, %1, %cst_296 {dimension_numbers = #tpu.dot_dimension_numbers<[1], [0], [0], [1], [0, 0, 1, 1], [], []>} : vector<8x128xf32>, vector<128x128xf32>, vector<8x128xf32> -> vector<8x128xf32>
    %860 = arith.subf %859, %805 : vector<8x128xf32>
    %cst_297 = arith.constant 1.100000e+00 : f32
    %861 = vector.broadcast %cst_297 : f32 to vector<8x1xf32>
    %862 = arith.mulf %861, %844 : vector<8x1xf32>
    %863 = vector.broadcast %862 : vector<8x1xf32> to vector<8x128xf32>
    %864 = arith.subf %860, %863 : vector<8x128xf32>
    %865 = vector.broadcast %cst_180 : f32 to vector<8x128xf32>
    %866 = arith.addf %864, %865 : vector<8x128xf32>
    %cst_298 = arith.constant 1.250000e-02 : f32
    %867 = vector.broadcast %cst_298 : f32 to vector<8x128xf32>
    %868 = arith.mulf %867, %866 : vector<8x128xf32>
    %869 = arith.addf %805, %868 : vector<8x128xf32>
    %cst_299 = arith.constant 3.000000e-01 : f32
    %870 = vector.broadcast %cst_299 : f32 to vector<8x128xf32>
    %871 = arith.subf %870, %816 : vector<8x128xf32>
    %cst_300 = arith.constant 6.66666674E-5 : f32
    %872 = vector.broadcast %cst_300 : f32 to vector<8x128xf32>
    %873 = arith.mulf %872, %871 : vector<8x128xf32>
    %874 = arith.addf %816, %873 : vector<8x128xf32>
    %cst_301 = arith.constant 1.000000e+00 : f32
    %875 = vector.broadcast %cst_301 : f32 to vector<8x128xf32>
    %876 = arith.subf %875, %816 : vector<8x128xf32>
    %cst_302 = arith.constant 3.000000e-05 : f32
    %877 = vector.broadcast %cst_302 : f32 to vector<8x128xf32>
    %878 = arith.mulf %877, %876 : vector<8x128xf32>
    %879 = arith.mulf %878, %856 : vector<8x128xf32>
    %880 = arith.addf %874, %879 : vector<8x128xf32>
    %cst_303 = arith.constant 1.000000e+00 : f32
    %881 = vector.broadcast %cst_303 : f32 to vector<8x128xf32>
    %882 = arith.subf %881, %824 : vector<8x128xf32>
    %cst_304 = arith.constant 3.3333333E-4 : f32
    %883 = vector.broadcast %cst_304 : f32 to vector<8x128xf32>
    %884 = arith.mulf %883, %882 : vector<8x128xf32>
    %885 = arith.addf %824, %884 : vector<8x128xf32>
    %cst_305 = arith.constant 9.99999974E-5 : f32
    %886 = vector.broadcast %cst_305 : f32 to vector<8x128xf32>
    %887 = arith.mulf %886, %858 : vector<8x128xf32>
    %888 = arith.subf %885, %887 : vector<8x128xf32>
    %cst_306 = arith.constant dense<0.000000e+00> : vector<8xf32>
    %889 = vector.multi_reduction <add>, %856, %cst_306 [1] : vector<8x128xf32> to vector<8xf32>
    %890 = vector.shape_cast %889 : vector<8xf32> to vector<8x1xf32>
    %cst_307 = arith.constant 2.200000e+00 : f32
    %891 = vector.broadcast %cst_307 : f32 to vector<8x1xf32>
    %892 = arith.mulf %891, %890 : vector<8x1xf32>
    %893 = arith.subf %892, %832 : vector<8x1xf32>
    %cst_308 = arith.constant 1.250000e-02 : f32
    %894 = vector.broadcast %cst_308 : f32 to vector<8x1xf32>
    %895 = arith.mulf %894, %893 : vector<8x1xf32>
    %896 = arith.addf %832, %895 : vector<8x1xf32>
    %cst_309 = arith.constant 0.666666686 : f32
    %897 = vector.broadcast %cst_309 : f32 to vector<8x1xf32>
    %898 = arith.mulf %896, %897 : vector<8x1xf32>
    %cst_310 = arith.constant 0.000000e+00 : f32
    %899 = vector.broadcast %cst_310 : f32 to vector<8x1xf32>
    %900 = arith.maximumf %898, %899 : vector<8x1xf32>
    %901 = math.absf %898 : vector<8x1xf32>
    %cst_311 = arith.constant 0.000000e+00 : f32
    %902 = vector.broadcast %cst_311 : f32 to vector<8x1xf32>
    %903 = arith.subf %902, %901 : vector<8x1xf32>
    %904 = math.exp %903 : vector<8x1xf32>
    %905 = math.log1p %904 : vector<8x1xf32>
    %906 = arith.addf %900, %905 : vector<8x1xf32>
    %cst_312 = arith.constant 1.500000e+00 : f32
    %907 = vector.broadcast %cst_312 : f32 to vector<8x1xf32>
    %908 = arith.mulf %907, %906 : vector<8x1xf32>
    %c6_i32_313 = arith.constant 6 : i32
    %cst_314 = arith.constant 0.666666686 : f32
    %909 = vector.broadcast %cst_314 : f32 to vector<8x128xf32>
    %910 = arith.mulf %869, %909 : vector<8x128xf32>
    %cst_315 = arith.constant 0.000000e+00 : f32
    %911 = vector.broadcast %cst_315 : f32 to vector<8x128xf32>
    %912 = arith.maximumf %910, %911 : vector<8x128xf32>
    %913 = math.absf %910 : vector<8x128xf32>
    %cst_316 = arith.constant 0.000000e+00 : f32
    %914 = vector.broadcast %cst_316 : f32 to vector<8x128xf32>
    %915 = arith.subf %914, %913 : vector<8x128xf32>
    %916 = math.exp %915 : vector<8x128xf32>
    %917 = math.log1p %916 : vector<8x128xf32>
    %918 = arith.addf %912, %917 : vector<8x128xf32>
    %cst_317 = arith.constant 1.500000e+00 : f32
    %919 = vector.broadcast %cst_317 : f32 to vector<8x128xf32>
    %920 = arith.mulf %919, %918 : vector<8x128xf32>
    %921 = arith.mulf %880, %888 : vector<8x128xf32>
    %922 = arith.mulf %921, %920 : vector<8x128xf32>
    %cst_318 = arith.constant dense<0.000000e+00> : vector<8x128xf32>
    %923 = tpu.matmul %922, %1, %cst_318 {dimension_numbers = #tpu.dot_dimension_numbers<[1], [0], [0], [1], [0, 0, 1, 1], [], []>} : vector<8x128xf32>, vector<128x128xf32>, vector<8x128xf32> -> vector<8x128xf32>
    %924 = arith.subf %923, %869 : vector<8x128xf32>
    %cst_319 = arith.constant 1.100000e+00 : f32
    %925 = vector.broadcast %cst_319 : f32 to vector<8x1xf32>
    %926 = arith.mulf %925, %908 : vector<8x1xf32>
    %927 = vector.broadcast %926 : vector<8x1xf32> to vector<8x128xf32>
    %928 = arith.subf %924, %927 : vector<8x128xf32>
    %929 = vector.broadcast %cst_180 : f32 to vector<8x128xf32>
    %930 = arith.addf %928, %929 : vector<8x128xf32>
    %cst_320 = arith.constant 1.250000e-02 : f32
    %931 = vector.broadcast %cst_320 : f32 to vector<8x128xf32>
    %932 = arith.mulf %931, %930 : vector<8x128xf32>
    %933 = arith.addf %869, %932 : vector<8x128xf32>
    %cst_321 = arith.constant 3.000000e-01 : f32
    %934 = vector.broadcast %cst_321 : f32 to vector<8x128xf32>
    %935 = arith.subf %934, %880 : vector<8x128xf32>
    %cst_322 = arith.constant 6.66666674E-5 : f32
    %936 = vector.broadcast %cst_322 : f32 to vector<8x128xf32>
    %937 = arith.mulf %936, %935 : vector<8x128xf32>
    %938 = arith.addf %880, %937 : vector<8x128xf32>
    %cst_323 = arith.constant 1.000000e+00 : f32
    %939 = vector.broadcast %cst_323 : f32 to vector<8x128xf32>
    %940 = arith.subf %939, %880 : vector<8x128xf32>
    %cst_324 = arith.constant 3.000000e-05 : f32
    %941 = vector.broadcast %cst_324 : f32 to vector<8x128xf32>
    %942 = arith.mulf %941, %940 : vector<8x128xf32>
    %943 = arith.mulf %942, %920 : vector<8x128xf32>
    %944 = arith.addf %938, %943 : vector<8x128xf32>
    %cst_325 = arith.constant 1.000000e+00 : f32
    %945 = vector.broadcast %cst_325 : f32 to vector<8x128xf32>
    %946 = arith.subf %945, %888 : vector<8x128xf32>
    %cst_326 = arith.constant 3.3333333E-4 : f32
    %947 = vector.broadcast %cst_326 : f32 to vector<8x128xf32>
    %948 = arith.mulf %947, %946 : vector<8x128xf32>
    %949 = arith.addf %888, %948 : vector<8x128xf32>
    %cst_327 = arith.constant 9.99999974E-5 : f32
    %950 = vector.broadcast %cst_327 : f32 to vector<8x128xf32>
    %951 = arith.mulf %950, %922 : vector<8x128xf32>
    %952 = arith.subf %949, %951 : vector<8x128xf32>
    %cst_328 = arith.constant dense<0.000000e+00> : vector<8xf32>
    %953 = vector.multi_reduction <add>, %920, %cst_328 [1] : vector<8x128xf32> to vector<8xf32>
    %954 = vector.shape_cast %953 : vector<8xf32> to vector<8x1xf32>
    %cst_329 = arith.constant 2.200000e+00 : f32
    %955 = vector.broadcast %cst_329 : f32 to vector<8x1xf32>
    %956 = arith.mulf %955, %954 : vector<8x1xf32>
    %957 = arith.subf %956, %896 : vector<8x1xf32>
    %cst_330 = arith.constant 1.250000e-02 : f32
    %958 = vector.broadcast %cst_330 : f32 to vector<8x1xf32>
    %959 = arith.mulf %958, %957 : vector<8x1xf32>
    %960 = arith.addf %896, %959 : vector<8x1xf32>
    %cst_331 = arith.constant 0.666666686 : f32
    %961 = vector.broadcast %cst_331 : f32 to vector<8x1xf32>
    %962 = arith.mulf %960, %961 : vector<8x1xf32>
    %cst_332 = arith.constant 0.000000e+00 : f32
    %963 = vector.broadcast %cst_332 : f32 to vector<8x1xf32>
    %964 = arith.maximumf %962, %963 : vector<8x1xf32>
    %965 = math.absf %962 : vector<8x1xf32>
    %cst_333 = arith.constant 0.000000e+00 : f32
    %966 = vector.broadcast %cst_333 : f32 to vector<8x1xf32>
    %967 = arith.subf %966, %965 : vector<8x1xf32>
    %968 = math.exp %967 : vector<8x1xf32>
    %969 = math.log1p %968 : vector<8x1xf32>
    %970 = arith.addf %964, %969 : vector<8x1xf32>
    %cst_334 = arith.constant 1.500000e+00 : f32
    %971 = vector.broadcast %cst_334 : f32 to vector<8x1xf32>
    %972 = arith.mulf %971, %970 : vector<8x1xf32>
    %c7_i32_335 = arith.constant 7 : i32
    %cst_336 = arith.constant 0.666666686 : f32
    %973 = vector.broadcast %cst_336 : f32 to vector<8x128xf32>
    %974 = arith.mulf %933, %973 : vector<8x128xf32>
    %cst_337 = arith.constant 0.000000e+00 : f32
    %975 = vector.broadcast %cst_337 : f32 to vector<8x128xf32>
    %976 = arith.maximumf %974, %975 : vector<8x128xf32>
    %977 = math.absf %974 : vector<8x128xf32>
    %cst_338 = arith.constant 0.000000e+00 : f32
    %978 = vector.broadcast %cst_338 : f32 to vector<8x128xf32>
    %979 = arith.subf %978, %977 : vector<8x128xf32>
    %980 = math.exp %979 : vector<8x128xf32>
    %981 = math.log1p %980 : vector<8x128xf32>
    %982 = arith.addf %976, %981 : vector<8x128xf32>
    %cst_339 = arith.constant 1.500000e+00 : f32
    %983 = vector.broadcast %cst_339 : f32 to vector<8x128xf32>
    %984 = arith.mulf %983, %982 : vector<8x128xf32>
    %985 = arith.mulf %944, %952 : vector<8x128xf32>
    %986 = arith.mulf %985, %984 : vector<8x128xf32>
    %cst_340 = arith.constant dense<0.000000e+00> : vector<8x128xf32>
    %987 = tpu.matmul %986, %1, %cst_340 {dimension_numbers = #tpu.dot_dimension_numbers<[1], [0], [0], [1], [0, 0, 1, 1], [], []>} : vector<8x128xf32>, vector<128x128xf32>, vector<8x128xf32> -> vector<8x128xf32>
    %988 = arith.subf %987, %933 : vector<8x128xf32>
    %cst_341 = arith.constant 1.100000e+00 : f32
    %989 = vector.broadcast %cst_341 : f32 to vector<8x1xf32>
    %990 = arith.mulf %989, %972 : vector<8x1xf32>
    %991 = vector.broadcast %990 : vector<8x1xf32> to vector<8x128xf32>
    %992 = arith.subf %988, %991 : vector<8x128xf32>
    %993 = vector.broadcast %cst_180 : f32 to vector<8x128xf32>
    %994 = arith.addf %992, %993 : vector<8x128xf32>
    %cst_342 = arith.constant 1.250000e-02 : f32
    %995 = vector.broadcast %cst_342 : f32 to vector<8x128xf32>
    %996 = arith.mulf %995, %994 : vector<8x128xf32>
    %997 = arith.addf %933, %996 : vector<8x128xf32>
    %cst_343 = arith.constant 3.000000e-01 : f32
    %998 = vector.broadcast %cst_343 : f32 to vector<8x128xf32>
    %999 = arith.subf %998, %944 : vector<8x128xf32>
    %cst_344 = arith.constant 6.66666674E-5 : f32
    %1000 = vector.broadcast %cst_344 : f32 to vector<8x128xf32>
    %1001 = arith.mulf %1000, %999 : vector<8x128xf32>
    %1002 = arith.addf %944, %1001 : vector<8x128xf32>
    %cst_345 = arith.constant 1.000000e+00 : f32
    %1003 = vector.broadcast %cst_345 : f32 to vector<8x128xf32>
    %1004 = arith.subf %1003, %944 : vector<8x128xf32>
    %cst_346 = arith.constant 3.000000e-05 : f32
    %1005 = vector.broadcast %cst_346 : f32 to vector<8x128xf32>
    %1006 = arith.mulf %1005, %1004 : vector<8x128xf32>
    %1007 = arith.mulf %1006, %984 : vector<8x128xf32>
    %1008 = arith.addf %1002, %1007 : vector<8x128xf32>
    %cst_347 = arith.constant 1.000000e+00 : f32
    %1009 = vector.broadcast %cst_347 : f32 to vector<8x128xf32>
    %1010 = arith.subf %1009, %952 : vector<8x128xf32>
    %cst_348 = arith.constant 3.3333333E-4 : f32
    %1011 = vector.broadcast %cst_348 : f32 to vector<8x128xf32>
    %1012 = arith.mulf %1011, %1010 : vector<8x128xf32>
    %1013 = arith.addf %952, %1012 : vector<8x128xf32>
    %cst_349 = arith.constant 9.99999974E-5 : f32
    %1014 = vector.broadcast %cst_349 : f32 to vector<8x128xf32>
    %1015 = arith.mulf %1014, %986 : vector<8x128xf32>
    %1016 = arith.subf %1013, %1015 : vector<8x128xf32>
    %cst_350 = arith.constant dense<0.000000e+00> : vector<8xf32>
    %1017 = vector.multi_reduction <add>, %984, %cst_350 [1] : vector<8x128xf32> to vector<8xf32>
    %1018 = vector.shape_cast %1017 : vector<8xf32> to vector<8x1xf32>
    %cst_351 = arith.constant 2.200000e+00 : f32
    %1019 = vector.broadcast %cst_351 : f32 to vector<8x1xf32>
    %1020 = arith.mulf %1019, %1018 : vector<8x1xf32>
    %1021 = arith.subf %1020, %960 : vector<8x1xf32>
    %cst_352 = arith.constant 1.250000e-02 : f32
    %1022 = vector.broadcast %cst_352 : f32 to vector<8x1xf32>
    %1023 = arith.mulf %1022, %1021 : vector<8x1xf32>
    %1024 = arith.addf %960, %1023 : vector<8x1xf32>
    %cst_353 = arith.constant 0.666666686 : f32
    %1025 = vector.broadcast %cst_353 : f32 to vector<8x1xf32>
    %1026 = arith.mulf %1024, %1025 : vector<8x1xf32>
    %cst_354 = arith.constant 0.000000e+00 : f32
    %1027 = vector.broadcast %cst_354 : f32 to vector<8x1xf32>
    %1028 = arith.maximumf %1026, %1027 : vector<8x1xf32>
    %1029 = math.absf %1026 : vector<8x1xf32>
    %cst_355 = arith.constant 0.000000e+00 : f32
    %1030 = vector.broadcast %cst_355 : f32 to vector<8x1xf32>
    %1031 = arith.subf %1030, %1029 : vector<8x1xf32>
    %1032 = math.exp %1031 : vector<8x1xf32>
    %1033 = math.log1p %1032 : vector<8x1xf32>
    %1034 = arith.addf %1028, %1033 : vector<8x1xf32>
    %cst_356 = arith.constant 1.500000e+00 : f32
    %1035 = vector.broadcast %cst_356 : f32 to vector<8x1xf32>
    %1036 = arith.mulf %1035, %1034 : vector<8x1xf32>
    %c0_357 = arith.constant 0 : index
    %c0_358 = arith.constant 0 : index
    %1037 = vector.load %arg2[%c0_357, %c0_358] : memref<1x128xf32, #tpu.memory_space<vmem>>, vector<1x128xf32>
    %1038 = vector.broadcast %1037 : vector<1x128xf32> to vector<8x128xf32>
    %1039 = arith.mulf %997, %1038 : vector<8x128xf32>
    %cst_359 = arith.constant dense<0.000000e+00> : vector<8xf32>
    %1040 = vector.multi_reduction <add>, %1039, %cst_359 [1] : vector<8x128xf32> to vector<8xf32>
    %1041 = vector.shape_cast %1040 : vector<8xf32> to vector<8x1xf32>
    %c0_360 = arith.constant 0 : index
    %c0_361 = arith.constant 0 : index
    %1042 = memref.load %arg3[%c0_360, %c0_361] : memref<1x1xf32, #tpu.memory_space<smem>>
    %1043 = vector.broadcast %1042 : f32 to vector<8x1xf32>
    %1044 = arith.addf %1041, %1043 : vector<8x1xf32>
    %c0_362 = arith.constant 0 : index
    %c0_363 = arith.constant 0 : index
    %1045 = vector.load %arg4[%c0_362, %c0_363] : memref<8x1xf32, #tpu.memory_space<vmem>>, vector<8x1xf32>
    tpu.vector_store %arg4[%c0_362, %c0_363], %1044 {strides = array<i32>} : memref<8x1xf32, #tpu.memory_space<vmem>>, vector<8x1xf32>,
    return
  }
}

</mosaic_0001>

<llo_original>
// kernel: tpu_custom_call.1
$region0: #{tpu_custom_call.1}
  #allocation0 [shape = 'u32[]', space=smem, size = 0x4, offset = 0x4, fixed_abs, tag = 'smem constant byte address 0x4 - core index']
  #allocation1 [shape = 'u32[144,128]{1,0:T(1,128)}', space=vmem, size = 0x12000, scoped, tag = 'internal scratch']
  #allocation2 [shape = 'f32[1,1]{1,0:T(1,128)S(6)}', space=smem, size = 0x200, scoped, tag = 'scoped memory for tpu_custom_call.1']
  %s0 = inlined_call_operand.hbm [shape: f32[8,128], index: 0, kind: input, shape index: {}]
  %s1 = inlined_call_operand.hbm [shape: f32[128,128], index: 1, kind: input, shape index: {}]
  %s2 = inlined_call_operand.vmem [shape: f32[1,128], index: 2, kind: input, shape index: {}]
  %s3 = inlined_call_operand.<no memory space> [shape: f32[1,1], index: 3, kind: input, shape index: {}]
  %s4 = inlined_call_operand.vmem [shape: f32[8,1], index: 4, kind: output, shape index: {}]
  %s5 = sld [smem:[#allocation0]]
  $region34: #{tpu_custom_call.1} parent=0
    _
  %s7 = ssub.s32 1, %s5
  %s8 = scalar_select 0, %s7, %s5
  %9 = sst [smem:[#allocation2]] %s3
  $region1: #{tpu_custom_call.1} parent=0
    #allocation3 [shape = 'u8[4096]{0}', space=vmem, size = 0x1000, scoped, tag = 'input window, operand 0, single buffered']
    #allocation4 [shape = 's32[1]{0}', space=sflag, size = 0x4, scoped, tag = 'scoped memory for tpu_custom_call.1']
    #allocation5 [shape = 'u8[65536]{0}', space=vmem, size = 0x10000, scoped, tag = 'input window, operand 1, single buffered']
    #allocation6 [shape = 's32[1]{0}', space=sflag, size = 0x4, scoped, tag = 'scoped memory for tpu_custom_call.1']
    %10 = vsyncpa [#allocation4], 0
    %11 = vsyncpa [#allocation6], 0
    // Predicated region
    $region2: #{tpu_custom_call.1} parent=1 // pred_check
      _
    $region3: #{tpu_custom_call.1} parent=1 // pred_check_branch
      %13 = sbr.rel (0) target = $region5
    $region4: #{tpu_custom_call.1} parent=1 // pred_region
      %s15 = ssub.s32 128, 128
      %16 = vsyncadd [#allocation4], %s15
      %s18 = sshll.u32 [#allocation3], 4
      %s19 = int_to_ptr.vmem [resolvable:$true] %s18
      %21 = dma.hbm_to_vmem [thread:$0]  %s0, 128, %s19, [#allocation4]
    $region5: #{tpu_custom_call.1} parent=1 // pred_fallthru
      _
    // Predicated region
    $region6: #{tpu_custom_call.1} parent=1 // pred_check
      _
    $region7: #{tpu_custom_call.1} parent=1 // pred_check_branch
      %23 = sbr.rel (0) target = $region9
    $region8: #{tpu_custom_call.1} parent=1 // pred_region
      %s25 = ssub.s32 2048, 2048
      %26 = vsyncadd [#allocation6], %s25
      %s27 = sshll.u32 [#allocation5], 4
      %s28 = int_to_ptr.vmem [resolvable:$true] %s27
      %33 = dma.hbm_to_vmem [thread:$0]  %s1, 2048, %s28, [#allocation6], 128, 128, 8
    $region9: #{tpu_custom_call.1} parent=1 // pred_fallthru
      _
    // Predicated region
    $region10: #{tpu_custom_call.1} parent=1 // pred_check
      _
    $region11: #{tpu_custom_call.1} parent=1 // pred_check_branch
      %35 = sbr.rel (0) target = $region13
    $region12: #{tpu_custom_call.1} parent=1 // pred_region
      _
    $region13: #{tpu_custom_call.1} parent=1 // pred_fallthru
      _
    // Predicated region
    $region14: #{tpu_custom_call.1} parent=1 // pred_check
      _
    $region15: #{tpu_custom_call.1} parent=1 // pred_check_branch
      %37 = sbr.rel (0) target = $region17
    $region16: #{tpu_custom_call.1} parent=1 // pred_region
      _
    $region17: #{tpu_custom_call.1} parent=1 // pred_fallthru
      _
    // Predicated region
    $region18: #{tpu_custom_call.1} parent=1 // pred_check
      _
    $region19: #{tpu_custom_call.1} parent=1 // pred_check_branch
      %39 = sbr.rel (0) target = $region21
    $region20: #{tpu_custom_call.1} parent=1 // pred_region
      %40 = dma.done [#allocation4], 128
    $region21: #{tpu_custom_call.1} parent=1 // pred_fallthru
      _
    // Predicated region
    $region22: #{tpu_custom_call.1} parent=1 // pred_check
      _
    $region23: #{tpu_custom_call.1} parent=1 // pred_check_branch
      %42 = sbr.rel (0) target = $region25
    $region24: #{tpu_custom_call.1} parent=1 // pred_region
      %43 = dma.done [#allocation6], 2048
    $region25: #{tpu_custom_call.1} parent=1 // pred_fallthru
      _
    %v44 = vld [vmem:[#allocation3] sm:$0xff]
    %v45 = vld [vmem:[#allocation5] sm:$0xff]
    %v46 = vld [vmem:[#allocation5 + $0x8] sm:$0xff]
    %v47 = vld [vmem:[#allocation5 + $0x10] sm:$0xff]
    %v48 = vld [vmem:[#allocation5 + $0x18] sm:$0xff]
    %v49 = vld [vmem:[#allocation5 + $0x20] sm:$0xff]
    %v50 = vld [vmem:[#allocation5 + $0x28] sm:$0xff]
    %v51 = vld [vmem:[#allocation5 + $0x30] sm:$0xff]
    %v52 = vld [vmem:[#allocation5 + $0x38] sm:$0xff]
    %v53 = vld [vmem:[#allocation5 + $0x40] sm:$0xff]
    %v54 = vld [vmem:[#allocation5 + $0x48] sm:$0xff]
    %v55 = vld [vmem:[#allocation5 + $0x50] sm:$0xff]
    %v56 = vld [vmem:[#allocation5 + $0x58] sm:$0xff]
    %v57 = vld [vmem:[#allocation5 + $0x60] sm:$0xff]
    %v58 = vld [vmem:[#allocation5 + $0x68] sm:$0xff]
    %v59 = vld [vmem:[#allocation5 + $0x70] sm:$0xff]
    %v60 = vld [vmem:[#allocation5 + $0x78] sm:$0xff]
    %v61 = vadd.f32 %v44, 8.0
    %62 = vmatprep.subr.mxu0 0.0
    %63 = vmatpush1.msra.mxu0 %v60
    %64 = vmatprep.subr.mxu0 0.0
    %65 = vmatpush1.msra.mxu0 %v59
    %66 = vmatprep.subr.mxu0 0.0
    %67 = vmatpush1.msra.mxu0 %v58
    %68 = vmatprep.subr.mxu0 0.0
    %69 = vmatpush1.msra.mxu0 %v57
    %70 = vmatprep.subr.mxu0 0.0
    %71 = vmatpush1.msra.mxu0 %v56
    %72 = vmatprep.subr.mxu0 0.0
    %73 = vmatpush1.msra.mxu0 %v55
    %74 = vmatprep.subr.mxu0 0.0
    %75 = vmatpush1.msra.mxu0 %v54
    %76 = vmatprep.subr.mxu0 0.0
    %77 = vmatpush1.msra.mxu0 %v53
    %78 = vmatprep.subr.mxu0 0.0
    %79 = vmatpush1.msra.mxu0 %v52
    %80 = vmatprep.subr.mxu0 0.0
    %81 = vmatpush1.msra.mxu0 %v51
    %82 = vmatprep.subr.mxu0 0.0
    %83 = vmatpush1.msra.mxu0 %v50
    %84 = vmatprep.subr.mxu0 0.0
    %85 = vmatpush1.msra.mxu0 %v49
    %86 = vmatprep.subr.mxu0 0.0
    %87 = vmatpush1.msra.mxu0 %v48
    %88 = vmatprep.subr.mxu0 0.0
    %89 = vmatpush1.msra.mxu0 %v47
    %90 = vmatprep.subr.mxu0 0.0
    %91 = vmatpush1.msra.mxu0 %v46
    %92 = vmatprep.subr.mxu0 0.0
    %93 = vmatpush1.msra.mxu0 %v45
    %94 = vmatprep.subr.mxu0 0.0
    %95 = vmatpush2.msra.mxu0 0.0
    %96 = vmatprep.subr.mxu0 0.0
    %97 = vmatpush2.msra.mxu0 0.0
    %98 = vmatprep.subr.mxu0 0.0
    %99 = vmatpush2.msra.mxu0 0.0
    %100 = vmatprep.subr.mxu0 0.0
    %101 = vmatpush2.msra.mxu0 0.0
    %102 = vmatprep.subr.mxu0 0.0
    %103 = vmatpush2.msra.mxu0 0.0
    %104 = vmatprep.subr.mxu0 0.0
    %105 = vmatpush2.msra.mxu0 0.0
    %106 = vmatprep.subr.mxu0 0.0
    %107 = vmatpush2.msra.mxu0 0.0
    %108 = vmatprep.subr.mxu0 0.0
    %109 = vmatpush2.msra.mxu0 0.0
    %110 = vmatprep.subr.mxu0 0.0
    %111 = vmatpush2.msra.mxu0 0.0
    %112 = vmatprep.subr.mxu0 0.0
    %113 = vmatpush2.msra.mxu0 0.0
    %114 = vmatprep.subr.mxu0 0.0
    %115 = vmatpush2.msra.mxu0 0.0
    %116 = vmatprep.subr.mxu0 0.0
    %117 = vmatpush2.msra.mxu0 0.0
    %118 = vmatprep.subr.mxu0 0.0
    %119 = vmatpush2.msra.mxu0 0.0
    %120 = vmatprep.subr.mxu0 0.0
    %121 = vmatpush2.msra.mxu0 0.0
    %122 = vmatprep.subr.mxu0 0.0
    %123 = vmatpush2.msra.mxu0 0.0
    %124 = vmatprep.subr.mxu0 0.0
    %125 = vmatpush2.msra.mxu0 0.0
    %126 = vmatprep.mubr.f32.mxu0 0.0
    %127 = vmatmul.mubr.f32.gmra.mxu0 0.31191623
    %v128 = vpop.f32.mrf.mxu0
    %v129 = vadd.f32 0.0, %v128
    %v130 = vpop.f32.mrf.mxu0
    %131 = vdwg.mxu0
    %v132 = vsub.f32 %v129, 1.1436929
    %v133 = vadd.f32 %v132, %v61
    %v134 = vmul.f32 %v133, 0.0125
    %v135 = vadd.f32 %v134, 0.0
    %136 = vadd.xlane.f32.xlu0 1.0397208
    %v137 = vpop.xlane.xlu0 %136
    %v138 = vmul.f32 %v137, 2.2
    %v139 = vmul.f32 %v138, 0.0125
    %v140 = vadd.f32 %v139, 0.0
    %v141 = vmul.f32 %v140, 0.6666667
    %v142 = vmax.f32 %v141, 0.0
    %v143 = vand.u32 2147483647, %v141
    %v144 = vsub.f32 0.0, %v143
    %v145 = vmul.f32 %v144, 1.442695
    %v146 = vpow.pop %v145
    %v147 = vadd.f32 %v146, 1.0
    %v148 = vlog2.pop %v147
    %v149 = vmul.f32 %v148, 0.6931472
    %v150 = vmul.f32 -0.5, %v146
    %v151 = vadd.f32 %v150, 1.0
    %v152 = vmul.f32 %v151, %v146
    %v153 = vand.u32 2147483647, %v146
    %vm154 = vcmp.lt.f32.partialorder %v153, 0.0004427343
    %v155 = vsel %vm154, %v152, %v149
    %v156 = vadd.f32 %v142, %v155
    %v157 = vmul.f32 %v156, 1.5
    %v158 = vmul.f32 %v135, 0.6666667
    %v159 = vmax.f32 %v158, 0.0
    %v160 = vand.u32 2147483647, %v158
    %v161 = vsub.f32 0.0, %v160
    %v162 = vmul.f32 %v161, 1.442695
    %v163 = vpow.pop %v162
    %v164 = vadd.f32 %v163, 1.0
    %v165 = vlog2.pop %v164
    %v166 = vmul.f32 %v165, 0.6931472
    %v167 = vmul.f32 -0.5, %v163
    %v168 = vadd.f32 %v167, 1.0
    %v169 = vmul.f32 %v168, %v163
    %v170 = vand.u32 2147483647, %v163
    %vm171 = vcmp.lt.f32.partialorder %v170, 0.0004427343
    %v172 = vsel %vm171, %v169, %v166
    %v173 = vadd.f32 %v159, %v172
    %v174 = vmul.f32 %v173, 1.5
    %v175 = vmul.f32 %v174, 0.3000125
    %176 = vmatprep.subr.mxu0 0.0
    %177 = vmatpush1.msra.mxu0 %v60
    %178 = vmatprep.subr.mxu0 0.0
    %179 = vmatpush1.msra.mxu0 %v59
    %180 = vmatprep.subr.mxu0 0.0
    %181 = vmatpush1.msra.mxu0 %v58
    %182 = vmatprep.subr.mxu0 0.0
    %183 = vmatpush1.msra.mxu0 %v57
    %184 = vmatprep.subr.mxu0 0.0
    %185 = vmatpush1.msra.mxu0 %v56
    %186 = vmatprep.subr.mxu0 0.0
    %187 = vmatpush1.msra.mxu0 %v55
    %188 = vmatprep.subr.mxu0 0.0
    %189 = vmatpush1.msra.mxu0 %v54
    %190 = vmatprep.subr.mxu0 0.0
    %191 = vmatpush1.msra.mxu0 %v53
    %192 = vmatprep.subr.mxu0 0.0
    %193 = vmatpush1.msra.mxu0 %v52
    %194 = vmatprep.subr.mxu0 0.0
    %195 = vmatpush1.msra.mxu0 %v51
    %196 = vmatprep.subr.mxu0 0.0
    %197 = vmatpush1.msra.mxu0 %v50
    %198 = vmatprep.subr.mxu0 0.0
    %199 = vmatpush1.msra.mxu0 %v49
    %200 = vmatprep.subr.mxu0 0.0
    %201 = vmatpush1.msra.mxu0 %v48
    %202 = vmatprep.subr.mxu0 0.0
    %203 = vmatpush1.msra.mxu0 %v47
    %204 = vmatprep.subr.mxu0 0.0
    %205 = vmatpush1.msra.mxu0 %v46
    %206 = vmatprep.subr.mxu0 0.0
    %207 = vmatpush1.msra.mxu0 %v45
    %208 = vmatprep.subr.mxu0 0.0
    %209 = vmatpush2.msra.mxu0 0.0
    %210 = vmatprep.subr.mxu0 0.0
    %211 = vmatpush2.msra.mxu0 0.0
    %212 = vmatprep.subr.mxu0 0.0
    %213 = vmatpush2.msra.mxu0 0.0
    %214 = vmatprep.subr.mxu0 0.0
    %215 = vmatpush2.msra.mxu0 0.0
    %216 = vmatprep.subr.mxu0 0.0
    %217 = vmatpush2.msra.mxu0 0.0
    %218 = vmatprep.subr.mxu0 0.0
    %219 = vmatpush2.msra.mxu0 0.0
    %220 = vmatprep.subr.mxu0 0.0
    %221 = vmatpush2.msra.mxu0 0.0
    %222 = vmatprep.subr.mxu0 0.0
    %223 = vmatpush2.msra.mxu0 0.0
    %224 = vmatprep.subr.mxu0 0.0
    %225 = vmatpush2.msra.mxu0 0.0
    %226 = vmatprep.subr.mxu0 0.0
    %227 = vmatpush2.msra.mxu0 0.0
    %228 = vmatprep.subr.mxu0 0.0
    %229 = vmatpush2.msra.mxu0 0.0
    %230 = vmatprep.subr.mxu0 0.0
    %231 = vmatpush2.msra.mxu0 0.0
    %232 = vmatprep.subr.mxu0 0.0
    %233 = vmatpush2.msra.mxu0 0.0
    %234 = vmatprep.subr.mxu0 0.0
    %235 = vmatpush2.msra.mxu0 0.0
    %236 = vmatprep.subr.mxu0 0.0
    %237 = vmatpush2.msra.mxu0 0.0
    %238 = vmatprep.subr.mxu0 0.0
    %239 = vmatpush2.msra.mxu0 0.0
    %240 = vmatprep.mubr.f32.mxu0 0.0
    %241 = vmatmul.mubr.f32.gmra.mxu0 %v175
    %v242 = vpop.f32.mrf.mxu0
    %v243 = vadd.f32 0.0, %v242
    %v244 = vpop.f32.mrf.mxu0
    %245 = vdwg.mxu0
    %v246 = vsub.f32 %v243, %v135
    %v247 = vmul.f32 %v157, 1.1
    %v248 = vsub.f32 %v246, %v247
    %v249 = vadd.f32 %v248, %v61
    %v250 = vmul.f32 %v249, 0.0125
    %v251 = vadd.f32 %v135, %v250
    %v252 = vmul.f32 %v174, 2.0999343e-05
    %v253 = vadd.f32 %v252, 0.30002186
    %v254 = vmul.f32 %v175, 0.0001
    %v255 = vsub.f32 0.9999688, %v254
    %256 = vadd.xlane.f32.xlu0 %v174
    %v257 = vpop.xlane.xlu0 %256
    %v258 = vmul.f32 %v257, 2.2
    %v259 = vsub.f32 %v258, %v140
    %v260 = vmul.f32 %v259, 0.0125
    %v261 = vadd.f32 %v140, %v260
    %v262 = vmul.f32 %v261, 0.6666667
    %v263 = vmax.f32 %v262, 0.0
    %v264 = vand.u32 2147483647, %v262
    %v265 = vsub.f32 0.0, %v264
    %v266 = vmul.f32 %v265, 1.442695
    %v267 = vpow.pop %v266
    %v268 = vadd.f32 %v267, 1.0
    %v269 = vlog2.pop %v268
    %v270 = vmul.f32 %v269, 0.6931472
    %v271 = vmul.f32 -0.5, %v267
    %v272 = vadd.f32 %v271, 1.0
    %v273 = vmul.f32 %v272, %v267
    %v274 = vand.u32 2147483647, %v267
    %vm275 = vcmp.lt.f32.partialorder %v274, 0.0004427343
    %v276 = vsel %vm275, %v273, %v270
    %v277 = vadd.f32 %v263, %v276
    %v278 = vmul.f32 %v277, 1.5
    %v279 = vmul.f32 %v251, 0.6666667
    %v280 = vmax.f32 %v279, 0.0
    %v281 = vand.u32 2147483647, %v279
    %v282 = vsub.f32 0.0, %v281
    %v283 = vmul.f32 %v282, 1.442695
    %v284 = vpow.pop %v283
    %v285 = vadd.f32 %v284, 1.0
    %v286 = vlog2.pop %v285
    %v287 = vmul.f32 %v286, 0.6931472
    %v288 = vmul.f32 -0.5, %v284
    %v289 = vadd.f32 %v288, 1.0
    %v290 = vmul.f32 %v289, %v284
    %v291 = vand.u32 2147483647, %v284
    %vm292 = vcmp.lt.f32.partialorder %v291, 0.0004427343
    %v293 = vsel %vm292, %v290, %v287
    %v294 = vadd.f32 %v280, %v293
    %v295 = vmul.f32 %v294, 1.5
    %v296 = vmul.f32 %v253, %v255
    %v297 = vmul.f32 %v296, %v295
    %298 = vmatprep.subr.mxu0 0.0
    %299 = vmatpush1.msra.mxu0 %v60
    %300 = vmatprep.subr.mxu0 0.0
    %301 = vmatpush1.msra.mxu0 %v59
    %302 = vmatprep.subr.mxu0 0.0
    %303 = vmatpush1.msra.mxu0 %v58
    %304 = vmatprep.subr.mxu0 0.0
    %305 = vmatpush1.msra.mxu0 %v57
    %306 = vmatprep.subr.mxu0 0.0
    %307 = vmatpush1.msra.mxu0 %v56
    %308 = vmatprep.subr.mxu0 0.0
    %309 = vmatpush1.msra.mxu0 %v55
    %310 = vmatprep.subr.mxu0 0.0
    %311 = vmatpush1.msra.mxu0 %v54
    %312 = vmatprep.subr.mxu0 0.0
    %313 = vmatpush1.msra.mxu0 %v53
    %314 = vmatprep.subr.mxu0 0.0
    %315 = vmatpush1.msra.mxu0 %v52
    %316 = vmatprep.subr.mxu0 0.0
    %317 = vmatpush1.msra.mxu0 %v51
    %318 = vmatprep.subr.mxu0 0.0
    %319 = vmatpush1.msra.mxu0 %v50
    %320 = vmatprep.subr.mxu0 0.0
    %321 = vmatpush1.msra.mxu0 %v49
    %322 = vmatprep.subr.mxu0 0.0
    %323 = vmatpush1.msra.mxu0 %v48
    %324 = vmatprep.subr.mxu0 0.0
    %325 = vmatpush1.msra.mxu0 %v47
    %326 = vmatprep.subr.mxu0 0.0
    %327 = vmatpush1.msra.mxu0 %v46
    %328 = vmatprep.subr.mxu0 0.0
    %329 = vmatpush1.msra.mxu0 %v45
    %330 = vmatprep.subr.mxu0 0.0
    %331 = vmatpush2.msra.mxu0 0.0
    %332 = vmatprep.subr.mxu0 0.0
    %333 = vmatpush2.msra.mxu0 0.0
    %334 = vmatprep.subr.mxu0 0.0
    %335 = vmatpush2.msra.mxu0 0.0
    %336 = vmatprep.subr.mxu0 0.0
    %337 = vmatpush2.msra.mxu0 0.0
    %338 = vmatprep.subr.mxu0 0.0
    %339 = vmatpush2.msra.mxu0 0.0
    %340 = vmatprep.subr.mxu0 0.0
    %341 = vmatpush2.msra.mxu0 0.0
    %342 = vmatprep.subr.mxu0 0.0
    %343 = vmatpush2.msra.mxu0 0.0
    %344 = vmatprep.subr.mxu0 0.0
    %345 = vmatpush2.msra.mxu0 0.0
    %346 = vmatprep.subr.mxu0 0.0
    %347 = vmatpush2.msra.mxu0 0.0
    %348 = vmatprep.subr.mxu0 0.0
    %349 = vmatpush2.msra.mxu0 0.0
    %350 = vmatprep.subr.mxu0 0.0
    %351 = vmatpush2.msra.mxu0 0.0
    %352 = vmatprep.subr.mxu0 0.0
    %353 = vmatpush2.msra.mxu0 0.0
    %354 = vmatprep.subr.mxu0 0.0
    %355 = vmatpush2.msra.mxu0 0.0
    %356 = vmatprep.subr.mxu0 0.0
    %357 = vmatpush2.msra.mxu0 0.0
    %358 = vmatprep.subr.mxu0 0.0
    %359 = vmatpush2.msra.mxu0 0.0
    %360 = vmatprep.subr.mxu0 0.0
    %361 = vmatpush2.msra.mxu0 0.0
    %362 = vmatprep.mubr.f32.mxu0 0.0
    %363 = vmatmul.mubr.f32.gmra.mxu0 %v297
    %v364 = vpop.f32.mrf.mxu0
    %v365 = vadd.f32 0.0, %v364
    %v366 = vpop.f32.mrf.mxu0
    %367 = vdwg.mxu0
    %v368 = vsub.f32 %v365, %v251
    %v369 = vmul.f32 %v278, 1.1
    %v370 = vsub.f32 %v368, %v369
    %v371 = vadd.f32 %v370, %v61
    %v372 = vmul.f32 %v371, 0.0125
    %v373 = vadd.f32 %v251, %v372
    %v374 = vsub.f32 0.3, %v253
    %v375 = vmul.f32 %v374, 6.666667e-05
    %v376 = vadd.f32 %v253, %v375
    %v377 = vsub.f32 1.0, %v253
    %v378 = vmul.f32 %v377, 3e-05
    %v379 = vmul.f32 %v378, %v295
    %v380 = vadd.f32 %v376, %v379
    %v381 = vsub.f32 1.0, %v255
    %v382 = vmul.f32 %v381, 0.00033333333
    %v383 = vadd.f32 %v255, %v382
    %v384 = vmul.f32 %v297, 0.0001
    %v385 = vsub.f32 %v383, %v384
    %386 = vadd.xlane.f32.xlu0 %v295
    %v387 = vpop.xlane.xlu0 %386
    %v388 = vmul.f32 %v387, 2.2
    %v389 = vsub.f32 %v388, %v261
    %v390 = vmul.f32 %v389, 0.0125
    %v391 = vadd.f32 %v261, %v390
    %v392 = vmul.f32 %v391, 0.6666667
    %v393 = vmax.f32 %v392, 0.0
    %v394 = vand.u32 2147483647, %v392
    %v395 = vsub.f32 0.0, %v394
    %v396 = vmul.f32 %v395, 1.442695
    %v397 = vpow.pop %v396
    %v398 = vadd.f32 %v397, 1.0
    %v399 = vlog2.pop %v398
    %v400 = vmul.f32 %v399, 0.6931472
    %v401 = vmul.f32 -0.5, %v397
    %v402 = vadd.f32 %v401, 1.0
    %v403 = vmul.f32 %v402, %v397
    %v404 = vand.u32 2147483647, %v397
    %vm405 = vcmp.lt.f32.partialorder %v404, 0.0004427343
    %v406 = vsel %vm405, %v403, %v400
    %v407 = vadd.f32 %v393, %v406
    %v408 = vmul.f32 %v407, 1.5
    %v409 = vmul.f32 %v373, 0.6666667
    %v410 = vmax.f32 %v409, 0.0
    %v411 = vand.u32 2147483647, %v409
    %v412 = vsub.f32 0.0, %v411
    %v413 = vmul.f32 %v412, 1.442695
    %v414 = vpow.pop %v413
    %v415 = vadd.f32 %v414, 1.0
    %v416 = vlog2.pop %v415
    %v417 = vmul.f32 %v416, 0.6931472
    %v418 = vmul.f32 -0.5, %v414
    %v419 = vadd.f32 %v418, 1.0
    %v420 = vmul.f32 %v419, %v414
    %v421 = vand.u32 2147483647, %v414
    %vm422 = vcmp.lt.f32.partialorder %v421, 0.0004427343
    %v423 = vsel %vm422, %v420, %v417
    %v424 = vadd.f32 %v410, %v423
    %v425 = vmul.f32 %v424, 1.5
    %v426 = vmul.f32 %v380, %v385
    %v427 = vmul.f32 %v426, %v425
    %428 = vmatprep.subr.mxu0 0.0
    %429 = vmatpush1.msra.mxu0 %v60
    %430 = vmatprep.subr.mxu0 0.0
    %431 = vmatpush1.msra.mxu0 %v59
    %432 = vmatprep.subr.mxu0 0.0
    %433 = vmatpush1.msra.mxu0 %v58
    %434 = vmatprep.subr.mxu0 0.0
    %435 = vmatpush1.msra.mxu0 %v57
    %436 = vmatprep.subr.mxu0 0.0
    %437 = vmatpush1.msra.mxu0 %v56
    %438 = vmatprep.subr.mxu0 0.0
    %439 = vmatpush1.msra.mxu0 %v55
    %440 = vmatprep.subr.mxu0 0.0
    %441 = vmatpush1.msra.mxu0 %v54
    %442 = vmatprep.subr.mxu0 0.0
    %443 = vmatpush1.msra.mxu0 %v53
    %444 = vmatprep.subr.mxu0 0.0
    %445 = vmatpush1.msra.mxu0 %v52
    %446 = vmatprep.subr.mxu0 0.0
    %447 = vmatpush1.msra.mxu0 %v51
    %448 = vmatprep.subr.mxu0 0.0
    %449 = vmatpush1.msra.mxu0 %v50
    %450 = vmatprep.subr.mxu0 0.0
    %451 = vmatpush1.msra.mxu0 %v49
    %452 = vmatprep.subr.mxu0 0.0
    %453 = vmatpush1.msra.mxu0 %v48
    %454 = vmatprep.subr.mxu0 0.0
    %455 = vmatpush1.msra.mxu0 %v47
    %456 = vmatprep.subr.mxu0 0.0
    %457 = vmatpush1.msra.mxu0 %v46
    %458 = vmatprep.subr.mxu0 0.0
    %459 = vmatpush1.msra.mxu0 %v45
    %460 = vmatprep.subr.mxu0 0.0
    %461 = vmatpush2.msra.mxu0 0.0
    %462 = vmatprep.subr.mxu0 0.0
    %463 = vmatpush2.msra.mxu0 0.0
    %464 = vmatprep.subr.mxu0 0.0
    %465 = vmatpush2.msra.mxu0 0.0
    %466 = vmatprep.subr.mxu0 0.0
    %467 = vmatpush2.msra.mxu0 0.0
    %468 = vmatprep.subr.mxu0 0.0
    %469 = vmatpush2.msra.mxu0 0.0
    %470 = vmatprep.subr.mxu0 0.0
    %471 = vmatpush2.msra.mxu0 0.0
    %472 = vmatprep.subr.mxu0 0.0
    %473 = vmatpush2.msra.mxu0 0.0
    %474 = vmatprep.subr.mxu0 0.0
    %475 = vmatpush2.msra.mxu0 0.0
    %476 = vmatprep.subr.mxu0 0.0
    %477 = vmatpush2.msra.mxu0 0.0
    %478 = vmatprep.subr.mxu0 0.0
    %479 = vmatpush2.msra.mxu0 0.0
    %480 = vmatprep.subr.mxu0 0.0
    %481 = vmatpush2.msra.mxu0 0.0
    %482 = vmatprep.subr.mxu0 0.0
    %483 = vmatpush2.msra.mxu0 0.0
    %484 = vmatprep.subr.mxu0 0.0
    %485 = vmatpush2.msra.mxu0 0.0
    %486 = vmatprep.subr.mxu0 0.0
    %487 = vmatpush2.msra.mxu0 0.0
    %488 = vmatprep.subr.mxu0 0.0
    %489 = vmatpush2.msra.mxu0 0.0
    %490 = vmatprep.subr.mxu0 0.0
    %491 = vmatpush2.msra.mxu0 0.0
    %492 = vmatprep.mubr.f32.mxu0 0.0
    %493 = vmatmul.mubr.f32.gmra.mxu0 %v427
    %v494 = vpop.f32.mrf.mxu0
    %v495 = vadd.f32 0.0, %v494
    %v496 = vpop.f32.mrf.mxu0
    %497 = vdwg.mxu0
    %v498 = vsub.f32 %v495, %v373
    %v499 = vmul.f32 %v408, 1.1
    %v500 = vsub.f32 %v498, %v499
    %v501 = vadd.f32 %v500, %v61
    %v502 = vmul.f32 %v501, 0.0125
    %v503 = vadd.f32 %v373, %v502
    %v504 = vsub.f32 0.3, %v380
    %v505 = vmul.f32 %v504, 6.666667e-05
    %v506 = vadd.f32 %v380, %v505
    %v507 = vsub.f32 1.0, %v380
    %v508 = vmul.f32 %v507, 3e-05
    %v509 = vmul.f32 %v508, %v425
    %v510 = vadd.f32 %v506, %v509
    %v511 = vsub.f32 1.0, %v385
    %v512 = vmul.f32 %v511, 0.00033333333
    %v513 = vadd.f32 %v385, %v512
    %v514 = vmul.f32 %v427, 0.0001
    %v515 = vsub.f32 %v513, %v514
    %516 = vadd.xlane.f32.xlu0 %v425
    %v517 = vpop.xlane.xlu0 %516
    %v518 = vmul.f32 %v517, 2.2
    %v519 = vsub.f32 %v518, %v391
    %v520 = vmul.f32 %v519, 0.0125
    %v521 = vadd.f32 %v391, %v520
    %v522 = vmul.f32 %v521, 0.6666667
    %v523 = vmax.f32 %v522, 0.0
    %v524 = vand.u32 2147483647, %v522
    %v525 = vsub.f32 0.0, %v524
    %v526 = vmul.f32 %v525, 1.442695
    %v527 = vpow.pop %v526
    %v528 = vadd.f32 %v527, 1.0
    %v529 = vlog2.pop %v528
    %v530 = vmul.f32 %v529, 0.6931472
    %v531 = vmul.f32 -0.5, %v527
    %v532 = vadd.f32 %v531, 1.0
    %v533 = vmul.f32 %v532, %v527
    %v534 = vand.u32 2147483647, %v527
    %vm535 = vcmp.lt.f32.partialorder %v534, 0.0004427343
    %v536 = vsel %vm535, %v533, %v530
    %v537 = vadd.f32 %v523, %v536
    %v538 = vmul.f32 %v537, 1.5
    %v539 = vmul.f32 %v503, 0.6666667
    %v540 = vmax.f32 %v539, 0.0
    %v541 = vand.u32 2147483647, %v539
    %v542 = vsub.f32 0.0, %v541
    %v543 = vmul.f32 %v542, 1.442695
    %v544 = vpow.pop %v543
    %v545 = vadd.f32 %v544, 1.0
    %v546 = vlog2.pop %v545
    %v547 = vmul.f32 %v546, 0.6931472
    %v548 = vmul.f32 -0.5, %v544
    %v549 = vadd.f32 %v548, 1.0
    %v550 = vmul.f32 %v549, %v544
    %v551 = vand.u32 2147483647, %v544
    %vm552 = vcmp.lt.f32.partialorder %v551, 0.0004427343
    %v553 = vsel %vm552, %v550, %v547
    %v554 = vadd.f32 %v540, %v553
    %v555 = vmul.f32 %v554, 1.5
    %v556 = vmul.f32 %v510, %v515
    %v557 = vmul.f32 %v556, %v555
    %558 = vmatprep.subr.mxu0 0.0
    %559 = vmatpush1.msra.mxu0 %v60
    %560 = vmatprep.subr.mxu0 0.0
    %561 = vmatpush1.msra.mxu0 %v59
    %562 = vmatprep.subr.mxu0 0.0
    %563 = vmatpush1.msra.mxu0 %v58
    %564 = vmatprep.subr.mxu0 0.0
    %565 = vmatpush1.msra.mxu0 %v57
    %566 = vmatprep.subr.mxu0 0.0
    %567 = vmatpush1.msra.mxu0 %v56
    %568 = vmatprep.subr.mxu0 0.0
    %569 = vmatpush1.msra.mxu0 %v55
    %570 = vmatprep.subr.mxu0 0.0
    %571 = vmatpush1.msra.mxu0 %v54
    %572 = vmatprep.subr.mxu0 0.0
    %573 = vmatpush1.msra.mxu0 %v53
    %574 = vmatprep.subr.mxu0 0.0
    %575 = vmatpush1.msra.mxu0 %v52
    %576 = vmatprep.subr.mxu0 0.0
    %577 = vmatpush1.msra.mxu0 %v51
    %578 = vmatprep.subr.mxu0 0.0
    %579 = vmatpush1.msra.mxu0 %v50
    %580 = vmatprep.subr.mxu0 0.0
    %581 = vmatpush1.msra.mxu0 %v49
    %582 = vmatprep.subr.mxu0 0.0
    %583 = vmatpush1.msra.mxu0 %v48
    %584 = vmatprep.subr.mxu0 0.0
    %585 = vmatpush1.msra.mxu0 %v47
    %586 = vmatprep.subr.mxu0 0.0
    %587 = vmatpush1.msra.mxu0 %v46
    %588 = vmatprep.subr.mxu0 0.0
    %589 = vmatpush1.msra.mxu0 %v45
    %590 = vmatprep.subr.mxu0 0.0
    %591 = vmatpush2.msra.mxu0 0.0
    %592 = vmatprep.subr.mxu0 0.0
    %593 = vmatpush2.msra.mxu0 0.0
    %594 = vmatprep.subr.mxu0 0.0
    %595 = vmatpush2.msra.mxu0 0.0
    %596 = vmatprep.subr.mxu0 0.0
    %597 = vmatpush2.msra.mxu0 0.0
    %598 = vmatprep.subr.mxu0 0.0
    %599 = vmatpush2.msra.mxu0 0.0
    %600 = vmatprep.subr.mxu0 0.0
    %601 = vmatpush2.msra.mxu0 0.0
    %602 = vmatprep.subr.mxu0 0.0
    %603 = vmatpush2.msra.mxu0 0.0
    %604 = vmatprep.subr.mxu0 0.0
    %605 = vmatpush2.msra.mxu0 0.0
    %606 = vmatprep.subr.mxu0 0.0
    %607 = vmatpush2.msra.mxu0 0.0
    %608 = vmatprep.subr.mxu0 0.0
    %609 = vmatpush2.msra.mxu0 0.0
    %610 = vmatprep.subr.mxu0 0.0
    %611 = vmatpush2.msra.mxu0 0.0
    %612 = vmatprep.subr.mxu0 0.0
    %613 = vmatpush2.msra.mxu0 0.0
    %614 = vmatprep.subr.mxu0 0.0
    %615 = vmatpush2.msra.mxu0 0.0
    %616 = vmatprep.subr.mxu0 0.0
    %617 = vmatpush2.msra.mxu0 0.0
    %618 = vmatprep.subr.mxu0 0.0
    %619 = vmatpush2.msra.mxu0 0.0
    %620 = vmatprep.subr.mxu0 0.0
    %621 = vmatpush2.msra.mxu0 0.0
    %622 = vmatprep.mubr.f32.mxu0 0.0
    %623 = vmatmul.mubr.f32.gmra.mxu0 %v557
    %v624 = vpop.f32.mrf.mxu0
    %v625 = vadd.f32 0.0, %v624
    %v626 = vpop.f32.mrf.mxu0
    %627 = vdwg.mxu0
    %v628 = vsub.f32 %v625, %v503
    %v629 = vmul.f32 %v538, 1.1
    %v630 = vsub.f32 %v628, %v629
    %v631 = vadd.f32 %v630, %v61
    %v632 = vmul.f32 %v631, 0.0125
    %v633 = vadd.f32 %v503, %v632
    %v634 = vsub.f32 0.3, %v510
    %v635 = vmul.f32 %v634, 6.666667e-05
    %v636 = vadd.f32 %v510, %v635
    %v637 = vsub.f32 1.0, %v510
    %v638 = vmul.f32 %v637, 3e-05
    %v639 = vmul.f32 %v638, %v555
    %v640 = vadd.f32 %v636, %v639
    %v641 = vsub.f32 1.0, %v515
    %v642 = vmul.f32 %v641, 0.00033333333
    %v643 = vadd.f32 %v515, %v642
    %v644 = vmul.f32 %v557, 0.0001
    %v645 = vsub.f32 %v643, %v644
    %646 = vadd.xlane.f32.xlu0 %v555
    %v647 = vpop.xlane.xlu0 %646
    %v648 = vmul.f32 %v647, 2.2
    %v649 = vsub.f32 %v648, %v521
    %v650 = vmul.f32 %v649, 0.0125
    %v651 = vadd.f32 %v521, %v650
    %v652 = vmul.f32 %v651, 0.6666667
    %v653 = vmax.f32 %v652, 0.0
    %v654 = vand.u32 2147483647, %v652
    %v655 = vsub.f32 0.0, %v654
    %v656 = vmul.f32 %v655, 1.442695
    %v657 = vpow.pop %v656
    %v658 = vadd.f32 %v657, 1.0
    %v659 = vlog2.pop %v658
    %v660 = vmul.f32 %v659, 0.6931472
    %v661 = vmul.f32 -0.5, %v657
    %v662 = vadd.f32 %v661, 1.0
    %v663 = vmul.f32 %v662, %v657
    %v664 = vand.u32 2147483647, %v657
    %vm665 = vcmp.lt.f32.partialorder %v664, 0.0004427343
    %v666 = vsel %vm665, %v663, %v660
    %v667 = vadd.f32 %v653, %v666
    %v668 = vmul.f32 %v667, 1.5
    %v669 = vmul.f32 %v633, 0.6666667
    %v670 = vmax.f32 %v669, 0.0
    %v671 = vand.u32 2147483647, %v669
    %v672 = vsub.f32 0.0, %v671
    %v673 = vmul.f32 %v672, 1.442695
    %v674 = vpow.pop %v673
    %v675 = vadd.f32 %v674, 1.0
    %v676 = vlog2.pop %v675
    %v677 = vmul.f32 %v676, 0.6931472
    %v678 = vmul.f32 -0.5, %v674
    %v679 = vadd.f32 %v678, 1.0
    %v680 = vmul.f32 %v679, %v674
    %v681 = vand.u32 2147483647, %v674
    %vm682 = vcmp.lt.f32.partialorder %v681, 0.0004427343
    %v683 = vsel %vm682, %v680, %v677
    %v684 = vadd.f32 %v670, %v683
    %v685 = vmul.f32 %v684, 1.5
    %v686 = vmul.f32 %v640, %v645
    %v687 = vmul.f32 %v686, %v685
    %688 = vmatprep.subr.mxu0 0.0
    %689 = vmatpush1.msra.mxu0 %v60
    %690 = vmatprep.subr.mxu0 0.0
    %691 = vmatpush1.msra.mxu0 %v59
    %692 = vmatprep.subr.mxu0 0.0
    %693 = vmatpush1.msra.mxu0 %v58
    %694 = vmatprep.subr.mxu0 0.0
    %695 = vmatpush1.msra.mxu0 %v57
    %696 = vmatprep.subr.mxu0 0.0
    %697 = vmatpush1.msra.mxu0 %v56
    %698 = vmatprep.subr.mxu0 0.0
    %699 = vmatpush1.msra.mxu0 %v55
    %700 = vmatprep.subr.mxu0 0.0
    %701 = vmatpush1.msra.mxu0 %v54
    %702 = vmatprep.subr.mxu0 0.0
    %703 = vmatpush1.msra.mxu0 %v53
    %704 = vmatprep.subr.mxu0 0.0
    %705 = vmatpush1.msra.mxu0 %v52
    %706 = vmatprep.subr.mxu0 0.0
    %707 = vmatpush1.msra.mxu0 %v51
    %708 = vmatprep.subr.mxu0 0.0
    %709 = vmatpush1.msra.mxu0 %v50
    %710 = vmatprep.subr.mxu0 0.0
    %711 = vmatpush1.msra.mxu0 %v49
    %712 = vmatprep.subr.mxu0 0.0
    %713 = vmatpush1.msra.mxu0 %v48
    %714 = vmatprep.subr.mxu0 0.0
    %715 = vmatpush1.msra.mxu0 %v47
    %716 = vmatprep.subr.mxu0 0.0
    %717 = vmatpush1.msra.mxu0 %v46
    %718 = vmatprep.subr.mxu0 0.0
    %719 = vmatpush1.msra.mxu0 %v45
    %720 = vmatprep.subr.mxu0 0.0
    %721 = vmatpush2.msra.mxu0 0.0
    %722 = vmatprep.subr.mxu0 0.0
    %723 = vmatpush2.msra.mxu0 0.0
    %724 = vmatprep.subr.mxu0 0.0
    %725 = vmatpush2.msra.mxu0 0.0
    %726 = vmatprep.subr.mxu0 0.0
    %727 = vmatpush2.msra.mxu0 0.0
    %728 = vmatprep.subr.mxu0 0.0
    %729 = vmatpush2.msra.mxu0 0.0
    %730 = vmatprep.subr.mxu0 0.0
    %731 = vmatpush2.msra.mxu0 0.0
    %732 = vmatprep.subr.mxu0 0.0
    %733 = vmatpush2.msra.mxu0 0.0
    %734 = vmatprep.subr.mxu0 0.0
    %735 = vmatpush2.msra.mxu0 0.0
    %736 = vmatprep.subr.mxu0 0.0
    %737 = vmatpush2.msra.mxu0 0.0
    %738 = vmatprep.subr.mxu0 0.0
    %739 = vmatpush2.msra.mxu0 0.0
    %740 = vmatprep.subr.mxu0 0.0
    %741 = vmatpush2.msra.mxu0 0.0
    %742 = vmatprep.subr.mxu0 0.0
    %743 = vmatpush2.msra.mxu0 0.0
    %744 = vmatprep.subr.mxu0 0.0
    %745 = vmatpush2.msra.mxu0 0.0
    %746 = vmatprep.subr.mxu0 0.0
    %747 = vmatpush2.msra.mxu0 0.0
    %748 = vmatprep.subr.mxu0 0.0
    %749 = vmatpush2.msra.mxu0 0.0
    %750 = vmatprep.subr.mxu0 0.0
    %751 = vmatpush2.msra.mxu0 0.0
    %752 = vmatprep.mubr.f32.mxu0 0.0
    %753 = vmatmul.mubr.f32.gmra.mxu0 %v687
    %v754 = vpop.f32.mrf.mxu0
    %v755 = vadd.f32 0.0, %v754
    %v756 = vpop.f32.mrf.mxu0
    %757 = vdwg.mxu0
    %v758 = vsub.f32 %v755, %v633
    %v759 = vmul.f32 %v668, 1.1
    %v760 = vsub.f32 %v758, %v759
    %v761 = vadd.f32 %v760, %v61
    %v762 = vmul.f32 %v761, 0.0125
    %v763 = vadd.f32 %v633, %v762
    %v764 = vsub.f32 0.3, %v640
    %v765 = vmul.f32 %v764, 6.666667e-05
    %v766 = vadd.f32 %v640, %v765
    %v767 = vsub.f32 1.0, %v640
    %v768 = vmul.f32 %v767, 3e-05
    %v769 = vmul.f32 %v768, %v685
    %v770 = vadd.f32 %v766, %v769
    %v771 = vsub.f32 1.0, %v645
    %v772 = vmul.f32 %v771, 0.00033333333
    %v773 = vadd.f32 %v645, %v772
    %v774 = vmul.f32 %v687, 0.0001
    %v775 = vsub.f32 %v773, %v774
    %776 = vadd.xlane.f32.xlu0 %v685
    %v777 = vpop.xlane.xlu0 %776
    %v778 = vmul.f32 %v777, 2.2
    %v779 = vsub.f32 %v778, %v651
    %v780 = vmul.f32 %v779, 0.0125
    %v781 = vadd.f32 %v651, %v780
    %v782 = vmul.f32 %v781, 0.6666667
    %v783 = vmax.f32 %v782, 0.0
    %v784 = vand.u32 2147483647, %v782
    %v785 = vsub.f32 0.0, %v784
    %v786 = vmul.f32 %v785, 1.442695
    %v787 = vpow.pop %v786
    %v788 = vadd.f32 %v787, 1.0
    %v789 = vlog2.pop %v788
    %v790 = vmul.f32 %v789, 0.6931472
    %v791 = vmul.f32 -0.5, %v787
    %v792 = vadd.f32 %v791, 1.0
    %v793 = vmul.f32 %v792, %v787
    %v794 = vand.u32 2147483647, %v787
    %vm795 = vcmp.lt.f32.partialorder %v794, 0.0004427343
    %v796 = vsel %vm795, %v793, %v790
    %v797 = vadd.f32 %v783, %v796
    %v798 = vmul.f32 %v797, 1.5
    %v799 = vmul.f32 %v763, 0.6666667
    %v800 = vmax.f32 %v799, 0.0
    %v801 = vand.u32 2147483647, %v799
    %v802 = vsub.f32 0.0, %v801
    %v803 = vmul.f32 %v802, 1.442695
    %v804 = vpow.pop %v803
    %v805 = vadd.f32 %v804, 1.0
    %v806 = vlog2.pop %v805
    %v807 = vmul.f32 %v806, 0.6931472
    %v808 = vmul.f32 -0.5, %v804
    %v809 = vadd.f32 %v808, 1.0
    %v810 = vmul.f32 %v809, %v804
    %v811 = vand.u32 2147483647, %v804
    %vm812 = vcmp.lt.f32.partialorder %v811, 0.0004427343
    %v813 = vsel %vm812, %v810, %v807
    %v814 = vadd.f32 %v800, %v813
    %v815 = vmul.f32 %v814, 1.5
    %v816 = vmul.f32 %v770, %v775
    %v817 = vmul.f32 %v816, %v815
    %818 = vmatprep.subr.mxu0 0.0
    %819 = vmatpush1.msra.mxu0 %v60
    %820 = vmatprep.subr.mxu0 0.0
    %821 = vmatpush1.msra.mxu0 %v59
    %822 = vmatprep.subr.mxu0 0.0
    %823 = vmatpush1.msra.mxu0 %v58
    %824 = vmatprep.subr.mxu0 0.0
    %825 = vmatpush1.msra.mxu0 %v57
    %826 = vmatprep.subr.mxu0 0.0
    %827 = vmatpush1.msra.mxu0 %v56
    %828 = vmatprep.subr.mxu0 0.0
    %829 = vmatpush1.msra.mxu0 %v55
    %830 = vmatprep.subr.mxu0 0.0
    %831 = vmatpush1.msra.mxu0 %v54
    %832 = vmatprep.subr.mxu0 0.0
    %833 = vmatpush1.msra.mxu0 %v53
    %834 = vmatprep.subr.mxu0 0.0
    %835 = vmatpush1.msra.mxu0 %v52
    %836 = vmatprep.subr.mxu0 0.0
    %837 = vmatpush1.msra.mxu0 %v51
    %838 = vmatprep.subr.mxu0 0.0
    %839 = vmatpush1.msra.mxu0 %v50
    %840 = vmatprep.subr.mxu0 0.0
    %841 = vmatpush1.msra.mxu0 %v49
    %842 = vmatprep.subr.mxu0 0.0
    %843 = vmatpush1.msra.mxu0 %v48
    %844 = vmatprep.subr.mxu0 0.0
    %845 = vmatpush1.msra.mxu0 %v47
    %846 = vmatprep.subr.mxu0 0.0
    %847 = vmatpush1.msra.mxu0 %v46
    %848 = vmatprep.subr.mxu0 0.0
    %849 = vmatpush1.msra.mxu0 %v45
    %850 = vmatprep.subr.mxu0 0.0
    %851 = vmatpush2.msra.mxu0 0.0
    %852 = vmatprep.subr.mxu0 0.0
    %853 = vmatpush2.msra.mxu0 0.0
    %854 = vmatprep.subr.mxu0 0.0
    %855 = vmatpush2.msra.mxu0 0.0
    %856 = vmatprep.subr.mxu0 0.0
    %857 = vmatpush2.msra.mxu0 0.0
    %858 = vmatprep.subr.mxu0 0.0
    %859 = vmatpush2.msra.mxu0 0.0
    %860 = vmatprep.subr.mxu0 0.0
    %861 = vmatpush2.msra.mxu0 0.0
    %862 = vmatprep.subr.mxu0 0.0
    %863 = vmatpush2.msra.mxu0 0.0
    %864 = vmatprep.subr.mxu0 0.0
    %865 = vmatpush2.msra.mxu0 0.0
    %866 = vmatprep.subr.mxu0 0.0
    %867 = vmatpush2.msra.mxu0 0.0
    %868 = vmatprep.subr.mxu0 0.0
    %869 = vmatpush2.msra.mxu0 0.0
    %870 = vmatprep.subr.mxu0 0.0
    %871 = vmatpush2.msra.mxu0 0.0
    %872 = vmatprep.subr.mxu0 0.0
    %873 = vmatpush2.msra.mxu0 0.0
    %874 = vmatprep.subr.mxu0 0.0
    %875 = vmatpush2.msra.mxu0 0.0
    %876 = vmatprep.subr.mxu0 0.0
    %877 = vmatpush2.msra.mxu0 0.0
    %878 = vmatprep.subr.mxu0 0.0
    %879 = vmatpush2.msra.mxu0 0.0
    %880 = vmatprep.subr.mxu0 0.0
    %881 = vmatpush2.msra.mxu0 0.0
    %882 = vmatprep.mubr.f32.mxu0 0.0
    %883 = vmatmul.mubr.f32.gmra.mxu0 %v817
    %v884 = vpop.f32.mrf.mxu0
    %v885 = vadd.f32 0.0, %v884
    %v886 = vpop.f32.mrf.mxu0
    %887 = vdwg.mxu0
    %v888 = vsub.f32 %v885, %v763
    %v889 = vmul.f32 %v798, 1.1
    %v890 = vsub.f32 %v888, %v889
    %v891 = vadd.f32 %v890, %v61
    %v892 = vmul.f32 %v891, 0.0125
    %v893 = vadd.f32 %v763, %v892
    %v894 = vsub.f32 0.3, %v770
    %v895 = vmul.f32 %v894, 6.666667e-05
    %v896 = vadd.f32 %v770, %v895
    %v897 = vsub.f32 1.0, %v770
    %v898 = vmul.f32 %v897, 3e-05
    %v899 = vmul.f32 %v898, %v815
    %v900 = vadd.f32 %v896, %v899
    %v901 = vsub.f32 1.0, %v775
    %v902 = vmul.f32 %v901, 0.00033333333
    %v903 = vadd.f32 %v775, %v902
    %v904 = vmul.f32 %v817, 0.0001
    %v905 = vsub.f32 %v903, %v904
    %906 = vadd.xlane.f32.xlu0 %v815
    %v907 = vpop.xlane.xlu0 %906
    %v908 = vmul.f32 %v907, 2.2
    %v909 = vsub.f32 %v908, %v781
    %v910 = vmul.f32 %v909, 0.0125
    %v911 = vadd.f32 %v781, %v910
    %v912 = vmul.f32 %v911, 0.6666667
    %v913 = vmax.f32 %v912, 0.0
    %v914 = vand.u32 2147483647, %v912
    %v915 = vsub.f32 0.0, %v914
    %v916 = vmul.f32 %v915, 1.442695
    %v917 = vpow.pop %v916
    %v918 = vadd.f32 %v917, 1.0
    %v919 = vlog2.pop %v918
    %v920 = vmul.f32 %v919, 0.6931472
    %v921 = vmul.f32 -0.5, %v917
    %v922 = vadd.f32 %v921, 1.0
    %v923 = vmul.f32 %v922, %v917
    %v924 = vand.u32 2147483647, %v917
    %vm925 = vcmp.lt.f32.partialorder %v924, 0.0004427343
    %v926 = vsel %vm925, %v923, %v920
    %v927 = vadd.f32 %v913, %v926
    %v928 = vmul.f32 %v927, 1.5
    %v929 = vmul.f32 %v893, 0.6666667
    %v930 = vmax.f32 %v929, 0.0
    %v931 = vand.u32 2147483647, %v929
    %v932 = vsub.f32 0.0, %v931
    %v933 = vmul.f32 %v932, 1.442695
    %v934 = vpow.pop %v933
    %v935 = vadd.f32 %v934, 1.0
    %v936 = vlog2.pop %v935
    %v937 = vmul.f32 %v936, 0.6931472
    %v938 = vmul.f32 -0.5, %v934
    %v939 = vadd.f32 %v938, 1.0
    %v940 = vmul.f32 %v939, %v934
    %v941 = vand.u32 2147483647, %v934
    %vm942 = vcmp.lt.f32.partialorder %v941, 0.0004427343
    %v943 = vsel %vm942, %v940, %v937
    %v944 = vadd.f32 %v930, %v943
    %v945 = vmul.f32 %v944, 1.5
    %v946 = vmul.f32 %v900, %v905
    %v947 = vmul.f32 %v946, %v945
    %948 = vmatprep.subr.mxu0 0.0
    %949 = vmatpush1.msra.mxu0 %v60
    %950 = vmatprep.subr.mxu0 0.0
    %951 = vmatpush1.msra.mxu0 %v59
    %952 = vmatprep.subr.mxu0 0.0
    %953 = vmatpush1.msra.mxu0 %v58
    %954 = vmatprep.subr.mxu0 0.0
    %955 = vmatpush1.msra.mxu0 %v57
    %956 = vmatprep.subr.mxu0 0.0
    %957 = vmatpush1.msra.mxu0 %v56
    %958 = vmatprep.subr.mxu0 0.0
    %959 = vmatpush1.msra.mxu0 %v55
    %960 = vmatprep.subr.mxu0 0.0
    %961 = vmatpush1.msra.mxu0 %v54
    %962 = vmatprep.subr.mxu0 0.0
    %963 = vmatpush1.msra.mxu0 %v53
    %964 = vmatprep.subr.mxu0 0.0
    %965 = vmatpush1.msra.mxu0 %v52
    %966 = vmatprep.subr.mxu0 0.0
    %967 = vmatpush1.msra.mxu0 %v51
    %968 = vmatprep.subr.mxu0 0.0
    %969 = vmatpush1.msra.mxu0 %v50
    %970 = vmatprep.subr.mxu0 0.0
    %971 = vmatpush1.msra.mxu0 %v49
    %972 = vmatprep.subr.mxu0 0.0
    %973 = vmatpush1.msra.mxu0 %v48
    %974 = vmatprep.subr.mxu0 0.0
    %975 = vmatpush1.msra.mxu0 %v47
    %976 = vmatprep.subr.mxu0 0.0
    %977 = vmatpush1.msra.mxu0 %v46
    %978 = vmatprep.subr.mxu0 0.0
    %979 = vmatpush1.msra.mxu0 %v45
    %980 = vmatprep.subr.mxu0 0.0
    %981 = vmatpush2.msra.mxu0 0.0
    %982 = vmatprep.subr.mxu0 0.0
    %983 = vmatpush2.msra.mxu0 0.0
    %984 = vmatprep.subr.mxu0 0.0
    %985 = vmatpush2.msra.mxu0 0.0
    %986 = vmatprep.subr.mxu0 0.0
    %987 = vmatpush2.msra.mxu0 0.0
    %988 = vmatprep.subr.mxu0 0.0
    %989 = vmatpush2.msra.mxu0 0.0
    %990 = vmatprep.subr.mxu0 0.0
    %991 = vmatpush2.msra.mxu0 0.0
    %992 = vmatprep.subr.mxu0 0.0
    %993 = vmatpush2.msra.mxu0 0.0
    %994 = vmatprep.subr.mxu0 0.0
    %995 = vmatpush2.msra.mxu0 0.0
    %996 = vmatprep.subr.mxu0 0.0
    %997 = vmatpush2.msra.mxu0 0.0
    %998 = vmatprep.subr.mxu0 0.0
    %999 = vmatpush2.msra.mxu0 0.0
    %1000 = vmatprep.subr.mxu0 0.0
    %1001 = vmatpush2.msra.mxu0 0.0
    %1002 = vmatprep.subr.mxu0 0.0
    %1003 = vmatpush2.msra.mxu0 0.0
    %1004 = vmatprep.subr.mxu0 0.0
    %1005 = vmatpush2.msra.mxu0 0.0
    %1006 = vmatprep.subr.mxu0 0.0
    %1007 = vmatpush2.msra.mxu0 0.0
    %1008 = vmatprep.subr.mxu0 0.0
    %1009 = vmatpush2.msra.mxu0 0.0
    %1010 = vmatprep.subr.mxu0 0.0
    %1011 = vmatpush2.msra.mxu0 0.0
    %1012 = vmatprep.mubr.f32.mxu0 0.0
    %1013 = vmatmul.mubr.f32.gmra.mxu0 %v947
    %v1014 = vpop.f32.mrf.mxu0
    %v1015 = vadd.f32 0.0, %v1014
    %v1016 = vpop.f32.mrf.mxu0
    %1017 = vdwg.mxu0
    %v1018 = vsub.f32 %v1015, %v893
    %v1019 = vmul.f32 %v928, 1.1
    %v1020 = vsub.f32 %v1018, %v1019
    %v1021 = vadd.f32 %v1020, %v61
    %v1022 = vmul.f32 %v1021, 0.0125
    %v1023 = vadd.f32 %v893, %v1022
    %v1024 = vsub.f32 0.3, %v900
    %v1025 = vmul.f32 %v1024, 6.666667e-05
    %v1026 = vadd.f32 %v900, %v1025
    %v1027 = vsub.f32 1.0, %v900
    %v1028 = vmul.f32 %v1027, 3e-05
    %v1029 = vmul.f32 %v1028, %v945
    %v1030 = vadd.f32 %v1026, %v1029
    %v1031 = vsub.f32 1.0, %v905
    %v1032 = vmul.f32 %v1031, 0.00033333333
    %v1033 = vadd.f32 %v905, %v1032
    %v1034 = vmul.f32 %v947, 0.0001
    %v1035 = vsub.f32 %v1033, %v1034
    %1036 = vadd.xlane.f32.xlu0 %v945
    %v1037 = vpop.xlane.xlu0 %1036
    %v1038 = vmul.f32 %v1037, 2.2
    %v1039 = vsub.f32 %v1038, %v911
    %v1040 = vmul.f32 %v1039, 0.0125
    %v1041 = vadd.f32 %v911, %v1040
    %v1042 = vmul.f32 %v1041, 0.6666667
    %v1043 = vmax.f32 %v1042, 0.0
    %v1044 = vand.u32 2147483647, %v1042
    %v1045 = vsub.f32 0.0, %v1044
    %v1046 = vmul.f32 %v1045, 1.442695
    %v1047 = vpow.pop %v1046
    %v1048 = vadd.f32 %v1047, 1.0
    %v1049 = vlog2.pop %v1048
    %v1050 = vmul.f32 %v1049, 0.6931472
    %v1051 = vmul.f32 -0.5, %v1047
    %v1052 = vadd.f32 %v1051, 1.0
    %v1053 = vmul.f32 %v1052, %v1047
    %v1054 = vand.u32 2147483647, %v1047
    %vm1055 = vcmp.lt.f32.partialorder %v1054, 0.0004427343
    %v1056 = vsel %vm1055, %v1053, %v1050
    %v1057 = vadd.f32 %v1043, %v1056
    %v1058 = vmul.f32 %v1057, 1.5
    %v1059 = vmul.f32 %v1023, 0.6666667
    %v1060 = vmax.f32 %v1059, 0.0
    %v1061 = vand.u32 2147483647, %v1059
    %v1062 = vsub.f32 0.0, %v1061
    %v1063 = vmul.f32 %v1062, 1.442695
    %v1064 = vpow.pop %v1063
    %v1065 = vadd.f32 %v1064, 1.0
    %v1066 = vlog2.pop %v1065
    %v1067 = vmul.f32 %v1066, 0.6931472
    %v1068 = vmul.f32 -0.5, %v1064
    %v1069 = vadd.f32 %v1068, 1.0
    %v1070 = vmul.f32 %v1069, %v1064
    %v1071 = vand.u32 2147483647, %v1064
    %vm1072 = vcmp.lt.f32.partialorder %v1071, 0.0004427343
    %v1073 = vsel %vm1072, %v1070, %v1067
    %v1074 = vadd.f32 %v1060, %v1073
    %v1075 = vmul.f32 %v1074, 1.5
    %v1076 = vmul.f32 %v1030, %v1035
    %v1077 = vmul.f32 %v1076, %v1075
    %1078 = vmatprep.subr.mxu0 0.0
    %1079 = vmatpush1.msra.mxu0 %v60
    %1080 = vmatprep.subr.mxu0 0.0
    %1081 = vmatpush1.msra.mxu0 %v59
    %1082 = vmatprep.subr.mxu0 0.0
    %1083 = vmatpush1.msra.mxu0 %v58
    %1084 = vmatprep.subr.mxu0 0.0
    %1085 = vmatpush1.msra.mxu0 %v57
    %1086 = vmatprep.subr.mxu0 0.0
    %1087 = vmatpush1.msra.mxu0 %v56
    %1088 = vmatprep.subr.mxu0 0.0
    %1089 = vmatpush1.msra.mxu0 %v55
    %1090 = vmatprep.subr.mxu0 0.0
    %1091 = vmatpush1.msra.mxu0 %v54
    %1092 = vmatprep.subr.mxu0 0.0
    %1093 = vmatpush1.msra.mxu0 %v53
    %1094 = vmatprep.subr.mxu0 0.0
    %1095 = vmatpush1.msra.mxu0 %v52
    %1096 = vmatprep.subr.mxu0 0.0
    %1097 = vmatpush1.msra.mxu0 %v51
    %1098 = vmatprep.subr.mxu0 0.0
    %1099 = vmatpush1.msra.mxu0 %v50
    %1100 = vmatprep.subr.mxu0 0.0
    %1101 = vmatpush1.msra.mxu0 %v49
    %1102 = vmatprep.subr.mxu0 0.0
    %1103 = vmatpush1.msra.mxu0 %v48
    %1104 = vmatprep.subr.mxu0 0.0
    %1105 = vmatpush1.msra.mxu0 %v47
    %1106 = vmatprep.subr.mxu0 0.0
    %1107 = vmatpush1.msra.mxu0 %v46
    %1108 = vmatprep.subr.mxu0 0.0
    %1109 = vmatpush1.msra.mxu0 %v45
    %1110 = vmatprep.subr.mxu0 0.0
    %1111 = vmatpush2.msra.mxu0 0.0
    %1112 = vmatprep.subr.mxu0 0.0
    %1113 = vmatpush2.msra.mxu0 0.0
    %1114 = vmatprep.subr.mxu0 0.0
    %1115 = vmatpush2.msra.mxu0 0.0
    %1116 = vmatprep.subr.mxu0 0.0
    %1117 = vmatpush2.msra.mxu0 0.0
    %1118 = vmatprep.subr.mxu0 0.0
    %1119 = vmatpush2.msra.mxu0 0.0
    %1120 = vmatprep.subr.mxu0 0.0
    %1121 = vmatpush2.msra.mxu0 0.0
    %1122 = vmatprep.subr.mxu0 0.0
    %1123 = vmatpush2.msra.mxu0 0.0
    %1124 = vmatprep.subr.mxu0 0.0
    %1125 = vmatpush2.msra.mxu0 0.0
    %1126 = vmatprep.subr.mxu0 0.0
    %1127 = vmatpush2.msra.mxu0 0.0
    %1128 = vmatprep.subr.mxu0 0.0
    %1129 = vmatpush2.msra.mxu0 0.0
    %1130 = vmatprep.subr.mxu0 0.0
    %1131 = vmatpush2.msra.mxu0 0.0
    %1132 = vmatprep.subr.mxu0 0.0
    %1133 = vmatpush2.msra.mxu0 0.0
    %1134 = vmatprep.subr.mxu0 0.0
    %1135 = vmatpush2.msra.mxu0 0.0
    %1136 = vmatprep.subr.mxu0 0.0
    %1137 = vmatpush2.msra.mxu0 0.0
    %1138 = vmatprep.subr.mxu0 0.0
    %1139 = vmatpush2.msra.mxu0 0.0
    %1140 = vmatprep.subr.mxu0 0.0
    %1141 = vmatpush2.msra.mxu0 0.0
    %1142 = vmatprep.mubr.f32.mxu0 0.0
    %1143 = vmatmul.mubr.f32.gmra.mxu0 %v1077
    %v1144 = vpop.f32.mrf.mxu0
    %v1145 = vadd.f32 0.0, %v1144
    %v1146 = vpop.f32.mrf.mxu0
    %1147 = vdwg.mxu0
    %v1148 = vsub.f32 %v1145, %v1023
    %v1149 = vmul.f32 %v1058, 1.1
    %v1150 = vsub.f32 %v1148, %v1149
    %v1151 = vadd.f32 %v1150, 8.0
    %v1152 = vmul.f32 %v1151, 0.0125
    %v1153 = vadd.f32 %v1023, %v1152
    %v1154 = vsub.f32 0.3, %v1030
    %v1155 = vmul.f32 %v1154, 6.666667e-05
    %v1156 = vadd.f32 %v1030, %v1155
    %v1157 = vsub.f32 1.0, %v1030
    %v1158 = vmul.f32 %v1157, 3e-05
    %v1159 = vmul.f32 %v1158, %v1075
    %v1160 = vadd.f32 %v1156, %v1159
    %v1161 = vsub.f32 1.0, %v1035
    %v1162 = vmul.f32 %v1161, 0.00033333333
    %v1163 = vadd.f32 %v1035, %v1162
    %v1164 = vmul.f32 %v1077, 0.0001
    %v1165 = vsub.f32 %v1163, %v1164
    %1166 = vadd.xlane.f32.xlu0 %v1075
    %v1167 = vpop.xlane.xlu0 %1166
    %v1168 = vmul.f32 %v1167, 2.2
    %v1169 = vsub.f32 %v1168, %v1041
    %v1170 = vmul.f32 %v1169, 0.0125
    %v1171 = vadd.f32 %v1041, %v1170
    %v1172 = vmul.f32 %v1171, 0.6666667
    %v1173 = vmax.f32 %v1172, 0.0
    %v1174 = vand.u32 2147483647, %v1172
    %v1175 = vsub.f32 0.0, %v1174
    %v1176 = vmul.f32 %v1175, 1.442695
    %v1177 = vpow.pop %v1176
    %v1178 = vadd.f32 %v1177, 1.0
    %v1179 = vlog2.pop %v1178
    %v1180 = vmul.f32 %v1179, 0.6931472
    %v1181 = vmul.f32 -0.5, %v1177
    %v1182 = vadd.f32 %v1181, 1.0
    %v1183 = vmul.f32 %v1182, %v1177
    %v1184 = vand.u32 2147483647, %v1177
    %vm1185 = vcmp.lt.f32.partialorder %v1184, 0.0004427343
    %v1186 = vsel %vm1185, %v1183, %v1180
    %v1187 = vadd.f32 %v1173, %v1186
    %v1188 = vmul.f32 %v1187, 1.5
    %v1189 = vmul.f32 %v1153, 0.6666667
    %v1190 = vmax.f32 %v1189, 0.0
    %v1191 = vand.u32 2147483647, %v1189
    %v1192 = vsub.f32 0.0, %v1191
    %v1193 = vmul.f32 %v1192, 1.442695
    %v1194 = vpow.pop %v1193
    %v1195 = vadd.f32 %v1194, 1.0
    %v1196 = vlog2.pop %v1195
    %v1197 = vmul.f32 %v1196, 0.6931472
    %v1198 = vmul.f32 -0.5, %v1194
    %v1199 = vadd.f32 %v1198, 1.0
    %v1200 = vmul.f32 %v1199, %v1194
    %v1201 = vand.u32 2147483647, %v1194
    %vm1202 = vcmp.lt.f32.partialorder %v1201, 0.0004427343
    %v1203 = vsel %vm1202, %v1200, %v1197
    %v1204 = vadd.f32 %v1190, %v1203
    %v1205 = vmul.f32 %v1204, 1.5
    %v1206 = vmul.f32 %v1160, %v1165
    %v1207 = vmul.f32 %v1206, %v1205
    %1208 = vmatprep.subr.mxu0 0.0
    %1209 = vmatpush1.msra.mxu0 %v60
    %1210 = vmatprep.subr.mxu0 0.0
    %1211 = vmatpush1.msra.mxu0 %v59
    %1212 = vmatprep.subr.mxu0 0.0
    %1213 = vmatpush1.msra.mxu0 %v58
    %1214 = vmatprep.subr.mxu0 0.0
    %1215 = vmatpush1.msra.mxu0 %v57
    %1216 = vmatprep.subr.mxu0 0.0
    %1217 = vmatpush1.msra.mxu0 %v56
    %1218 = vmatprep.subr.mxu0 0.0
    %1219 = vmatpush1.msra.mxu0 %v55
    %1220 = vmatprep.subr.mxu0 0.0
    %1221 = vmatpush1.msra.mxu0 %v54
    %1222 = vmatprep.subr.mxu0 0.0
    %1223 = vmatpush1.msra.mxu0 %v53
    %1224 = vmatprep.subr.mxu0 0.0
    %1225 = vmatpush1.msra.mxu0 %v52
    %1226 = vmatprep.subr.mxu0 0.0
    %1227 = vmatpush1.msra.mxu0 %v51
    %1228 = vmatprep.subr.mxu0 0.0
    %1229 = vmatpush1.msra.mxu0 %v50
    %1230 = vmatprep.subr.mxu0 0.0
    %1231 = vmatpush1.msra.mxu0 %v49
    %1232 = vmatprep.subr.mxu0 0.0
    %1233 = vmatpush1.msra.mxu0 %v48
    %1234 = vmatprep.subr.mxu0 0.0
    %1235 = vmatpush1.msra.mxu0 %v47
    %1236 = vmatprep.subr.mxu0 0.0
    %1237 = vmatpush1.msra.mxu0 %v46
    %1238 = vmatprep.subr.mxu0 0.0
    %1239 = vmatpush1.msra.mxu0 %v45
    %1240 = vmatprep.subr.mxu0 0.0
    %1241 = vmatpush2.msra.mxu0 0.0
    %1242 = vmatprep.subr.mxu0 0.0
    %1243 = vmatpush2.msra.mxu0 0.0
    %1244 = vmatprep.subr.mxu0 0.0
    %1245 = vmatpush2.msra.mxu0 0.0
    %1246 = vmatprep.subr.mxu0 0.0
    %1247 = vmatpush2.msra.mxu0 0.0
    %1248 = vmatprep.subr.mxu0 0.0
    %1249 = vmatpush2.msra.mxu0 0.0
    %1250 = vmatprep.subr.mxu0 0.0
    %1251 = vmatpush2.msra.mxu0 0.0
    %1252 = vmatprep.subr.mxu0 0.0
    %1253 = vmatpush2.msra.mxu0 0.0
    %1254 = vmatprep.subr.mxu0 0.0
    %1255 = vmatpush2.msra.mxu0 0.0
    %1256 = vmatprep.subr.mxu0 0.0
    %1257 = vmatpush2.msra.mxu0 0.0
    %1258 = vmatprep.subr.mxu0 0.0
    %1259 = vmatpush2.msra.mxu0 0.0
    %1260 = vmatprep.subr.mxu0 0.0
    %1261 = vmatpush2.msra.mxu0 0.0
    %1262 = vmatprep.subr.mxu0 0.0
    %1263 = vmatpush2.msra.mxu0 0.0
    %1264 = vmatprep.subr.mxu0 0.0
    %1265 = vmatpush2.msra.mxu0 0.0
    %1266 = vmatprep.subr.mxu0 0.0
    %1267 = vmatpush2.msra.mxu0 0.0
    %1268 = vmatprep.subr.mxu0 0.0
    %1269 = vmatpush2.msra.mxu0 0.0
    %1270 = vmatprep.subr.mxu0 0.0
    %1271 = vmatpush2.msra.mxu0 0.0
    %1272 = vmatprep.mubr.f32.mxu0 0.0
    %1273 = vmatmul.mubr.f32.gmra.mxu0 %v1207
    %v1274 = vpop.f32.mrf.mxu0
    %v1275 = vadd.f32 0.0, %v1274
    %v1276 = vpop.f32.mrf.mxu0
    %1277 = vdwg.mxu0
    %v1278 = vsub.f32 %v1275, %v1153
    %v1279 = vmul.f32 %v1188, 1.1
    %v1280 = vsub.f32 %v1278, %v1279
    %v1281 = vadd.f32 %v1280, 8.0
    %v1282 = vmul.f32 %v1281, 0.0125
    %v1283 = vadd.f32 %v1153, %v1282
    %v1284 = vsub.f32 0.3, %v1160
    %v1285 = vmul.f32 %v1284, 6.666667e-05
    %v1286 = vadd.f32 %v1160, %v1285
    %v1287 = vsub.f32 1.0, %v1160
    %v1288 = vmul.f32 %v1287, 3e-05
    %v1289 = vmul.f32 %v1288, %v1205
    %v1290 = vadd.f32 %v1286, %v1289
    %v1291 = vsub.f32 1.0, %v1165
    %v1292 = vmul.f32 %v1291, 0.00033333333
    %v1293 = vadd.f32 %v1165, %v1292
    %v1294 = vmul.f32 %v1207, 0.0001
    %v1295 = vsub.f32 %v1293, %v1294
    %1296 = vadd.xlane.f32.xlu0 %v1205
    %v1297 = vpop.xlane.xlu0 %1296
    %v1298 = vmul.f32 %v1297, 2.2
    %v1299 = vsub.f32 %v1298, %v1171
    %v1300 = vmul.f32 %v1299, 0.0125
    %v1301 = vadd.f32 %v1171, %v1300
    %v1302 = vmul.f32 %v1301, 0.6666667
    %v1303 = vmax.f32 %v1302, 0.0
    %v1304 = vand.u32 2147483647, %v1302
    %v1305 = vsub.f32 0.0, %v1304
    %v1306 = vmul.f32 %v1305, 1.442695
    %v1307 = vpow.pop %v1306
    %v1308 = vadd.f32 %v1307, 1.0
    %v1309 = vlog2.pop %v1308
    %v1310 = vmul.f32 %v1309, 0.6931472
    %v1311 = vmul.f32 -0.5, %v1307
    %v1312 = vadd.f32 %v1311, 1.0
    %v1313 = vmul.f32 %v1312, %v1307
    %v1314 = vand.u32 2147483647, %v1307
    %vm1315 = vcmp.lt.f32.partialorder %v1314, 0.0004427343
    %v1316 = vsel %vm1315, %v1313, %v1310
    %v1317 = vadd.f32 %v1303, %v1316
    %v1318 = vmul.f32 %v1317, 1.5
    %v1319 = vmul.f32 %v1283, 0.6666667
    %v1320 = vmax.f32 %v1319, 0.0
    %v1321 = vand.u32 2147483647, %v1319
    %v1322 = vsub.f32 0.0, %v1321
    %v1323 = vmul.f32 %v1322, 1.442695
    %v1324 = vpow.pop %v1323
    %v1325 = vadd.f32 %v1324, 1.0
    %v1326 = vlog2.pop %v1325
    %v1327 = vmul.f32 %v1326, 0.6931472
    %v1328 = vmul.f32 -0.5, %v1324
    %v1329 = vadd.f32 %v1328, 1.0
    %v1330 = vmul.f32 %v1329, %v1324
    %v1331 = vand.u32 2147483647, %v1324
    %vm1332 = vcmp.lt.f32.partialorder %v1331, 0.0004427343
    %v1333 = vsel %vm1332, %v1330, %v1327
    %v1334 = vadd.f32 %v1320, %v1333
    %v1335 = vmul.f32 %v1334, 1.5
    %v1336 = vmul.f32 %v1290, %v1295
    %v1337 = vmul.f32 %v1336, %v1335
    %1338 = vmatprep.subr.mxu0 0.0
    %1339 = vmatpush1.msra.mxu0 %v60
    %1340 = vmatprep.subr.mxu0 0.0
    %1341 = vmatpush1.msra.mxu0 %v59
    %1342 = vmatprep.subr.mxu0 0.0
    %1343 = vmatpush1.msra.mxu0 %v58
    %1344 = vmatprep.subr.mxu0 0.0
    %1345 = vmatpush1.msra.mxu0 %v57
    %1346 = vmatprep.subr.mxu0 0.0
    %1347 = vmatpush1.msra.mxu0 %v56
    %1348 = vmatprep.subr.mxu0 0.0
    %1349 = vmatpush1.msra.mxu0 %v55
    %1350 = vmatprep.subr.mxu0 0.0
    %1351 = vmatpush1.msra.mxu0 %v54
    %1352 = vmatprep.subr.mxu0 0.0
    %1353 = vmatpush1.msra.mxu0 %v53
    %1354 = vmatprep.subr.mxu0 0.0
    %1355 = vmatpush1.msra.mxu0 %v52
    %1356 = vmatprep.subr.mxu0 0.0
    %1357 = vmatpush1.msra.mxu0 %v51
    %1358 = vmatprep.subr.mxu0 0.0
    %1359 = vmatpush1.msra.mxu0 %v50
    %1360 = vmatprep.subr.mxu0 0.0
    %1361 = vmatpush1.msra.mxu0 %v49
    %1362 = vmatprep.subr.mxu0 0.0
    %1363 = vmatpush1.msra.mxu0 %v48
    %1364 = vmatprep.subr.mxu0 0.0
    %1365 = vmatpush1.msra.mxu0 %v47
    %1366 = vmatprep.subr.mxu0 0.0
    %1367 = vmatpush1.msra.mxu0 %v46
    %1368 = vmatprep.subr.mxu0 0.0
    %1369 = vmatpush1.msra.mxu0 %v45
    %1370 = vmatprep.subr.mxu0 0.0
    %1371 = vmatpush2.msra.mxu0 0.0
    %1372 = vmatprep.subr.mxu0 0.0
    %1373 = vmatpush2.msra.mxu0 0.0
    %1374 = vmatprep.subr.mxu0 0.0
    %1375 = vmatpush2.msra.mxu0 0.0
    %1376 = vmatprep.subr.mxu0 0.0
    %1377 = vmatpush2.msra.mxu0 0.0
    %1378 = vmatprep.subr.mxu0 0.0
    %1379 = vmatpush2.msra.mxu0 0.0
    %1380 = vmatprep.subr.mxu0 0.0
    %1381 = vmatpush2.msra.mxu0 0.0
    %1382 = vmatprep.subr.mxu0 0.0
    %1383 = vmatpush2.msra.mxu0 0.0
    %1384 = vmatprep.subr.mxu0 0.0
    %1385 = vmatpush2.msra.mxu0 0.0
    %1386 = vmatprep.subr.mxu0 0.0
    %1387 = vmatpush2.msra.mxu0 0.0
    %1388 = vmatprep.subr.mxu0 0.0
    %1389 = vmatpush2.msra.mxu0 0.0
    %1390 = vmatprep.subr.mxu0 0.0
    %1391 = vmatpush2.msra.mxu0 0.0
    %1392 = vmatprep.subr.mxu0 0.0
    %1393 = vmatpush2.msra.mxu0 0.0
    %1394 = vmatprep.subr.mxu0 0.0
    %1395 = vmatpush2.msra.mxu0 0.0
    %1396 = vmatprep.subr.mxu0 0.0
    %1397 = vmatpush2.msra.mxu0 0.0
    %1398 = vmatprep.subr.mxu0 0.0
    %1399 = vmatpush2.msra.mxu0 0.0
    %1400 = vmatprep.subr.mxu0 0.0
    %1401 = vmatpush2.msra.mxu0 0.0
    %1402 = vmatprep.mubr.f32.mxu0 0.0
    %1403 = vmatmul.mubr.f32.gmra.mxu0 %v1337
    %v1404 = vpop.f32.mrf.mxu0
    %v1405 = vadd.f32 0.0, %v1404
    %v1406 = vpop.f32.mrf.mxu0
    %1407 = vdwg.mxu0
    %v1408 = vsub.f32 %v1405, %v1283
    %v1409 = vmul.f32 %v1318, 1.1
    %v1410 = vsub.f32 %v1408, %v1409
    %v1411 = vadd.f32 %v1410, 8.0
    %v1412 = vmul.f32 %v1411, 0.0125
    %v1413 = vadd.f32 %v1283, %v1412
    %v1414 = vsub.f32 0.3, %v1290
    %v1415 = vmul.f32 %v1414, 6.666667e-05
    %v1416 = vadd.f32 %v1290, %v1415
    %v1417 = vsub.f32 1.0, %v1290
    %v1418 = vmul.f32 %v1417, 3e-05
    %v1419 = vmul.f32 %v1418, %v1335
    %v1420 = vadd.f32 %v1416, %v1419
    %v1421 = vsub.f32 1.0, %v1295
    %v1422 = vmul.f32 %v1421, 0.00033333333
    %v1423 = vadd.f32 %v1295, %v1422
    %v1424 = vmul.f32 %v1337, 0.0001
    %v1425 = vsub.f32 %v1423, %v1424
    %1426 = vadd.xlane.f32.xlu0 %v1335
    %v1427 = vpop.xlane.xlu0 %1426
    %v1428 = vmul.f32 %v1427, 2.2
    %v1429 = vsub.f32 %v1428, %v1301
    %v1430 = vmul.f32 %v1429, 0.0125
    %v1431 = vadd.f32 %v1301, %v1430
    %v1432 = vmul.f32 %v1431, 0.6666667
    %v1433 = vmax.f32 %v1432, 0.0
    %v1434 = vand.u32 2147483647, %v1432
    %v1435 = vsub.f32 0.0, %v1434
    %v1436 = vmul.f32 %v1435, 1.442695
    %v1437 = vpow.pop %v1436
    %v1438 = vadd.f32 %v1437, 1.0
    %v1439 = vlog2.pop %v1438
    %v1440 = vmul.f32 %v1439, 0.6931472
    %v1441 = vmul.f32 -0.5, %v1437
    %v1442 = vadd.f32 %v1441, 1.0
    %v1443 = vmul.f32 %v1442, %v1437
    %v1444 = vand.u32 2147483647, %v1437
    %vm1445 = vcmp.lt.f32.partialorder %v1444, 0.0004427343
    %v1446 = vsel %vm1445, %v1443, %v1440
    %v1447 = vadd.f32 %v1433, %v1446
    %v1448 = vmul.f32 %v1447, 1.5
    %v1449 = vmul.f32 %v1413, 0.6666667
    %v1450 = vmax.f32 %v1449, 0.0
    %v1451 = vand.u32 2147483647, %v1449
    %v1452 = vsub.f32 0.0, %v1451
    %v1453 = vmul.f32 %v1452, 1.442695
    %v1454 = vpow.pop %v1453
    %v1455 = vadd.f32 %v1454, 1.0
    %v1456 = vlog2.pop %v1455
    %v1457 = vmul.f32 %v1456, 0.6931472
    %v1458 = vmul.f32 -0.5, %v1454
    %v1459 = vadd.f32 %v1458, 1.0
    %v1460 = vmul.f32 %v1459, %v1454
    %v1461 = vand.u32 2147483647, %v1454
    %vm1462 = vcmp.lt.f32.partialorder %v1461, 0.0004427343
    %v1463 = vsel %vm1462, %v1460, %v1457
    %v1464 = vadd.f32 %v1450, %v1463
    %v1465 = vmul.f32 %v1464, 1.5
    %v1466 = vmul.f32 %v1420, %v1425
    %v1467 = vmul.f32 %v1466, %v1465
    %1468 = vmatprep.subr.mxu0 0.0
    %1469 = vmatpush1.msra.mxu0 %v60
    %1470 = vmatprep.subr.mxu0 0.0
    %1471 = vmatpush1.msra.mxu0 %v59
    %1472 = vmatprep.subr.mxu0 0.0
    %1473 = vmatpush1.msra.mxu0 %v58
    %1474 = vmatprep.subr.mxu0 0.0
    %1475 = vmatpush1.msra.mxu0 %v57
    %1476 = vmatprep.subr.mxu0 0.0
    %1477 = vmatpush1.msra.mxu0 %v56
    %1478 = vmatprep.subr.mxu0 0.0
    %1479 = vmatpush1.msra.mxu0 %v55
    %1480 = vmatprep.subr.mxu0 0.0
    %1481 = vmatpush1.msra.mxu0 %v54
    %1482 = vmatprep.subr.mxu0 0.0
    %1483 = vmatpush1.msra.mxu0 %v53
    %1484 = vmatprep.subr.mxu0 0.0
    %1485 = vmatpush1.msra.mxu0 %v52
    %1486 = vmatprep.subr.mxu0 0.0
    %1487 = vmatpush1.msra.mxu0 %v51
    %1488 = vmatprep.subr.mxu0 0.0
    %1489 = vmatpush1.msra.mxu0 %v50
    %1490 = vmatprep.subr.mxu0 0.0
    %1491 = vmatpush1.msra.mxu0 %v49
    %1492 = vmatprep.subr.mxu0 0.0
    %1493 = vmatpush1.msra.mxu0 %v48
    %1494 = vmatprep.subr.mxu0 0.0
    %1495 = vmatpush1.msra.mxu0 %v47
    %1496 = vmatprep.subr.mxu0 0.0
    %1497 = vmatpush1.msra.mxu0 %v46
    %1498 = vmatprep.subr.mxu0 0.0
    %1499 = vmatpush1.msra.mxu0 %v45
    %1500 = vmatprep.subr.mxu0 0.0
    %1501 = vmatpush2.msra.mxu0 0.0
    %1502 = vmatprep.subr.mxu0 0.0
    %1503 = vmatpush2.msra.mxu0 0.0
    %1504 = vmatprep.subr.mxu0 0.0
    %1505 = vmatpush2.msra.mxu0 0.0
    %1506 = vmatprep.subr.mxu0 0.0
    %1507 = vmatpush2.msra.mxu0 0.0
    %1508 = vmatprep.subr.mxu0 0.0
    %1509 = vmatpush2.msra.mxu0 0.0
    %1510 = vmatprep.subr.mxu0 0.0
    %1511 = vmatpush2.msra.mxu0 0.0
    %1512 = vmatprep.subr.mxu0 0.0
    %1513 = vmatpush2.msra.mxu0 0.0
    %1514 = vmatprep.subr.mxu0 0.0
    %1515 = vmatpush2.msra.mxu0 0.0
    %1516 = vmatprep.subr.mxu0 0.0
    %1517 = vmatpush2.msra.mxu0 0.0
    %1518 = vmatprep.subr.mxu0 0.0
    %1519 = vmatpush2.msra.mxu0 0.0
    %1520 = vmatprep.subr.mxu0 0.0
    %1521 = vmatpush2.msra.mxu0 0.0
    %1522 = vmatprep.subr.mxu0 0.0
    %1523 = vmatpush2.msra.mxu0 0.0
    %1524 = vmatprep.subr.mxu0 0.0
    %1525 = vmatpush2.msra.mxu0 0.0
    %1526 = vmatprep.subr.mxu0 0.0
    %1527 = vmatpush2.msra.mxu0 0.0
    %1528 = vmatprep.subr.mxu0 0.0
    %1529 = vmatpush2.msra.mxu0 0.0
    %1530 = vmatprep.subr.mxu0 0.0
    %1531 = vmatpush2.msra.mxu0 0.0
    %1532 = vmatprep.mubr.f32.mxu0 0.0
    %1533 = vmatmul.mubr.f32.gmra.mxu0 %v1467
    %v1534 = vpop.f32.mrf.mxu0
    %v1535 = vadd.f32 0.0, %v1534
    %v1536 = vpop.f32.mrf.mxu0
    %1537 = vdwg.mxu0
    %v1538 = vsub.f32 %v1535, %v1413
    %v1539 = vmul.f32 %v1448, 1.1
    %v1540 = vsub.f32 %v1538, %v1539
    %v1541 = vadd.f32 %v1540, 8.0
    %v1542 = vmul.f32 %v1541, 0.0125
    %v1543 = vadd.f32 %v1413, %v1542
    %v1544 = vsub.f32 0.3, %v1420
    %v1545 = vmul.f32 %v1544, 6.666667e-05
    %v1546 = vadd.f32 %v1420, %v1545
    %v1547 = vsub.f32 1.0, %v1420
    %v1548 = vmul.f32 %v1547, 3e-05
    %v1549 = vmul.f32 %v1548, %v1465
    %v1550 = vadd.f32 %v1546, %v1549
    %v1551 = vsub.f32 1.0, %v1425
    %v1552 = vmul.f32 %v1551, 0.00033333333
    %v1553 = vadd.f32 %v1425, %v1552
    %v1554 = vmul.f32 %v1467, 0.0001
    %v1555 = vsub.f32 %v1553, %v1554
    %1556 = vadd.xlane.f32.xlu0 %v1465
    %v1557 = vpop.xlane.xlu0 %1556
    %v1558 = vmul.f32 %v1557, 2.2
    %v1559 = vsub.f32 %v1558, %v1431
    %v1560 = vmul.f32 %v1559, 0.0125
    %v1561 = vadd.f32 %v1431, %v1560
    %v1562 = vmul.f32 %v1561, 0.6666667
    %v1563 = vmax.f32 %v1562, 0.0
    %v1564 = vand.u32 2147483647, %v1562
    %v1565 = vsub.f32 0.0, %v1564
    %v1566 = vmul.f32 %v1565, 1.442695
    %v1567 = vpow.pop %v1566
    %v1568 = vadd.f32 %v1567, 1.0
    %v1569 = vlog2.pop %v1568
    %v1570 = vmul.f32 %v1569, 0.6931472
    %v1571 = vmul.f32 -0.5, %v1567
    %v1572 = vadd.f32 %v1571, 1.0
    %v1573 = vmul.f32 %v1572, %v1567
    %v1574 = vand.u32 2147483647, %v1567
    %vm1575 = vcmp.lt.f32.partialorder %v1574, 0.0004427343
    %v1576 = vsel %vm1575, %v1573, %v1570
    %v1577 = vadd.f32 %v1563, %v1576
    %v1578 = vmul.f32 %v1577, 1.5
    %v1579 = vmul.f32 %v1543, 0.6666667
    %v1580 = vmax.f32 %v1579, 0.0
    %v1581 = vand.u32 2147483647, %v1579
    %v1582 = vsub.f32 0.0, %v1581
    %v1583 = vmul.f32 %v1582, 1.442695
    %v1584 = vpow.pop %v1583
    %v1585 = vadd.f32 %v1584, 1.0
    %v1586 = vlog2.pop %v1585
    %v1587 = vmul.f32 %v1586, 0.6931472
    %v1588 = vmul.f32 -0.5, %v1584
    %v1589 = vadd.f32 %v1588, 1.0
    %v1590 = vmul.f32 %v1589, %v1584
    %v1591 = vand.u32 2147483647, %v1584
    %vm1592 = vcmp.lt.f32.partialorder %v1591, 0.0004427343
    %v1593 = vsel %vm1592, %v1590, %v1587
    %v1594 = vadd.f32 %v1580, %v1593
    %v1595 = vmul.f32 %v1594, 1.5
    %v1596 = vmul.f32 %v1550, %v1555
    %v1597 = vmul.f32 %v1596, %v1595
    %1598 = vmatprep.subr.mxu0 0.0
    %1599 = vmatpush1.msra.mxu0 %v60
    %1600 = vmatprep.subr.mxu0 0.0
    %1601 = vmatpush1.msra.mxu0 %v59
    %1602 = vmatprep.subr.mxu0 0.0
    %1603 = vmatpush1.msra.mxu0 %v58
    %1604 = vmatprep.subr.mxu0 0.0
    %1605 = vmatpush1.msra.mxu0 %v57
    %1606 = vmatprep.subr.mxu0 0.0
    %1607 = vmatpush1.msra.mxu0 %v56
    %1608 = vmatprep.subr.mxu0 0.0
    %1609 = vmatpush1.msra.mxu0 %v55
    %1610 = vmatprep.subr.mxu0 0.0
    %1611 = vmatpush1.msra.mxu0 %v54
    %1612 = vmatprep.subr.mxu0 0.0
    %1613 = vmatpush1.msra.mxu0 %v53
    %1614 = vmatprep.subr.mxu0 0.0
    %1615 = vmatpush1.msra.mxu0 %v52
    %1616 = vmatprep.subr.mxu0 0.0
    %1617 = vmatpush1.msra.mxu0 %v51
    %1618 = vmatprep.subr.mxu0 0.0
    %1619 = vmatpush1.msra.mxu0 %v50
    %1620 = vmatprep.subr.mxu0 0.0
    %1621 = vmatpush1.msra.mxu0 %v49
    %1622 = vmatprep.subr.mxu0 0.0
    %1623 = vmatpush1.msra.mxu0 %v48
    %1624 = vmatprep.subr.mxu0 0.0
    %1625 = vmatpush1.msra.mxu0 %v47
    %1626 = vmatprep.subr.mxu0 0.0
    %1627 = vmatpush1.msra.mxu0 %v46
    %1628 = vmatprep.subr.mxu0 0.0
    %1629 = vmatpush1.msra.mxu0 %v45
    %1630 = vmatprep.subr.mxu0 0.0
    %1631 = vmatpush2.msra.mxu0 0.0
    %1632 = vmatprep.subr.mxu0 0.0
    %1633 = vmatpush2.msra.mxu0 0.0
    %1634 = vmatprep.subr.mxu0 0.0
    %1635 = vmatpush2.msra.mxu0 0.0
    %1636 = vmatprep.subr.mxu0 0.0
    %1637 = vmatpush2.msra.mxu0 0.0
    %1638 = vmatprep.subr.mxu0 0.0
    %1639 = vmatpush2.msra.mxu0 0.0
    %1640 = vmatprep.subr.mxu0 0.0
    %1641 = vmatpush2.msra.mxu0 0.0
    %1642 = vmatprep.subr.mxu0 0.0
    %1643 = vmatpush2.msra.mxu0 0.0
    %1644 = vmatprep.subr.mxu0 0.0
    %1645 = vmatpush2.msra.mxu0 0.0
    %1646 = vmatprep.subr.mxu0 0.0
    %1647 = vmatpush2.msra.mxu0 0.0
    %1648 = vmatprep.subr.mxu0 0.0
    %1649 = vmatpush2.msra.mxu0 0.0
    %1650 = vmatprep.subr.mxu0 0.0
    %1651 = vmatpush2.msra.mxu0 0.0
    %1652 = vmatprep.subr.mxu0 0.0
    %1653 = vmatpush2.msra.mxu0 0.0
    %1654 = vmatprep.subr.mxu0 0.0
    %1655 = vmatpush2.msra.mxu0 0.0
    %1656 = vmatprep.subr.mxu0 0.0
    %1657 = vmatpush2.msra.mxu0 0.0
    %1658 = vmatprep.subr.mxu0 0.0
    %1659 = vmatpush2.msra.mxu0 0.0
    %1660 = vmatprep.subr.mxu0 0.0
    %1661 = vmatpush2.msra.mxu0 0.0
    %1662 = vmatprep.mubr.f32.mxu0 0.0
    %1663 = vmatmul.mubr.f32.gmra.mxu0 %v1597
    %v1664 = vpop.f32.mrf.mxu0
    %v1665 = vadd.f32 0.0, %v1664
    %v1666 = vpop.f32.mrf.mxu0
    %1667 = vdwg.mxu0
    %v1668 = vsub.f32 %v1665, %v1543
    %v1669 = vmul.f32 %v1578, 1.1
    %v1670 = vsub.f32 %v1668, %v1669
    %v1671 = vadd.f32 %v1670, 8.0
    %v1672 = vmul.f32 %v1671, 0.0125
    %v1673 = vadd.f32 %v1543, %v1672
    %v1674 = vsub.f32 0.3, %v1550
    %v1675 = vmul.f32 %v1674, 6.666667e-05
    %v1676 = vadd.f32 %v1550, %v1675
    %v1677 = vsub.f32 1.0, %v1550
    %v1678 = vmul.f32 %v1677, 3e-05
    %v1679 = vmul.f32 %v1678, %v1595
    %v1680 = vadd.f32 %v1676, %v1679
    %v1681 = vsub.f32 1.0, %v1555
    %v1682 = vmul.f32 %v1681, 0.00033333333
    %v1683 = vadd.f32 %v1555, %v1682
    %v1684 = vmul.f32 %v1597, 0.0001
    %v1685 = vsub.f32 %v1683, %v1684
    %1686 = vadd.xlane.f32.xlu0 %v1595
    %v1687 = vpop.xlane.xlu0 %1686
    %v1688 = vmul.f32 %v1687, 2.2
    %v1689 = vsub.f32 %v1688, %v1561
    %v1690 = vmul.f32 %v1689, 0.0125
    %v1691 = vadd.f32 %v1561, %v1690
    %v1692 = vmul.f32 %v1691, 0.6666667
    %v1693 = vmax.f32 %v1692, 0.0
    %v1694 = vand.u32 2147483647, %v1692
    %v1695 = vsub.f32 0.0, %v1694
    %v1696 = vmul.f32 %v1695, 1.442695
    %v1697 = vpow.pop %v1696
    %v1698 = vadd.f32 %v1697, 1.0
    %v1699 = vlog2.pop %v1698
    %v1700 = vmul.f32 %v1699, 0.6931472
    %v1701 = vmul.f32 -0.5, %v1697
    %v1702 = vadd.f32 %v1701, 1.0
    %v1703 = vmul.f32 %v1702, %v1697
    %v1704 = vand.u32 2147483647, %v1697
    %vm1705 = vcmp.lt.f32.partialorder %v1704, 0.0004427343
    %v1706 = vsel %vm1705, %v1703, %v1700
    %v1707 = vadd.f32 %v1693, %v1706
    %v1708 = vmul.f32 %v1707, 1.5
    %v1709 = vmul.f32 %v1673, 0.6666667
    %v1710 = vmax.f32 %v1709, 0.0
    %v1711 = vand.u32 2147483647, %v1709
    %v1712 = vsub.f32 0.0, %v1711
    %v1713 = vmul.f32 %v1712, 1.442695
    %v1714 = vpow.pop %v1713
    %v1715 = vadd.f32 %v1714, 1.0
    %v1716 = vlog2.pop %v1715
    %v1717 = vmul.f32 %v1716, 0.6931472
    %v1718 = vmul.f32 -0.5, %v1714
    %v1719 = vadd.f32 %v1718, 1.0
    %v1720 = vmul.f32 %v1719, %v1714
    %v1721 = vand.u32 2147483647, %v1714
    %vm1722 = vcmp.lt.f32.partialorder %v1721, 0.0004427343
    %v1723 = vsel %vm1722, %v1720, %v1717
    %v1724 = vadd.f32 %v1710, %v1723
    %v1725 = vmul.f32 %v1724, 1.5
    %v1726 = vmul.f32 %v1680, %v1685
    %v1727 = vmul.f32 %v1726, %v1725
    %1728 = vmatprep.subr.mxu0 0.0
    %1729 = vmatpush1.msra.mxu0 %v60
    %1730 = vmatprep.subr.mxu0 0.0
    %1731 = vmatpush1.msra.mxu0 %v59
    %1732 = vmatprep.subr.mxu0 0.0
    %1733 = vmatpush1.msra.mxu0 %v58
    %1734 = vmatprep.subr.mxu0 0.0
    %1735 = vmatpush1.msra.mxu0 %v57
    %1736 = vmatprep.subr.mxu0 0.0
    %1737 = vmatpush1.msra.mxu0 %v56
    %1738 = vmatprep.subr.mxu0 0.0
    %1739 = vmatpush1.msra.mxu0 %v55
    %1740 = vmatprep.subr.mxu0 0.0
    %1741 = vmatpush1.msra.mxu0 %v54
    %1742 = vmatprep.subr.mxu0 0.0
    %1743 = vmatpush1.msra.mxu0 %v53
    %1744 = vmatprep.subr.mxu0 0.0
    %1745 = vmatpush1.msra.mxu0 %v52
    %1746 = vmatprep.subr.mxu0 0.0
    %1747 = vmatpush1.msra.mxu0 %v51
    %1748 = vmatprep.subr.mxu0 0.0
    %1749 = vmatpush1.msra.mxu0 %v50
    %1750 = vmatprep.subr.mxu0 0.0
    %1751 = vmatpush1.msra.mxu0 %v49
    %1752 = vmatprep.subr.mxu0 0.0
    %1753 = vmatpush1.msra.mxu0 %v48
    %1754 = vmatprep.subr.mxu0 0.0
    %1755 = vmatpush1.msra.mxu0 %v47
    %1756 = vmatprep.subr.mxu0 0.0
    %1757 = vmatpush1.msra.mxu0 %v46
    %1758 = vmatprep.subr.mxu0 0.0
    %1759 = vmatpush1.msra.mxu0 %v45
    %1760 = vmatprep.subr.mxu0 0.0
    %1761 = vmatpush2.msra.mxu0 0.0
    %1762 = vmatprep.subr.mxu0 0.0
    %1763 = vmatpush2.msra.mxu0 0.0
    %1764 = vmatprep.subr.mxu0 0.0
    %1765 = vmatpush2.msra.mxu0 0.0
    %1766 = vmatprep.subr.mxu0 0.0
    %1767 = vmatpush2.msra.mxu0 0.0
    %1768 = vmatprep.subr.mxu0 0.0
    %1769 = vmatpush2.msra.mxu0 0.0
    %1770 = vmatprep.subr.mxu0 0.0
    %1771 = vmatpush2.msra.mxu0 0.0
    %1772 = vmatprep.subr.mxu0 0.0
    %1773 = vmatpush2.msra.mxu0 0.0
    %1774 = vmatprep.subr.mxu0 0.0
    %1775 = vmatpush2.msra.mxu0 0.0
    %1776 = vmatprep.subr.mxu0 0.0
    %1777 = vmatpush2.msra.mxu0 0.0
    %1778 = vmatprep.subr.mxu0 0.0
    %1779 = vmatpush2.msra.mxu0 0.0
    %1780 = vmatprep.subr.mxu0 0.0
    %1781 = vmatpush2.msra.mxu0 0.0
    %1782 = vmatprep.subr.mxu0 0.0
    %1783 = vmatpush2.msra.mxu0 0.0
    %1784 = vmatprep.subr.mxu0 0.0
    %1785 = vmatpush2.msra.mxu0 0.0
    %1786 = vmatprep.subr.mxu0 0.0
    %1787 = vmatpush2.msra.mxu0 0.0
    %1788 = vmatprep.subr.mxu0 0.0
    %1789 = vmatpush2.msra.mxu0 0.0
    %1790 = vmatprep.subr.mxu0 0.0
    %1791 = vmatpush2.msra.mxu0 0.0
    %1792 = vmatprep.mubr.f32.mxu0 0.0
    %1793 = vmatmul.mubr.f32.gmra.mxu0 %v1727
    %v1794 = vpop.f32.mrf.mxu0
    %v1795 = vadd.f32 0.0, %v1794
    %v1796 = vpop.f32.mrf.mxu0
    %1797 = vdwg.mxu0
    %v1798 = vsub.f32 %v1795, %v1673
    %v1799 = vmul.f32 %v1708, 1.1
    %v1800 = vsub.f32 %v1798, %v1799
    %v1801 = vadd.f32 %v1800, 8.0
    %v1802 = vmul.f32 %v1801, 0.0125
    %v1803 = vadd.f32 %v1673, %v1802
    %v1804 = vsub.f32 0.3, %v1680
    %v1805 = vmul.f32 %v1804, 6.666667e-05
    %v1806 = vadd.f32 %v1680, %v1805
    %v1807 = vsub.f32 1.0, %v1680
    %v1808 = vmul.f32 %v1807, 3e-05
    %v1809 = vmul.f32 %v1808, %v1725
    %v1810 = vadd.f32 %v1806, %v1809
    %v1811 = vsub.f32 1.0, %v1685
    %v1812 = vmul.f32 %v1811, 0.00033333333
    %v1813 = vadd.f32 %v1685, %v1812
    %v1814 = vmul.f32 %v1727, 0.0001
    %v1815 = vsub.f32 %v1813, %v1814
    %1816 = vadd.xlane.f32.xlu0 %v1725
    %v1817 = vpop.xlane.xlu0 %1816
    %v1818 = vmul.f32 %v1817, 2.2
    %v1819 = vsub.f32 %v1818, %v1691
    %v1820 = vmul.f32 %v1819, 0.0125
    %v1821 = vadd.f32 %v1691, %v1820
    %v1822 = vmul.f32 %v1821, 0.6666667
    %v1823 = vmax.f32 %v1822, 0.0
    %v1824 = vand.u32 2147483647, %v1822
    %v1825 = vsub.f32 0.0, %v1824
    %v1826 = vmul.f32 %v1825, 1.442695
    %v1827 = vpow.pop %v1826
    %v1828 = vadd.f32 %v1827, 1.0
    %v1829 = vlog2.pop %v1828
    %v1830 = vmul.f32 %v1829, 0.6931472
    %v1831 = vmul.f32 -0.5, %v1827
    %v1832 = vadd.f32 %v1831, 1.0
    %v1833 = vmul.f32 %v1832, %v1827
    %v1834 = vand.u32 2147483647, %v1827
    %vm1835 = vcmp.lt.f32.partialorder %v1834, 0.0004427343
    %v1836 = vsel %vm1835, %v1833, %v1830
    %v1837 = vadd.f32 %v1823, %v1836
    %v1838 = vmul.f32 %v1837, 1.5
    %v1839 = vmul.f32 %v1803, 0.6666667
    %v1840 = vmax.f32 %v1839, 0.0
    %v1841 = vand.u32 2147483647, %v1839
    %v1842 = vsub.f32 0.0, %v1841
    %v1843 = vmul.f32 %v1842, 1.442695
    %v1844 = vpow.pop %v1843
    %v1845 = vadd.f32 %v1844, 1.0
    %v1846 = vlog2.pop %v1845
    %v1847 = vmul.f32 %v1846, 0.6931472
    %v1848 = vmul.f32 -0.5, %v1844
    %v1849 = vadd.f32 %v1848, 1.0
    %v1850 = vmul.f32 %v1849, %v1844
    %v1851 = vand.u32 2147483647, %v1844
    %vm1852 = vcmp.lt.f32.partialorder %v1851, 0.0004427343
    %v1853 = vsel %vm1852, %v1850, %v1847
    %v1854 = vadd.f32 %v1840, %v1853
    %v1855 = vmul.f32 %v1854, 1.5
    %v1856 = vmul.f32 %v1810, %v1815
    %v1857 = vmul.f32 %v1856, %v1855
    %1858 = vmatprep.subr.mxu0 0.0
    %1859 = vmatpush1.msra.mxu0 %v60
    %1860 = vmatprep.subr.mxu0 0.0
    %1861 = vmatpush1.msra.mxu0 %v59
    %1862 = vmatprep.subr.mxu0 0.0
    %1863 = vmatpush1.msra.mxu0 %v58
    %1864 = vmatprep.subr.mxu0 0.0
    %1865 = vmatpush1.msra.mxu0 %v57
    %1866 = vmatprep.subr.mxu0 0.0
    %1867 = vmatpush1.msra.mxu0 %v56
    %1868 = vmatprep.subr.mxu0 0.0
    %1869 = vmatpush1.msra.mxu0 %v55
    %1870 = vmatprep.subr.mxu0 0.0
    %1871 = vmatpush1.msra.mxu0 %v54
    %1872 = vmatprep.subr.mxu0 0.0
    %1873 = vmatpush1.msra.mxu0 %v53
    %1874 = vmatprep.subr.mxu0 0.0
    %1875 = vmatpush1.msra.mxu0 %v52
    %1876 = vmatprep.subr.mxu0 0.0
    %1877 = vmatpush1.msra.mxu0 %v51
    %1878 = vmatprep.subr.mxu0 0.0
    %1879 = vmatpush1.msra.mxu0 %v50
    %1880 = vmatprep.subr.mxu0 0.0
    %1881 = vmatpush1.msra.mxu0 %v49
    %1882 = vmatprep.subr.mxu0 0.0
    %1883 = vmatpush1.msra.mxu0 %v48
    %1884 = vmatprep.subr.mxu0 0.0
    %1885 = vmatpush1.msra.mxu0 %v47
    %1886 = vmatprep.subr.mxu0 0.0
    %1887 = vmatpush1.msra.mxu0 %v46
    %1888 = vmatprep.subr.mxu0 0.0
    %1889 = vmatpush1.msra.mxu0 %v45
    %1890 = vmatprep.subr.mxu0 0.0
    %1891 = vmatpush2.msra.mxu0 0.0
    %1892 = vmatprep.subr.mxu0 0.0
    %1893 = vmatpush2.msra.mxu0 0.0
    %1894 = vmatprep.subr.mxu0 0.0
    %1895 = vmatpush2.msra.mxu0 0.0
    %1896 = vmatprep.subr.mxu0 0.0
    %1897 = vmatpush2.msra.mxu0 0.0
    %1898 = vmatprep.subr.mxu0 0.0
    %1899 = vmatpush2.msra.mxu0 0.0
    %1900 = vmatprep.subr.mxu0 0.0
    %1901 = vmatpush2.msra.mxu0 0.0
    %1902 = vmatprep.subr.mxu0 0.0
    %1903 = vmatpush2.msra.mxu0 0.0
    %1904 = vmatprep.subr.mxu0 0.0
    %1905 = vmatpush2.msra.mxu0 0.0
    %1906 = vmatprep.subr.mxu0 0.0
    %1907 = vmatpush2.msra.mxu0 0.0
    %1908 = vmatprep.subr.mxu0 0.0
    %1909 = vmatpush2.msra.mxu0 0.0
    %1910 = vmatprep.subr.mxu0 0.0
    %1911 = vmatpush2.msra.mxu0 0.0
    %1912 = vmatprep.subr.mxu0 0.0
    %1913 = vmatpush2.msra.mxu0 0.0
    %1914 = vmatprep.subr.mxu0 0.0
    %1915 = vmatpush2.msra.mxu0 0.0
    %1916 = vmatprep.subr.mxu0 0.0
    %1917 = vmatpush2.msra.mxu0 0.0
    %1918 = vmatprep.subr.mxu0 0.0
    %1919 = vmatpush2.msra.mxu0 0.0
    %1920 = vmatprep.subr.mxu0 0.0
    %1921 = vmatpush2.msra.mxu0 0.0
    %1922 = vmatprep.mubr.f32.mxu0 0.0
    %1923 = vmatmul.mubr.f32.gmra.mxu0 %v1857
    %v1924 = vpop.f32.mrf.mxu0
    %v1925 = vadd.f32 0.0, %v1924
    %v1926 = vpop.f32.mrf.mxu0
    %1927 = vdwg.mxu0
    %v1928 = vsub.f32 %v1925, %v1803
    %v1929 = vmul.f32 %v1838, 1.1
    %v1930 = vsub.f32 %v1928, %v1929
    %v1931 = vadd.f32 %v1930, 8.0
    %v1932 = vmul.f32 %v1931, 0.0125
    %v1933 = vadd.f32 %v1803, %v1932
    %v1934 = vsub.f32 0.3, %v1810
    %v1935 = vmul.f32 %v1934, 6.666667e-05
    %v1936 = vadd.f32 %v1810, %v1935
    %v1937 = vsub.f32 1.0, %v1810
    %v1938 = vmul.f32 %v1937, 3e-05
    %v1939 = vmul.f32 %v1938, %v1855
    %v1940 = vadd.f32 %v1936, %v1939
    %v1941 = vsub.f32 1.0, %v1815
    %v1942 = vmul.f32 %v1941, 0.00033333333
    %v1943 = vadd.f32 %v1815, %v1942
    %v1944 = vmul.f32 %v1857, 0.0001
    %v1945 = vsub.f32 %v1943, %v1944
    %1946 = vadd.xlane.f32.xlu0 %v1855
    %v1947 = vpop.xlane.xlu0 %1946
    %v1948 = vmul.f32 %v1947, 2.2
    %v1949 = vsub.f32 %v1948, %v1821
    %v1950 = vmul.f32 %v1949, 0.0125
    %v1951 = vadd.f32 %v1821, %v1950
    %v1952 = vmul.f32 %v1951, 0.6666667
    %v1953 = vmax.f32 %v1952, 0.0
    %v1954 = vand.u32 2147483647, %v1952
    %v1955 = vsub.f32 0.0, %v1954
    %v1956 = vmul.f32 %v1955, 1.442695
    %v1957 = vpow.pop %v1956
    %v1958 = vadd.f32 %v1957, 1.0
    %v1959 = vlog2.pop %v1958
    %v1960 = vmul.f32 %v1959, 0.6931472
    %v1961 = vmul.f32 -0.5, %v1957
    %v1962 = vadd.f32 %v1961, 1.0
    %v1963 = vmul.f32 %v1962, %v1957
    %v1964 = vand.u32 2147483647, %v1957
    %vm1965 = vcmp.lt.f32.partialorder %v1964, 0.0004427343
    %v1966 = vsel %vm1965, %v1963, %v1960
    %v1967 = vadd.f32 %v1953, %v1966
    %v1968 = vmul.f32 %v1967, 1.5
    %v1969 = vmul.f32 %v1933, 0.6666667
    %v1970 = vmax.f32 %v1969, 0.0
    %v1971 = vand.u32 2147483647, %v1969
    %v1972 = vsub.f32 0.0, %v1971
    %v1973 = vmul.f32 %v1972, 1.442695
    %v1974 = vpow.pop %v1973
    %v1975 = vadd.f32 %v1974, 1.0
    %v1976 = vlog2.pop %v1975
    %v1977 = vmul.f32 %v1976, 0.6931472
    %v1978 = vmul.f32 -0.5, %v1974
    %v1979 = vadd.f32 %v1978, 1.0
    %v1980 = vmul.f32 %v1979, %v1974
    %v1981 = vand.u32 2147483647, %v1974
    %vm1982 = vcmp.lt.f32.partialorder %v1981, 0.0004427343
    %v1983 = vsel %vm1982, %v1980, %v1977
    %v1984 = vadd.f32 %v1970, %v1983
    %v1985 = vmul.f32 %v1984, 1.5
    %v1986 = vmul.f32 %v1940, %v1945
    %v1987 = vmul.f32 %v1986, %v1985
    %1988 = vmatprep.subr.mxu0 0.0
    %1989 = vmatpush1.msra.mxu0 %v60
    %1990 = vmatprep.subr.mxu0 0.0
    %1991 = vmatpush1.msra.mxu0 %v59
    %1992 = vmatprep.subr.mxu0 0.0
    %1993 = vmatpush1.msra.mxu0 %v58
    %1994 = vmatprep.subr.mxu0 0.0
    %1995 = vmatpush1.msra.mxu0 %v57
    %1996 = vmatprep.subr.mxu0 0.0
    %1997 = vmatpush1.msra.mxu0 %v56
    %1998 = vmatprep.subr.mxu0 0.0
    %1999 = vmatpush1.msra.mxu0 %v55
    %2000 = vmatprep.subr.mxu0 0.0
    %2001 = vmatpush1.msra.mxu0 %v54
    %2002 = vmatprep.subr.mxu0 0.0
    %2003 = vmatpush1.msra.mxu0 %v53
    %2004 = vmatprep.subr.mxu0 0.0
    %2005 = vmatpush1.msra.mxu0 %v52
    %2006 = vmatprep.subr.mxu0 0.0
    %2007 = vmatpush1.msra.mxu0 %v51
    %2008 = vmatprep.subr.mxu0 0.0
    %2009 = vmatpush1.msra.mxu0 %v50
    %2010 = vmatprep.subr.mxu0 0.0
    %2011 = vmatpush1.msra.mxu0 %v49
    %2012 = vmatprep.subr.mxu0 0.0
    %2013 = vmatpush1.msra.mxu0 %v48
    %2014 = vmatprep.subr.mxu0 0.0
    %2015 = vmatpush1.msra.mxu0 %v47
    %2016 = vmatprep.subr.mxu0 0.0
    %2017 = vmatpush1.msra.mxu0 %v46
    %2018 = vmatprep.subr.mxu0 0.0
    %2019 = vmatpush1.msra.mxu0 %v45
    %2020 = vmatprep.subr.mxu0 0.0
    %2021 = vmatpush2.msra.mxu0 0.0
    %2022 = vmatprep.subr.mxu0 0.0
    %2023 = vmatpush2.msra.mxu0 0.0
    %2024 = vmatprep.subr.mxu0 0.0
    %2025 = vmatpush2.msra.mxu0 0.0
    %2026 = vmatprep.subr.mxu0 0.0
    %2027 = vmatpush2.msra.mxu0 0.0
    %2028 = vmatprep.subr.mxu0 0.0
    %2029 = vmatpush2.msra.mxu0 0.0
    %2030 = vmatprep.subr.mxu0 0.0
    %2031 = vmatpush2.msra.mxu0 0.0
    %2032 = vmatprep.subr.mxu0 0.0
    %2033 = vmatpush2.msra.mxu0 0.0
    %2034 = vmatprep.subr.mxu0 0.0
    %2035 = vmatpush2.msra.mxu0 0.0
    %2036 = vmatprep.subr.mxu0 0.0
    %2037 = vmatpush2.msra.mxu0 0.0
    %2038 = vmatprep.subr.mxu0 0.0
    %2039 = vmatpush2.msra.mxu0 0.0
    %2040 = vmatprep.subr.mxu0 0.0
    %2041 = vmatpush2.msra.mxu0 0.0
    %2042 = vmatprep.subr.mxu0 0.0
    %2043 = vmatpush2.msra.mxu0 0.0
    %2044 = vmatprep.subr.mxu0 0.0
    %2045 = vmatpush2.msra.mxu0 0.0
    %2046 = vmatprep.subr.mxu0 0.0
    %2047 = vmatpush2.msra.mxu0 0.0
    %2048 = vmatprep.subr.mxu0 0.0
    %2049 = vmatpush2.msra.mxu0 0.0
    %2050 = vmatprep.subr.mxu0 0.0
    %2051 = vmatpush2.msra.mxu0 0.0
    %2052 = vmatprep.mubr.f32.mxu0 0.0
    %2053 = vmatmul.mubr.f32.gmra.mxu0 %v1987
    %v2054 = vpop.f32.mrf.mxu0
    %v2055 = vadd.f32 0.0, %v2054
    %v2056 = vpop.f32.mrf.mxu0
    %2057 = vdwg.mxu0
    %v2058 = vsub.f32 %v2055, %v1933
    %v2059 = vmul.f32 %v1968, 1.1
    %v2060 = vsub.f32 %v2058, %v2059
    %v2061 = vadd.f32 %v2060, 8.0
    %v2062 = vmul.f32 %v2061, 0.0125
    %v2063 = vadd.f32 %v1933, %v2062
    %v2064 = vld [vmem:[%s2] sm:$0x1]
    %v2066 = vlaneseq
    %v2067 = vshrl.u32 %v2066, 7
    %v2068 = vsub.s32 0, %v2067
    %v2069 = vrot.slane %v2064, %v2068
    %v2071 = vmul.f32 %v2063, %v2069
    %2072 = vadd.xlane.f32.xlu0 %v2071
    %v2073 = vpop.xlane.xlu0 %2072
    %s2074 = sld [smem:[#allocation2]]
    %v2075 = vstv %s2074
    %v2076 = vadd.f32 %v2073, %v2075
    %vm2077 = vcmask 7168
    %2078 = vst.msk [vmem:[%s4] sm:$0xff] %vm2077, %v2076
    // Predicated region
    $region26: #{tpu_custom_call.1} parent=1 // pred_check
      _
    $region27: #{tpu_custom_call.1} parent=1 // pred_check_branch
      %2080 = sbr.rel (0) target = $region29
    $region28: #{tpu_custom_call.1} parent=1 // pred_region
      _
    $region29: #{tpu_custom_call.1} parent=1 // pred_fallthru
      _
    // Predicated region
    $region30: #{tpu_custom_call.1} parent=1 // pred_check
      _
    $region31: #{tpu_custom_call.1} parent=1 // pred_check_branch
      %2082 = sbr.rel (0) target = $region33
    $region32: #{tpu_custom_call.1} parent=1 // pred_region
      _
    $region33: #{tpu_custom_call.1} parent=1 // pred_fallthru
      _
    %2083 = vsyncpa [#allocation4], 1
    %2084 = vsyncpa [#allocation6], 1

</llo_original>
